<compile_context>
chip_gen: v7x
topology: tpu7x:2x2x1
jax: 0.10.0
libtpu: 0.0.40
codegen_flags: <defaults>
</compile_context>

<pallas_src>
import jax
import jax.numpy as jnp
from jax import lax
from jax.experimental import pallas as pl
from jax.experimental.pallas import tpu as pltpu

# Model dimensions implied by the module (fc1 expects 32*64 -> input length 256).
L0, C_IN, C1, C2 = 256, 2, 16, 32
L1, L2 = L0 // 2, L0 // 4          # 128, 64
K = 3
HID = 128
NUM_CLASSES = 10
NC_PAD = 128                       # fc2 output padded to a full lane tile
BATCH = 2
BT = 2                             # batch samples per grid step (raise for throughput)
K1_PAD = 8                         # conv1 fused contraction dim (K*C_IN = 6 -> 8)


def _even_selector(n, dtype):
    """(n, n//2) matrix S with S[i, j] = 1 iff i == 2*j (even-column pick)."""
    rows = lax.broadcasted_iota(jnp.int32, (n, n // 2), 0)
    cols = lax.broadcasted_iota(jnp.int32, (n, n // 2), 1)
    return (rows == 2 * cols).astype(jnp.float32).astype(dtype)


# ---------------------------------------------------------------------------
# Fully fused kernel
# ---------------------------------------------------------------------------
def _cnn_kernel(x_ref, w1_ref, b1_ref, w2_ref, b2_ref,
                wf1_ref, bf1_ref, wf2_ref, bf2_ref, out_ref):
    f32, bf16 = jnp.float32, jnp.bfloat16
    B = x_ref.shape[1] // L0                         # samples in this batch tile

    # ---- conv1 (+bias+ReLU): ONE fused 3-tap matmul ------------------------
    xw = x_ref[...]                                  # (C_IN, B*L0) f32, lane-dense
    pos0 = lax.broadcasted_iota(jnp.int32, xw.shape, 1) & (L0 - 1)   # shared mask
    x_prev = jnp.where(pos0 == 0, 0.0, jnp.roll(xw, 1, axis=1))
    x_next = jnp.where(pos0 == L0 - 1, 0.0, jnp.roll(xw, -1, axis=1))
    kpad = jnp.zeros((K1_PAD - K * C_IN, xw.shape[1]), f32)
    xs1 = jnp.concatenate([x_prev, xw, x_next, kpad], axis=0).astype(bf16)  # (8, B*L0)
    y1 = jnp.dot(w1_ref[...], xs1, preferred_element_type=f32) + b1_ref[...]
    y1 = jnp.maximum(y1, 0.0)                        # (C1, B*L0) f32

    # ---- maxpool(2) #1: pairwise max + even-column pick on the (idle) MXU --
    # NOTE: the roll wraps across batch segments; safe because the selector
    # only reads even columns.
    s1 = _even_selector(L0, bf16)                    # (L0, L1) bf16
    m1 = jnp.maximum(y1, jnp.roll(y1, -1, axis=1))   # f32
    p1 = jnp.concatenate(
        [jnp.dot(m1[:, b * L0:(b + 1) * L0].astype(bf16), s1,
                 preferred_element_type=f32) for b in range(B)],
        axis=1)                                      # (C1, B*L1) f32

    # ---- conv2 (+bias+ReLU): ONE fused 3-tap matmul -------------------------
    pos1 = lax.broadcasted_iota(jnp.int32, p1.shape, 1) & (L1 - 1)
    p_prev = jnp.where(pos1 == 0, 0.0, jnp.roll(p1, 1, axis=1))
    p_next = jnp.where(pos1 == L1 - 1, 0.0, jnp.roll(p1, -1, axis=1))
    xs2 = jnp.concatenate([p_prev, p1, p_next], axis=0).astype(bf16)  # (K*C1, B*L1)
    y2 = jnp.dot(w2_ref[...], xs2, preferred_element_type=f32) + b2_ref[...]
    y2 = jnp.maximum(y2, 0.0)                        # (C2, B*L1) f32

    # ---- maxpool(2) #2 folded into fc1 --------------------------------------
    # Only the pairwise max is done here; the even-column selection lives in
    # the fc1 weights (odd rows are zero), so contaminated odd entries and the
    # batch-boundary wrap are harmless.
    m2 = jnp.maximum(y2, jnp.roll(y2, -1, axis=1)).astype(bf16)       # (C2, B*L1)

    # fc1 LHS: per batch sample, lane-concatenate the 32 channel slices into a
    # single (1, C2*L1) row; column order c*L1 + l matches the folded weights.
    rows = []
    for b in range(B):
        rows.append(jnp.concatenate(
            [m2[c:c + 1, b * L1:(b + 1) * L1] for c in range(C2)], axis=1))
    a = jnp.concatenate(rows, axis=0)                # (B, C2*L1) bf16

    # ---- fc1 (+bias+ReLU): ONE deep dot, f32 accumulation -------------------
    z = jnp.dot(a, wf1_ref[...], preferred_element_type=f32) + bf1_ref[...]
    z = jnp.maximum(z, 0.0)                          # (B, HID) f32

    # ---- fc2 (lane-dense 128-wide padded output; sliced outside) ------------
    out_ref[0] = (jnp.dot(z.astype(bf16), wf2_ref[...],
                          preferred_element_type=f32) + bf2_ref[...])


def _cnn_forward_call(xt, w1, b1, w2, b2, wf1, bf1, wf2, bf2):
    B = xt.shape[1] // L0
    n_tiles = B // BT
    out = pl.pallas_call(
        _cnn_kernel,
        out_shape=jax.ShapeDtypeStruct((n_tiles, BT, NC_PAD), jnp.float32),
        grid_spec=pltpu.PrefetchScalarGridSpec(
            num_scalar_prefetch=0,
            grid=(n_tiles,),
            in_specs=[
                pl.BlockSpec((C_IN, BT * L0), lambda i: (0, i)),
                pl.BlockSpec(w1.shape, lambda i: (0, 0)),
                pl.BlockSpec(b1.shape, lambda i: (0, 0)),
                pl.BlockSpec(w2.shape, lambda i: (0, 0)),
                pl.BlockSpec(b2.shape, lambda i: (0, 0)),
                pl.BlockSpec(wf1.shape, lambda i: (0, 0)),
                pl.BlockSpec(bf1.shape, lambda i: (0, 0)),
                pl.BlockSpec(wf2.shape, lambda i: (0, 0)),
                pl.BlockSpec(bf2.shape, lambda i: (0, 0)),
            ],
            out_specs=pl.BlockSpec((1, BT, NC_PAD), lambda i: (i, 0, 0)),
        ),
        compiler_params=pltpu.CompilerParams(
            dimension_semantics=("parallel",)),      # batch tiles split across TCs (v7x)
    )(xt, w1, b1, w2, b2, wf1, bf1, wf2, bf2)
    return out.reshape(B, NC_PAD)


# ---------------------------------------------------------------------------
# One-time weight preparation (layout / folding / padding / bf16 cast)
# ---------------------------------------------------------------------------
def prepare_params(p):
    f32, bf16 = jnp.float32, jnp.bfloat16
    # conv weights (O, C, K) -> (O, K*C); column order k*C + c matches the
    # [x_prev; x; x_next] sublane stacking in the kernel.
    w1 = jnp.transpose(p['conv1_w'], (0, 2, 1)).reshape(C1, K * C_IN)
    w1 = jnp.pad(w1, ((0, 0), (0, K1_PAD - K * C_IN))).astype(bf16)        # (C1, 8)
    w2 = jnp.transpose(p['conv2_w'], (0, 2, 1)).reshape(C2, K * C1).astype(bf16)
    # fc1 with the pool-2 even-column selector folded in: row c*L1 + 2*l2
    # holds fc1_w[:, c*L2 + l2]; odd rows are zero.
    wf1_t = p['fc1_w'].T.reshape(C2, L2, HID).astype(f32)                  # (C2, L2, HID)
    wf1_f = jnp.zeros((C2, L2, 2, HID), f32).at[:, :, 0, :].set(wf1_t)
    wf1_f = wf1_f.reshape(C2 * L1, HID).astype(bf16)                       # (4096, HID)
    wf2 = jnp.pad(p['fc2_w'].T.astype(f32),
                  ((0, 0), (0, NC_PAD - p['fc2_w'].shape[0]))).astype(bf16)
    return dict(
        w1=w1, b1=p['conv1_b'].reshape(C1, 1).astype(f32),
        w2=w2, b2=p['conv2_b'].reshape(C2, 1).astype(f32),
        wf1=wf1_f, bf1=p['fc1_b'].reshape(1, HID).astype(f32),
        wf2=wf2,
        bf2=jnp.pad(p['fc2_b'].astype(f32),
                    (0, NC_PAD - p['fc2_b'].shape[0])).reshape(1, NC_PAD),
    )


@jax.jit
def simple_cnn_forward(x_ncw, prepped):
    B = x_ncw.shape[0]
    # batch -> lane relayout done in XLA (free at this size), channel-major.
    xt = jnp.transpose(x_ncw, (1, 0, 2)).reshape(C_IN, B * L0)
    out = _cnn_forward_call(xt, prepped['w1'], prepped['b1'],
                            prepped['w2'], prepped['b2'],
                            prepped['wf1'], prepped['bf1'],
                            prepped['wf2'], prepped['bf2'])
    return out[:, :NUM_CLASSES]


# ---------------------------------------------------------------------------
# Pure-JAX reference (mirrors the PyTorch forward exactly, NCW layout)
# ---------------------------------------------------------------------------
def reference_forward(x_ncw, p):
    def conv1d(x, w, b):          # x: (B,C,L), w: (O,C,K), padding=1
        B, C, L = x.shape
        O = w.shape[0]
        xp = jnp.pad(x, ((0, 0), (0, 0), (1, 1)))
        out = jnp.zeros((B, O, L), jnp.float32)
        for k in range(w.shape[2]):
            out = out + jnp.einsum('bcl,oc->bol', xp[:, :, k:k + L], w[:, :, k])
        return out + b[None, :, None]

    def pool(x):                  # MaxPool1d(2)
        B, C, L = x.shape
        return jnp.max(x.reshape(B, C, L // 2, 2), axis=-1)

    h = pool(jax.nn.relu(conv1d(x_ncw, p['conv1_w'], p['conv1_b'])))
    h = pool(jax.nn.relu(conv1d(h, p['conv2_w'], p['conv2_b'])))
    h = h.reshape(h.shape[0], -1)
    h = jax.nn.relu(h @ p['fc1_w'].T + p['fc1_b'])
    return h @ p['fc2_w'].T + p['fc2_b']


if __name__ == "__main__":
    key = jax.random.PRNGKey(0)
    ks = jax.random.split(key, 9)
    params = {
        'conv1_w': jax.random.normal(ks[0], (C1, C_IN, K), jnp.float32) * 0.1,
        'conv1_b': jax.random.normal(ks[1], (C1,), jnp.float32) * 0.1,
        'conv2_w': jax.random.normal(ks[2], (C2, C1, K), jnp.float32) * 0.1,
        'conv2_b': jax.random.normal(ks[3], (C2,), jnp.float32) * 0.1,
        'fc1_w': jax.random.normal(ks[4], (HID, C2 * L2), jnp.float32) * 0.02,
        'fc1_b': jax.random.normal(ks[5], (HID,), jnp.float32) * 0.02,
        'fc2_w': jax.random.normal(ks[6], (NUM_CLASSES, HID), jnp.float32) * 0.05,
        'fc2_b': jax.random.normal(ks[7], (NUM_CLASSES,), jnp.float32) * 0.05,
    }
    # PyTorch-style input: (batch, channels, length) = (2, 2, 256)
    x = jax.random.normal(ks[8], (BATCH, C_IN, L0), jnp.float32)

    prepped = prepare_params(params)          # one-time weight prep
    out = simple_cnn_forward(x, prepped)
    out = jax.block_until_ready(out)

    ref = reference_forward(x, params)
    assert out.shape == (BATCH, NUM_CLASSES), out.shape
    # bf16 MXU operands throughout -> compare at ~1e-2-level tolerance.
    err = jnp.max(jnp.abs(out - ref))
    assert jnp.allclose(out, ref, rtol=2e-2, atol=2e-2), (float(err), out, ref)
    print("KERNEL_OK")
</pallas_src>

<mosaic_0001>
module attributes {stable_mosaic.version = 11 : i64} {
  func.func @_cnn_kernel(%arg0: i32, %arg1: memref<2x512xf32, #tpu.memory_space<vmem>>, %arg2: memref<16x8xbf16, #tpu.memory_space<vmem>>, %arg3: memref<16x1xf32, #tpu.memory_space<vmem>>, %arg4: memref<32x48xbf16, #tpu.memory_space<vmem>>, %arg5: memref<32x1xf32, #tpu.memory_space<vmem>>, %arg6: memref<4096x128xbf16, #tpu.memory_space<vmem>>, %arg7: memref<1x128xf32, #tpu.memory_space<vmem>>, %arg8: memref<128x128xbf16, #tpu.memory_space<vmem>>, %arg9: memref<1x128xf32, #tpu.memory_space<vmem>>, %arg10: memref<1x2x128xf32, #tpu.memory_space<vmem>>) attributes {dimension_semantics = [#tpu.dimension_semantics<parallel>], iteration_bounds = array<i64: 1>, scalar_prefetch = 0 : i64, scratch_operands = 0 : i64, tpu.core_type = #tpu.core_type<tc>, window_params = [{transform_indices = @transform_0, window_bounds = array<i64: 2, 512>}, {pipeline_mode = #tpu.pipeline_mode<synchronous>, transform_indices = @transform_1, window_bounds = array<i64: 16, 8>}, {pipeline_mode = #tpu.pipeline_mode<synchronous>, transform_indices = @transform_2, window_bounds = array<i64: 16, 1>}, {pipeline_mode = #tpu.pipeline_mode<synchronous>, transform_indices = @transform_3, window_bounds = array<i64: 32, 48>}, {pipeline_mode = #tpu.pipeline_mode<synchronous>, transform_indices = @transform_4, window_bounds = array<i64: 32, 1>}, {pipeline_mode = #tpu.pipeline_mode<synchronous>, transform_indices = @transform_5, window_bounds = array<i64: 4096, 128>}, {pipeline_mode = #tpu.pipeline_mode<synchronous>, transform_indices = @transform_6, window_bounds = array<i64: 1, 128>}, {pipeline_mode = #tpu.pipeline_mode<synchronous>, transform_indices = @transform_7, window_bounds = array<i64: 128, 128>}, {pipeline_mode = #tpu.pipeline_mode<synchronous>, transform_indices = @transform_8, window_bounds = array<i64: 1, 128>}, {transform_indices = @transform_9, window_bounds = array<i64: 1, 2, 128>}]} {
    %c0 = arith.constant 0 : index
    %c0_0 = arith.constant 0 : index
    %0 = vector.load %arg1[%c0, %c0_0] : memref<2x512xf32, #tpu.memory_space<vmem>>, vector<2x512xf32>
    %1 = tpu.iota {dimensions = array<i32: 1>} : vector<2x512xi32>
    %c255_i32 = arith.constant 255 : i32
    %2 = vector.broadcast %c255_i32 : i32 to vector<2x512xi32>
    %3 = arith.andi %1, %2 : vector<2x512xi32>
    %c0_i32 = arith.constant 0 : i32
    %4 = vector.broadcast %c0_i32 : i32 to vector<2x512xi32>
    %5 = arith.cmpi eq, %3, %4 : vector<2x512xi32>
    %6 = vector.extract_strided_slice %0 {offsets = [0, 511], sizes = [2, 1], strides = [1, 1]} : vector<2x512xf32> to vector<2x1xf32>
    %7 = vector.extract_strided_slice %0 {offsets = [0, 0], sizes = [2, 511], strides = [1, 1]} : vector<2x512xf32> to vector<2x511xf32>
    %8 = tpu.concatenate %6, %7 in 1 : vector<2x1xf32>, vector<2x511xf32> -> vector<2x512xf32>
    %cst = arith.constant 0.000000e+00 : f32
    %9 = vector.broadcast %cst : f32 to vector<2x512xf32>
    %10 = arith.select %5, %9, %8 : vector<2x512xi1>, vector<2x512xf32>
    %c255_i32_1 = arith.constant 255 : i32
    %11 = vector.broadcast %c255_i32_1 : i32 to vector<2x512xi32>
    %12 = arith.cmpi eq, %3, %11 : vector<2x512xi32>
    %13 = vector.extract_strided_slice %0 {offsets = [0, 1], sizes = [2, 511], strides = [1, 1]} : vector<2x512xf32> to vector<2x511xf32>
    %14 = vector.extract_strided_slice %0 {offsets = [0, 0], sizes = [2, 1], strides = [1, 1]} : vector<2x512xf32> to vector<2x1xf32>
    %15 = tpu.concatenate %13, %14 in 1 : vector<2x511xf32>, vector<2x1xf32> -> vector<2x512xf32>
    %cst_2 = arith.constant 0.000000e+00 : f32
    %16 = vector.broadcast %cst_2 : f32 to vector<2x512xf32>
    %17 = arith.select %12, %16, %15 : vector<2x512xi1>, vector<2x512xf32>
    %cst_3 = arith.constant 0.000000e+00 : f32
    %18 = vector.broadcast %cst_3 : f32 to vector<2x512xf32>
    %19 = tpu.concatenate %10, %0, %17, %18 in 0 : vector<2x512xf32>, vector<2x512xf32>, vector<2x512xf32>, vector<2x512xf32> -> vector<8x512xf32>
    %20 = arith.truncf %19 : vector<8x512xf32> to vector<8x512xbf16>
    %c0_4 = arith.constant 0 : index
    %c0_5 = arith.constant 0 : index
    %21 = vector.load %arg2[%c0_4, %c0_5] : memref<16x8xbf16, #tpu.memory_space<vmem>>, vector<16x8xbf16>
    %cst_6 = arith.constant dense<0.000000e+00> : vector<16x512xf32>
    %22 = tpu.matmul %21, %20, %cst_6 {dimension_numbers = #tpu.dot_dimension_numbers<[1], [0], [0], [1], [0, 0, 1, 1], [], []>} : vector<16x8xbf16>, vector<8x512xbf16>, vector<16x512xf32> -> vector<16x512xf32>
    %c0_7 = arith.constant 0 : index
    %c0_8 = arith.constant 0 : index
    %23 = vector.load %arg3[%c0_7, %c0_8] : memref<16x1xf32, #tpu.memory_space<vmem>>, vector<16x1xf32>
    %24 = vector.broadcast %23 : vector<16x1xf32> to vector<16x512xf32>
    %25 = arith.addf %22, %24 : vector<16x512xf32>
    %cst_9 = arith.constant 0.000000e+00 : f32
    %26 = vector.broadcast %cst_9 : f32 to vector<16x512xf32>
    %27 = arith.maximumf %25, %26 : vector<16x512xf32>
    %28 = tpu.iota {dimensions = array<i32: 0>} : vector<256x128xi32>
    %29 = tpu.iota {dimensions = array<i32: 1>} : vector<256x128xi32>
    %c2_i32 = arith.constant 2 : i32
    %30 = vector.broadcast %c2_i32 : i32 to vector<256x128xi32>
    %31 = arith.muli %30, %29 : vector<256x128xi32>
    %32 = arith.cmpi eq, %28, %31 : vector<256x128xi32>
    %33 = arith.extui %32 : vector<256x128xi1> to vector<256x128xi32>
    %34 = arith.sitofp %33 : vector<256x128xi32> to vector<256x128xf32>
    %35 = arith.truncf %34 : vector<256x128xf32> to vector<256x128xbf16>
    %36 = vector.extract_strided_slice %27 {offsets = [0, 1], sizes = [16, 511], strides = [1, 1]} : vector<16x512xf32> to vector<16x511xf32>
    %37 = vector.extract_strided_slice %27 {offsets = [0, 0], sizes = [16, 1], strides = [1, 1]} : vector<16x512xf32> to vector<16x1xf32>
    %38 = tpu.concatenate %36, %37 in 1 : vector<16x511xf32>, vector<16x1xf32> -> vector<16x512xf32>
    %39 = arith.maximumf %27, %38 : vector<16x512xf32>
    %40 = vector.extract_strided_slice %39 {offsets = [0, 0], sizes = [16, 256], strides = [1, 1]} : vector<16x512xf32> to vector<16x256xf32>
    %41 = arith.truncf %40 : vector<16x256xf32> to vector<16x256xbf16>
    %cst_10 = arith.constant dense<0.000000e+00> : vector<16x128xf32>
    %42 = tpu.matmul %41, %35, %cst_10 {dimension_numbers = #tpu.dot_dimension_numbers<[1], [0], [0], [1], [0, 0, 1, 1], [], []>} : vector<16x256xbf16>, vector<256x128xbf16>, vector<16x128xf32> -> vector<16x128xf32>
    %43 = vector.extract_strided_slice %39 {offsets = [0, 256], sizes = [16, 256], strides = [1, 1]} : vector<16x512xf32> to vector<16x256xf32>
    %44 = arith.truncf %43 : vector<16x256xf32> to vector<16x256xbf16>
    %cst_11 = arith.constant dense<0.000000e+00> : vector<16x128xf32>
    %45 = tpu.matmul %44, %35, %cst_11 {dimension_numbers = #tpu.dot_dimension_numbers<[1], [0], [0], [1], [0, 0, 1, 1], [], []>} : vector<16x256xbf16>, vector<256x128xbf16>, vector<16x128xf32> -> vector<16x128xf32>
    %46 = tpu.concatenate %42, %45 in 1 : vector<16x128xf32>, vector<16x128xf32> -> vector<16x256xf32>
    %47 = tpu.iota {dimensions = array<i32: 1>} : vector<16x256xi32>
    %c127_i32 = arith.constant 127 : i32
    %48 = vector.broadcast %c127_i32 : i32 to vector<16x256xi32>
    %49 = arith.andi %47, %48 : vector<16x256xi32>
    %c0_i32_12 = arith.constant 0 : i32
    %50 = vector.broadcast %c0_i32_12 : i32 to vector<16x256xi32>
    %51 = arith.cmpi eq, %49, %50 : vector<16x256xi32>
    %52 = vector.extract_strided_slice %46 {offsets = [0, 255], sizes = [16, 1], strides = [1, 1]} : vector<16x256xf32> to vector<16x1xf32>
    %53 = vector.extract_strided_slice %46 {offsets = [0, 0], sizes = [16, 255], strides = [1, 1]} : vector<16x256xf32> to vector<16x255xf32>
    %54 = tpu.concatenate %52, %53 in 1 : vector<16x1xf32>, vector<16x255xf32> -> vector<16x256xf32>
    %cst_13 = arith.constant 0.000000e+00 : f32
    %55 = vector.broadcast %cst_13 : f32 to vector<16x256xf32>
    %56 = arith.select %51, %55, %54 : vector<16x256xi1>, vector<16x256xf32>
    %c127_i32_14 = arith.constant 127 : i32
    %57 = vector.broadcast %c127_i32_14 : i32 to vector<16x256xi32>
    %58 = arith.cmpi eq, %49, %57 : vector<16x256xi32>
    %59 = vector.extract_strided_slice %46 {offsets = [0, 1], sizes = [16, 255], strides = [1, 1]} : vector<16x256xf32> to vector<16x255xf32>
    %60 = vector.extract_strided_slice %46 {offsets = [0, 0], sizes = [16, 1], strides = [1, 1]} : vector<16x256xf32> to vector<16x1xf32>
    %61 = tpu.concatenate %59, %60 in 1 : vector<16x255xf32>, vector<16x1xf32> -> vector<16x256xf32>
    %cst_15 = arith.constant 0.000000e+00 : f32
    %62 = vector.broadcast %cst_15 : f32 to vector<16x256xf32>
    %63 = arith.select %58, %62, %61 : vector<16x256xi1>, vector<16x256xf32>
    %64 = tpu.concatenate %56, %46, %63 in 0 : vector<16x256xf32>, vector<16x256xf32>, vector<16x256xf32> -> vector<48x256xf32>
    %65 = arith.truncf %64 : vector<48x256xf32> to vector<48x256xbf16>
    %c0_16 = arith.constant 0 : index
    %c0_17 = arith.constant 0 : index
    %66 = vector.load %arg4[%c0_16, %c0_17] : memref<32x48xbf16, #tpu.memory_space<vmem>>, vector<32x48xbf16>
    %cst_18 = arith.constant dense<0.000000e+00> : vector<32x256xf32>
    %67 = tpu.matmul %66, %65, %cst_18 {dimension_numbers = #tpu.dot_dimension_numbers<[1], [0], [0], [1], [0, 0, 1, 1], [], []>} : vector<32x48xbf16>, vector<48x256xbf16>, vector<32x256xf32> -> vector<32x256xf32>
    %c0_19 = arith.constant 0 : index
    %c0_20 = arith.constant 0 : index
    %68 = vector.load %arg5[%c0_19, %c0_20] : memref<32x1xf32, #tpu.memory_space<vmem>>, vector<32x1xf32>
    %69 = vector.broadcast %68 : vector<32x1xf32> to vector<32x256xf32>
    %70 = arith.addf %67, %69 : vector<32x256xf32>
    %cst_21 = arith.constant 0.000000e+00 : f32
    %71 = vector.broadcast %cst_21 : f32 to vector<32x256xf32>
    %72 = arith.maximumf %70, %71 : vector<32x256xf32>
    %73 = vector.extract_strided_slice %72 {offsets = [0, 1], sizes = [32, 255], strides = [1, 1]} : vector<32x256xf32> to vector<32x255xf32>
    %74 = vector.extract_strided_slice %72 {offsets = [0, 0], sizes = [32, 1], strides = [1, 1]} : vector<32x256xf32> to vector<32x1xf32>
    %75 = tpu.concatenate %73, %74 in 1 : vector<32x255xf32>, vector<32x1xf32> -> vector<32x256xf32>
    %76 = arith.maximumf %72, %75 : vector<32x256xf32>
    %77 = arith.truncf %76 : vector<32x256xf32> to vector<32x256xbf16>
    %78 = vector.extract_strided_slice %77 {offsets = [0, 0], sizes = [1, 128], strides = [1, 1]} : vector<32x256xbf16> to vector<1x128xbf16>
    %79 = vector.extract_strided_slice %77 {offsets = [1, 0], sizes = [1, 128], strides = [1, 1]} : vector<32x256xbf16> to vector<1x128xbf16>
    %80 = vector.extract_strided_slice %77 {offsets = [2, 0], sizes = [1, 128], strides = [1, 1]} : vector<32x256xbf16> to vector<1x128xbf16>
    %81 = vector.extract_strided_slice %77 {offsets = [3, 0], sizes = [1, 128], strides = [1, 1]} : vector<32x256xbf16> to vector<1x128xbf16>
    %82 = vector.extract_strided_slice %77 {offsets = [4, 0], sizes = [1, 128], strides = [1, 1]} : vector<32x256xbf16> to vector<1x128xbf16>
    %83 = vector.extract_strided_slice %77 {offsets = [5, 0], sizes = [1, 128], strides = [1, 1]} : vector<32x256xbf16> to vector<1x128xbf16>
    %84 = vector.extract_strided_slice %77 {offsets = [6, 0], sizes = [1, 128], strides = [1, 1]} : vector<32x256xbf16> to vector<1x128xbf16>
    %85 = vector.extract_strided_slice %77 {offsets = [7, 0], sizes = [1, 128], strides = [1, 1]} : vector<32x256xbf16> to vector<1x128xbf16>
    %86 = vector.extract_strided_slice %77 {offsets = [8, 0], sizes = [1, 128], strides = [1, 1]} : vector<32x256xbf16> to vector<1x128xbf16>
    %87 = vector.extract_strided_slice %77 {offsets = [9, 0], sizes = [1, 128], strides = [1, 1]} : vector<32x256xbf16> to vector<1x128xbf16>
    %88 = vector.extract_strided_slice %77 {offsets = [10, 0], sizes = [1, 128], strides = [1, 1]} : vector<32x256xbf16> to vector<1x128xbf16>
    %89 = vector.extract_strided_slice %77 {offsets = [11, 0], sizes = [1, 128], strides = [1, 1]} : vector<32x256xbf16> to vector<1x128xbf16>
    %90 = vector.extract_strided_slice %77 {offsets = [12, 0], sizes = [1, 128], strides = [1, 1]} : vector<32x256xbf16> to vector<1x128xbf16>
    %91 = vector.extract_strided_slice %77 {offsets = [13, 0], sizes = [1, 128], strides = [1, 1]} : vector<32x256xbf16> to vector<1x128xbf16>
    %92 = vector.extract_strided_slice %77 {offsets = [14, 0], sizes = [1, 128], strides = [1, 1]} : vector<32x256xbf16> to vector<1x128xbf16>
    %93 = vector.extract_strided_slice %77 {offsets = [15, 0], sizes = [1, 128], strides = [1, 1]} : vector<32x256xbf16> to vector<1x128xbf16>
    %94 = vector.extract_strided_slice %77 {offsets = [16, 0], sizes = [1, 128], strides = [1, 1]} : vector<32x256xbf16> to vector<1x128xbf16>
    %95 = vector.extract_strided_slice %77 {offsets = [17, 0], sizes = [1, 128], strides = [1, 1]} : vector<32x256xbf16> to vector<1x128xbf16>
    %96 = vector.extract_strided_slice %77 {offsets = [18, 0], sizes = [1, 128], strides = [1, 1]} : vector<32x256xbf16> to vector<1x128xbf16>
    %97 = vector.extract_strided_slice %77 {offsets = [19, 0], sizes = [1, 128], strides = [1, 1]} : vector<32x256xbf16> to vector<1x128xbf16>
    %98 = vector.extract_strided_slice %77 {offsets = [20, 0], sizes = [1, 128], strides = [1, 1]} : vector<32x256xbf16> to vector<1x128xbf16>
    %99 = vector.extract_strided_slice %77 {offsets = [21, 0], sizes = [1, 128], strides = [1, 1]} : vector<32x256xbf16> to vector<1x128xbf16>
    %100 = vector.extract_strided_slice %77 {offsets = [22, 0], sizes = [1, 128], strides = [1, 1]} : vector<32x256xbf16> to vector<1x128xbf16>
    %101 = vector.extract_strided_slice %77 {offsets = [23, 0], sizes = [1, 128], strides = [1, 1]} : vector<32x256xbf16> to vector<1x128xbf16>
    %102 = vector.extract_strided_slice %77 {offsets = [24, 0], sizes = [1, 128], strides = [1, 1]} : vector<32x256xbf16> to vector<1x128xbf16>
    %103 = vector.extract_strided_slice %77 {offsets = [25, 0], sizes = [1, 128], strides = [1, 1]} : vector<32x256xbf16> to vector<1x128xbf16>
    %104 = vector.extract_strided_slice %77 {offsets = [26, 0], sizes = [1, 128], strides = [1, 1]} : vector<32x256xbf16> to vector<1x128xbf16>
    %105 = vector.extract_strided_slice %77 {offsets = [27, 0], sizes = [1, 128], strides = [1, 1]} : vector<32x256xbf16> to vector<1x128xbf16>
    %106 = vector.extract_strided_slice %77 {offsets = [28, 0], sizes = [1, 128], strides = [1, 1]} : vector<32x256xbf16> to vector<1x128xbf16>
    %107 = vector.extract_strided_slice %77 {offsets = [29, 0], sizes = [1, 128], strides = [1, 1]} : vector<32x256xbf16> to vector<1x128xbf16>
    %108 = vector.extract_strided_slice %77 {offsets = [30, 0], sizes = [1, 128], strides = [1, 1]} : vector<32x256xbf16> to vector<1x128xbf16>
    %109 = vector.extract_strided_slice %77 {offsets = [31, 0], sizes = [1, 128], strides = [1, 1]} : vector<32x256xbf16> to vector<1x128xbf16>
    %110 = tpu.concatenate %78, %79, %80, %81, %82, %83, %84, %85, %86, %87, %88, %89, %90, %91, %92, %93 in 1 : vector<1x128xbf16>, vector<1x128xbf16>, vector<1x128xbf16>, vector<1x128xbf16>, vector<1x128xbf16>, vector<1x128xbf16>, vector<1x128xbf16>, vector<1x128xbf16>, vector<1x128xbf16>, vector<1x128xbf16>, vector<1x128xbf16>, vector<1x128xbf16>, vector<1x128xbf16>, vector<1x128xbf16>, vector<1x128xbf16>, vector<1x128xbf16> -> vector<1x2048xbf16>
    %111 = tpu.concatenate %94, %95, %96, %97, %98, %99, %100, %101, %102, %103, %104, %105, %106, %107, %108, %109 in 1 : vector<1x128xbf16>, vector<1x128xbf16>, vector<1x128xbf16>, vector<1x128xbf16>, vector<1x128xbf16>, vector<1x128xbf16>, vector<1x128xbf16>, vector<1x128xbf16>, vector<1x128xbf16>, vector<1x128xbf16>, vector<1x128xbf16>, vector<1x128xbf16>, vector<1x128xbf16>, vector<1x128xbf16>, vector<1x128xbf16>, vector<1x128xbf16> -> vector<1x2048xbf16>
    %112 = tpu.concatenate %110, %111 in 1 : vector<1x2048xbf16>, vector<1x2048xbf16> -> vector<1x4096xbf16>
    %113 = vector.extract_strided_slice %77 {offsets = [0, 128], sizes = [1, 128], strides = [1, 1]} : vector<32x256xbf16> to vector<1x128xbf16>
    %114 = vector.extract_strided_slice %77 {offsets = [1, 128], sizes = [1, 128], strides = [1, 1]} : vector<32x256xbf16> to vector<1x128xbf16>
    %115 = vector.extract_strided_slice %77 {offsets = [2, 128], sizes = [1, 128], strides = [1, 1]} : vector<32x256xbf16> to vector<1x128xbf16>
    %116 = vector.extract_strided_slice %77 {offsets = [3, 128], sizes = [1, 128], strides = [1, 1]} : vector<32x256xbf16> to vector<1x128xbf16>
    %117 = vector.extract_strided_slice %77 {offsets = [4, 128], sizes = [1, 128], strides = [1, 1]} : vector<32x256xbf16> to vector<1x128xbf16>
    %118 = vector.extract_strided_slice %77 {offsets = [5, 128], sizes = [1, 128], strides = [1, 1]} : vector<32x256xbf16> to vector<1x128xbf16>
    %119 = vector.extract_strided_slice %77 {offsets = [6, 128], sizes = [1, 128], strides = [1, 1]} : vector<32x256xbf16> to vector<1x128xbf16>
    %120 = vector.extract_strided_slice %77 {offsets = [7, 128], sizes = [1, 128], strides = [1, 1]} : vector<32x256xbf16> to vector<1x128xbf16>
    %121 = vector.extract_strided_slice %77 {offsets = [8, 128], sizes = [1, 128], strides = [1, 1]} : vector<32x256xbf16> to vector<1x128xbf16>
    %122 = vector.extract_strided_slice %77 {offsets = [9, 128], sizes = [1, 128], strides = [1, 1]} : vector<32x256xbf16> to vector<1x128xbf16>
    %123 = vector.extract_strided_slice %77 {offsets = [10, 128], sizes = [1, 128], strides = [1, 1]} : vector<32x256xbf16> to vector<1x128xbf16>
    %124 = vector.extract_strided_slice %77 {offsets = [11, 128], sizes = [1, 128], strides = [1, 1]} : vector<32x256xbf16> to vector<1x128xbf16>
    %125 = vector.extract_strided_slice %77 {offsets = [12, 128], sizes = [1, 128], strides = [1, 1]} : vector<32x256xbf16> to vector<1x128xbf16>
    %126 = vector.extract_strided_slice %77 {offsets = [13, 128], sizes = [1, 128], strides = [1, 1]} : vector<32x256xbf16> to vector<1x128xbf16>
    %127 = vector.extract_strided_slice %77 {offsets = [14, 128], sizes = [1, 128], strides = [1, 1]} : vector<32x256xbf16> to vector<1x128xbf16>
    %128 = vector.extract_strided_slice %77 {offsets = [15, 128], sizes = [1, 128], strides = [1, 1]} : vector<32x256xbf16> to vector<1x128xbf16>
    %129 = vector.extract_strided_slice %77 {offsets = [16, 128], sizes = [1, 128], strides = [1, 1]} : vector<32x256xbf16> to vector<1x128xbf16>
    %130 = vector.extract_strided_slice %77 {offsets = [17, 128], sizes = [1, 128], strides = [1, 1]} : vector<32x256xbf16> to vector<1x128xbf16>
    %131 = vector.extract_strided_slice %77 {offsets = [18, 128], sizes = [1, 128], strides = [1, 1]} : vector<32x256xbf16> to vector<1x128xbf16>
    %132 = vector.extract_strided_slice %77 {offsets = [19, 128], sizes = [1, 128], strides = [1, 1]} : vector<32x256xbf16> to vector<1x128xbf16>
    %133 = vector.extract_strided_slice %77 {offsets = [20, 128], sizes = [1, 128], strides = [1, 1]} : vector<32x256xbf16> to vector<1x128xbf16>
    %134 = vector.extract_strided_slice %77 {offsets = [21, 128], sizes = [1, 128], strides = [1, 1]} : vector<32x256xbf16> to vector<1x128xbf16>
    %135 = vector.extract_strided_slice %77 {offsets = [22, 128], sizes = [1, 128], strides = [1, 1]} : vector<32x256xbf16> to vector<1x128xbf16>
    %136 = vector.extract_strided_slice %77 {offsets = [23, 128], sizes = [1, 128], strides = [1, 1]} : vector<32x256xbf16> to vector<1x128xbf16>
    %137 = vector.extract_strided_slice %77 {offsets = [24, 128], sizes = [1, 128], strides = [1, 1]} : vector<32x256xbf16> to vector<1x128xbf16>
    %138 = vector.extract_strided_slice %77 {offsets = [25, 128], sizes = [1, 128], strides = [1, 1]} : vector<32x256xbf16> to vector<1x128xbf16>
    %139 = vector.extract_strided_slice %77 {offsets = [26, 128], sizes = [1, 128], strides = [1, 1]} : vector<32x256xbf16> to vector<1x128xbf16>
    %140 = vector.extract_strided_slice %77 {offsets = [27, 128], sizes = [1, 128], strides = [1, 1]} : vector<32x256xbf16> to vector<1x128xbf16>
    %141 = vector.extract_strided_slice %77 {offsets = [28, 128], sizes = [1, 128], strides = [1, 1]} : vector<32x256xbf16> to vector<1x128xbf16>
    %142 = vector.extract_strided_slice %77 {offsets = [29, 128], sizes = [1, 128], strides = [1, 1]} : vector<32x256xbf16> to vector<1x128xbf16>
    %143 = vector.extract_strided_slice %77 {offsets = [30, 128], sizes = [1, 128], strides = [1, 1]} : vector<32x256xbf16> to vector<1x128xbf16>
    %144 = vector.extract_strided_slice %77 {offsets = [31, 128], sizes = [1, 128], strides = [1, 1]} : vector<32x256xbf16> to vector<1x128xbf16>
    %145 = tpu.concatenate %113, %114, %115, %116, %117, %118, %119, %120, %121, %122, %123, %124, %125, %126, %127, %128 in 1 : vector<1x128xbf16>, vector<1x128xbf16>, vector<1x128xbf16>, vector<1x128xbf16>, vector<1x128xbf16>, vector<1x128xbf16>, vector<1x128xbf16>, vector<1x128xbf16>, vector<1x128xbf16>, vector<1x128xbf16>, vector<1x128xbf16>, vector<1x128xbf16>, vector<1x128xbf16>, vector<1x128xbf16>, vector<1x128xbf16>, vector<1x128xbf16> -> vector<1x2048xbf16>
    %146 = tpu.concatenate %129, %130, %131, %132, %133, %134, %135, %136, %137, %138, %139, %140, %141, %142, %143, %144 in 1 : vector<1x128xbf16>, vector<1x128xbf16>, vector<1x128xbf16>, vector<1x128xbf16>, vector<1x128xbf16>, vector<1x128xbf16>, vector<1x128xbf16>, vector<1x128xbf16>, vector<1x128xbf16>, vector<1x128xbf16>, vector<1x128xbf16>, vector<1x128xbf16>, vector<1x128xbf16>, vector<1x128xbf16>, vector<1x128xbf16>, vector<1x128xbf16> -> vector<1x2048xbf16>
    %147 = tpu.concatenate %145, %146 in 1 : vector<1x2048xbf16>, vector<1x2048xbf16> -> vector<1x4096xbf16>
    %148 = tpu.concatenate %112, %147 in 0 : vector<1x4096xbf16>, vector<1x4096xbf16> -> vector<2x4096xbf16>
    %c0_22 = arith.constant 0 : index
    %c0_23 = arith.constant 0 : index
    %149 = vector.load %arg6[%c0_22, %c0_23] : memref<4096x128xbf16, #tpu.memory_space<vmem>>, vector<4096x128xbf16>
    %cst_24 = arith.constant dense<0.000000e+00> : vector<2x128xf32>
    %150 = tpu.matmul %148, %149, %cst_24 {dimension_numbers = #tpu.dot_dimension_numbers<[1], [0], [0], [1], [0, 0, 1, 1], [], []>} : vector<2x4096xbf16>, vector<4096x128xbf16>, vector<2x128xf32> -> vector<2x128xf32>
    %c0_25 = arith.constant 0 : index
    %c0_26 = arith.constant 0 : index
    %151 = vector.load %arg7[%c0_25, %c0_26] : memref<1x128xf32, #tpu.memory_space<vmem>>, vector<1x128xf32>
    %152 = vector.broadcast %151 : vector<1x128xf32> to vector<2x128xf32>
    %153 = arith.addf %150, %152 : vector<2x128xf32>
    %cst_27 = arith.constant 0.000000e+00 : f32
    %154 = vector.broadcast %cst_27 : f32 to vector<2x128xf32>
    %155 = arith.maximumf %153, %154 : vector<2x128xf32>
    %156 = arith.truncf %155 : vector<2x128xf32> to vector<2x128xbf16>
    %c0_28 = arith.constant 0 : index
    %c0_29 = arith.constant 0 : index
    %157 = vector.load %arg8[%c0_28, %c0_29] : memref<128x128xbf16, #tpu.memory_space<vmem>>, vector<128x128xbf16>
    %cst_30 = arith.constant dense<0.000000e+00> : vector<2x128xf32>
    %158 = tpu.matmul %156, %157, %cst_30 {dimension_numbers = #tpu.dot_dimension_numbers<[1], [0], [0], [1], [0, 0, 1, 1], [], []>} : vector<2x128xbf16>, vector<128x128xbf16>, vector<2x128xf32> -> vector<2x128xf32>
    %c0_31 = arith.constant 0 : index
    %c0_32 = arith.constant 0 : index
    %159 = vector.load %arg9[%c0_31, %c0_32] : memref<1x128xf32, #tpu.memory_space<vmem>>, vector<1x128xf32>
    %160 = vector.broadcast %159 : vector<1x128xf32> to vector<2x128xf32>
    %161 = arith.addf %158, %160 : vector<2x128xf32>
    %c0_33 = arith.constant 0 : index
    %c0_34 = arith.constant 0 : index
    %c0_35 = arith.constant 0 : index
    %162 = vector.load %arg10[%c0_33, %c0_34, %c0_35] : memref<1x2x128xf32, #tpu.memory_space<vmem>>, vector<1x2x128xf32>
    %163 = vector.shape_cast %162 : vector<1x2x128xf32> to vector<2x128xf32>
    %164 = vector.shape_cast %161 : vector<2x128xf32> to vector<1x2x128xf32>
    tpu.vector_store %arg10[%c0_33, %c0_34, %c0_35], %164 {strides = array<i32>} : memref<1x2x128xf32, #tpu.memory_space<vmem>>, vector<1x2x128xf32>,
    return
  }
  func.func @transform_0(%arg0: i32) -> (i32, i32) {
    %c0_i32 = arith.constant 0 : i32
    %c0_i32_0 = arith.constant 0 : i32
    return %c0_i32, %arg0 : i32, i32
  }
  func.func @transform_1(%arg0: i32) -> (i32, i32) {
    %c0_i32 = arith.constant 0 : i32
    %c0_i32_0 = arith.constant 0 : i32
    %c0_i32_1 = arith.constant 0 : i32
    return %c0_i32, %c0_i32_0 : i32, i32
  }
  func.func @transform_2(%arg0: i32) -> (i32, i32) {
    %c0_i32 = arith.constant 0 : i32
    %c0_i32_0 = arith.constant 0 : i32
    %c0_i32_1 = arith.constant 0 : i32
    return %c0_i32, %c0_i32_0 : i32, i32
  }
  func.func @transform_3(%arg0: i32) -> (i32, i32) {
    %c0_i32 = arith.constant 0 : i32
    %c0_i32_0 = arith.constant 0 : i32
    %c0_i32_1 = arith.constant 0 : i32
    return %c0_i32, %c0_i32_0 : i32, i32
  }
  func.func @transform_4(%arg0: i32) -> (i32, i32) {
    %c0_i32 = arith.constant 0 : i32
    %c0_i32_0 = arith.constant 0 : i32
    %c0_i32_1 = arith.constant 0 : i32
    return %c0_i32, %c0_i32_0 : i32, i32
  }
  func.func @transform_5(%arg0: i32) -> (i32, i32) {
    %c0_i32 = arith.constant 0 : i32
    %c0_i32_0 = arith.constant 0 : i32
    %c0_i32_1 = arith.constant 0 : i32
    return %c0_i32, %c0_i32_0 : i32, i32
  }
  func.func @transform_6(%arg0: i32) -> (i32, i32) {
    %c0_i32 = arith.constant 0 : i32
    %c0_i32_0 = arith.constant 0 : i32
    %c0_i32_1 = arith.constant 0 : i32
    return %c0_i32, %c0_i32_0 : i32, i32
  }
  func.func @transform_7(%arg0: i32) -> (i32, i32) {
    %c0_i32 = arith.constant 0 : i32
    %c0_i32_0 = arith.constant 0 : i32
    %c0_i32_1 = arith.constant 0 : i32
    return %c0_i32, %c0_i32_0 : i32, i32
  }
  func.func @transform_8(%arg0: i32) -> (i32, i32) {
    %c0_i32 = arith.constant 0 : i32
    %c0_i32_0 = arith.constant 0 : i32
    %c0_i32_1 = arith.constant 0 : i32
    return %c0_i32, %c0_i32_0 : i32, i32
  }
  func.func @transform_9(%arg0: i32) -> (i32, i32, i32) {
    %c0_i32 = arith.constant 0 : i32
    %c0_i32_0 = arith.constant 0 : i32
    %c0_i32_1 = arith.constant 0 : i32
    return %arg0, %c0_i32, %c0_i32_0 : i32, i32, i32
  }
}

</mosaic_0001>

<llo_original>
// kernel: simple_cnn_forward.1
$region0: #{simple_cnn_forward.1}
  #allocation0 [shape = 'u32[]', space=smem, size = 0x4, offset = 0x4, fixed_abs, tag = 'smem constant byte address 0x4 - core index']
  #allocation1 [shape = 'u32[144,128]{1,0:T(1,128)}', space=vmem, size = 0x12000, scoped, tag = 'internal scratch']
  %s0 = inlined_call_operand.vmem [shape: f32[2,512], index: 0, kind: input, shape index: {}]
  %s1 = inlined_call_operand.vmem [shape: bf16[16,8], index: 1, kind: input, shape index: {}]
  %s2 = inlined_call_operand.vmem [shape: f32[16,1], index: 2, kind: input, shape index: {}]
  %s3 = inlined_call_operand.vmem [shape: bf16[32,48], index: 3, kind: input, shape index: {}]
  %s4 = inlined_call_operand.vmem [shape: f32[32,1], index: 4, kind: input, shape index: {}]
  %s5 = inlined_call_operand.hbm [shape: bf16[4096,128], index: 5, kind: input, shape index: {}]
  %s6 = inlined_call_operand.vmem [shape: f32[1,128], index: 6, kind: input, shape index: {}]
  %s7 = inlined_call_operand.vmem [shape: bf16[128,128], index: 7, kind: input, shape index: {}]
  %s8 = inlined_call_operand.vmem [shape: f32[1,128], index: 8, kind: input, shape index: {}]
  %s9 = inlined_call_operand.hbm [shape: f32[1,2,128], index: 9, kind: output, shape index: {}]
  %s10 = sld [smem:[#allocation0]]
  $region50: #{simple_cnn_forward.1} parent=0
    _
  %s12 = ssub.s32 1, %s10
  %s13 = scalar_select 0, %s12, %s10
  $region1: #{simple_cnn_forward.1} parent=0
    #allocation2 [shape = 'u8[1048576]{0}', space=vmem, size = 0x100000, scoped, tag = 'input window, operand 5, single buffered']
    #allocation3 [shape = 's32[1]{0}', space=sflag, size = 0x4, scoped, tag = 'scoped memory for simple_cnn_forward.1']
    #allocation4 [shape = 's32[1]{0}', space=sflag, size = 0x4, scoped, tag = 'scoped memory for simple_cnn_forward.1']
    #allocation5 [shape = 'u8[1024]{0}', space=vmem, size = 0x400, scoped, tag = 'output window, operand 0, single buffered']
    %14 = vsyncpa [#allocation3], 0
    %15 = vsyncpa [#allocation4], 0
    // Predicated region
    $region2: #{simple_cnn_forward.1} parent=1 // pred_check
      _
    $region3: #{simple_cnn_forward.1} parent=1 // pred_check_branch
      %17 = sbr.rel (0) target = $region5
    $region4: #{simple_cnn_forward.1} parent=1 // pred_region
      _
    $region5: #{simple_cnn_forward.1} parent=1 // pred_fallthru
      _
    // Predicated region
    $region6: #{simple_cnn_forward.1} parent=1 // pred_check
      _
    $region7: #{simple_cnn_forward.1} parent=1 // pred_check_branch
      %19 = sbr.rel (0) target = $region9
    $region8: #{simple_cnn_forward.1} parent=1 // pred_region
      _
    $region9: #{simple_cnn_forward.1} parent=1 // pred_fallthru
      _
    // Predicated region
    $region10: #{simple_cnn_forward.1} parent=1 // pred_check
      _
    $region11: #{simple_cnn_forward.1} parent=1 // pred_check_branch
      %21 = sbr.rel (0) target = $region13
    $region12: #{simple_cnn_forward.1} parent=1 // pred_region
      _
    $region13: #{simple_cnn_forward.1} parent=1 // pred_fallthru
      _
    // Predicated region
    $region14: #{simple_cnn_forward.1} parent=1 // pred_check
      _
    $region15: #{simple_cnn_forward.1} parent=1 // pred_check_branch
      %23 = sbr.rel (0) target = $region17
    $region16: #{simple_cnn_forward.1} parent=1 // pred_region
      _
    $region17: #{simple_cnn_forward.1} parent=1 // pred_fallthru
      _
    // Predicated region
    $region18: #{simple_cnn_forward.1} parent=1 // pred_check
      _
    $region19: #{simple_cnn_forward.1} parent=1 // pred_check_branch
      %25 = sbr.rel (0) target = $region21
    $region20: #{simple_cnn_forward.1} parent=1 // pred_region
      _
    $region21: #{simple_cnn_forward.1} parent=1 // pred_fallthru
      _
    // Predicated region
    $region22: #{simple_cnn_forward.1} parent=1 // pred_check
      _
    $region23: #{simple_cnn_forward.1} parent=1 // pred_check_branch
      %27 = sbr.rel (0) target = $region25
    $region24: #{simple_cnn_forward.1} parent=1 // pred_region
      %s29 = ssub.s32 32768, 32768
      %30 = vsyncadd [#allocation3], %s29
      %s31 = sshll.u32 [#allocation2], 4
      %s32 = int_to_ptr.vmem [resolvable:$true] %s31
      %37 = dma.hbm_to_vmem [thread:$0]  %s5, 32768, %s32, [#allocation3], 64, 64, 4
    $region25: #{simple_cnn_forward.1} parent=1 // pred_fallthru
      _
    // Predicated region
    $region26: #{simple_cnn_forward.1} parent=1 // pred_check
      _
    $region27: #{simple_cnn_forward.1} parent=1 // pred_check_branch
      %39 = sbr.rel (0) target = $region29
    $region28: #{simple_cnn_forward.1} parent=1 // pred_region
      _
    $region29: #{simple_cnn_forward.1} parent=1 // pred_fallthru
      _
    // Predicated region
    $region30: #{simple_cnn_forward.1} parent=1 // pred_check
      _
    $region31: #{simple_cnn_forward.1} parent=1 // pred_check_branch
      %41 = sbr.rel (0) target = $region33
    $region32: #{simple_cnn_forward.1} parent=1 // pred_region
      _
    $region33: #{simple_cnn_forward.1} parent=1 // pred_fallthru
      _
    // Predicated region
    $region34: #{simple_cnn_forward.1} parent=1 // pred_check
      _
    $region35: #{simple_cnn_forward.1} parent=1 // pred_check_branch
      %43 = sbr.rel (0) target = $region37
    $region36: #{simple_cnn_forward.1} parent=1 // pred_region
      _
    $region37: #{simple_cnn_forward.1} parent=1 // pred_fallthru
      _
    // Predicated region
    $region38: #{simple_cnn_forward.1} parent=1 // pred_check
      _
    $region39: #{simple_cnn_forward.1} parent=1 // pred_check_branch
      %45 = sbr.rel (0) target = $region41
    $region40: #{simple_cnn_forward.1} parent=1 // pred_region
      %46 = dma.done [#allocation3], 32768
    $region41: #{simple_cnn_forward.1} parent=1 // pred_fallthru
      _
    %v48 = vld [vmem:[%s0] sm:$0xff]
    %v49 = vlaneseq
    %v50 = vand.u32 %v49, 127
    %v51 = vadd.s32 %v50, 128
    %v52 = vadd.s32 %v50, 256
    %v53 = vadd.s32 %v50, 384
    %v54 = vand.u32 %v50, 255
    %v55 = vand.u32 %v51, 255
    %v56 = vand.u32 %v52, 255
    %v57 = vand.u32 %v53, 255
    %vm58 = vcmp.eq.s32.totalorder %v54, 0
    %vm59 = vcmp.eq.s32.totalorder %v55, 0
    %vm60 = vcmp.eq.s32.totalorder %v56, 0
    %vm61 = vcmp.eq.s32.totalorder %v57, 0
    %v63 = vcombine.high %v48, %v48
    %v65 = vunpack.c.l.s4 1983009808
    %v66 = vunpack.c.0.s8 %v65
    %v67 = vlaneseq
    %v68 = vshrl.u32 %v67, 7
    %v69 = vsub.s32 %v66, %v68
    %v70 = vrot.slane %v48, %v69
    %v72 = vunpack.c.l.s4 1983009808
    %v73 = vunpack.c.0.s8 %v72
    %v74 = vlaneseq
    %v75 = vshrl.u32 %v74, 7
    %v76 = vsub.s32 %v73, %v75
    %v77 = vrot.slane %v63, %v76
    %v78 = vcombine.high %v77, %v77
    %79 = vrot.lane.b32.xlu0 %v78, 1
    %v80 = vpop.permute.xlu0 %79
    %v82 = vcombine.high %v70, %v70
    %83 = vrot.lane.b32.xlu0 %v70, 1
    %v84 = vpop.permute.xlu0 %83
    %85 = vrot.lane.b32.xlu0 %v82, 1
    %v86 = vpop.permute.xlu0 %85
    %87 = vrot.lane.b32.xlu0 %v77, 1
    %v88 = vpop.permute.xlu0 %87
    %vm89 = vcmask 7168
    %v90 = vsel %vm89, %v84, %v86
    %v91 = vsel %vm89, %v86, %v88
    %v92 = vsel %vm89, %v88, %v80
    %v97 = vsel %vm89, %v80, %v84
    %v98 = vsel %vm58, 0.0, %v97
    %v99 = vsel %vm59, 0.0, %v90
    %v100 = vsel %vm60, 0.0, %v91
    %v101 = vsel %vm61, 0.0, %v92
    %vm102 = vcmp.eq.s32.totalorder %v54, 255
    %vm103 = vcmp.eq.s32.totalorder %v55, 255
    %vm104 = vcmp.eq.s32.totalorder %v56, 255
    %vm105 = vcmp.eq.s32.totalorder %v57, 255
    %106 = vrot.lane.b32.xlu0 %v70, 127
    %v107 = vpop.permute.xlu0 %106
    %108 = vrot.lane.b32.xlu0 %v82, 127
    %v109 = vpop.permute.xlu0 %108
    %110 = vrot.lane.b32.xlu0 %v77, 127
    %v111 = vpop.permute.xlu0 %110
    %112 = vrot.lane.b32.xlu0 %v78, 127
    %v113 = vpop.permute.xlu0 %112
    %vm114 = vcmask 1039360
    %v115 = vsel %vm114, %v107, %v109
    %v116 = vsel %vm114, %v109, %v111
    %v117 = vsel %vm114, %v111, %v113
    %v123 = vsel %vm114, %v113, %v107
    %v124 = vsel %vm102, 0.0, %v115
    %v125 = vsel %vm103, 0.0, %v116
    %v126 = vsel %vm104, 0.0, %v117
    %v127 = vsel %vm105, 0.0, %v123
    %v128 = vcombine.low %v48, %v48
    %v130 = vunpack.c.l.s4 1983009808
    %v131 = vunpack.c.0.s8 %v130
    %v132 = vlaneseq
    %v133 = vshrl.u32 %v132, 7
    %v134 = vsub.s32 %v131, %v133
    %v135 = vrot.slane %v128, %v134
    %v136 = vcombine.high %v135, %v135
    %v145 = vrot.slane %v124, 4
    %v146 = vrot.slane %v125, 4
    %v147 = vrot.slane %v126, 4
    %v148 = vrot.slane %v127, 4
    %vm153 = vcmask 1041408
    %v154 = vsel %vm153, %v98, %v135
    %v155 = vsel %vm153, %v99, %v136
    %v156 = vsel %vm153, %v100, %v70
    %v157 = vsel %vm153, %v101, %v82
    %vm158 = vcmask 1043456
    %v159 = vsel %vm158, %v154, %v145
    %v160 = vsel %vm158, %v155, %v146
    %v161 = vsel %vm158, %v156, %v147
    %v162 = vsel %vm158, %v157, %v148
    %vm163 = vcmask 1045504
    %v164 = vsel %vm163, %v159, 0.0
    %v165 = vsel %vm163, %v160, 0.0
    %v166 = vsel %vm163, %v161, 0.0
    %v167 = vsel %vm163, %v162, 0.0
    %v168 = vpack.c.bf16 %v164, %v164
    %v169 = vpack.c.bf16 %v165, %v165
    %v170 = vpack.c.bf16 %v166, %v166
    %v171 = vpack.c.bf16 %v167, %v167
    %v172 = vld [vmem:[%s1] sm:$0xf]
    %v173 = vld [vmem:[%s1 + $0x4] sm:$0xf]
    %v174 = vld [vmem:[%s2] sm:$0xff]
    %v175 = vld [vmem:[%s2 + $0x8] sm:$0xff]
    %177 = vset.pattern.permute.xlu0 0
    %178 = vperm.xlu0 %177, %v174
    %v179 = vpop.permute.xlu0 %178
    %182 = vset.pattern.permute.xlu0 0
    %183 = vperm.xlu0 %182, %v175
    %v184 = vpop.permute.xlu0 %183
    %v188 = vunpack.c.l.b16 %v172
    %v189 = vunpack.c.l.b16 %v173
    %v190 = vpack.c.b16 %v189, %v188
    %vm191 = vcmask 64512
    %v193 = vsel %vm191, %v190, 0
    %v196 = vsel %vm158, %v168, 0
    %v199 = vsel %vm158, %v169, 0
    %v202 = vsel %vm158, %v170, 0
    %v205 = vsel %vm158, %v171, 0
    %207 = vmatprep.subr.bf16.mxu0 %v199
    %208 = vmatpush1.bf16.msra.mxu0 %v196
    %209 = vmatprep.subr.bf16.mxu0 0
    %210 = vmatpush1.bf16.msra.mxu0 0
    %211 = vmatprep.subr.bf16.mxu0 0
    %212 = vmatpush1.bf16.msra.mxu0 0
    %213 = vmatprep.subr.bf16.mxu0 0
    %214 = vmatpush1.bf16.msra.mxu0 0
    %215 = vmatprep.subr.bf16.mxu0 0
    %216 = vmatpush1.bf16.msra.mxu0 0
    %217 = vmatprep.subr.bf16.mxu0 0
    %218 = vmatpush1.bf16.msra.mxu0 0
    %219 = vmatprep.subr.bf16.mxu0 0
    %220 = vmatpush1.bf16.msra.mxu0 0
    %221 = vmatprep.subr.bf16.mxu0 0
    %222 = vmatpush1.bf16.msra.mxu0 0
    %223 = vmatprep.subr.bf16.mxu0 0
    %224 = vmatpush1.bf16.msra.mxu0 0
    %225 = vmatprep.subr.bf16.mxu0 0
    %226 = vmatpush1.bf16.msra.mxu0 0
    %227 = vmatprep.subr.bf16.mxu0 0
    %228 = vmatpush1.bf16.msra.mxu0 0
    %229 = vmatprep.subr.bf16.mxu0 0
    %230 = vmatpush1.bf16.msra.mxu0 0
    %231 = vmatprep.subr.bf16.mxu0 0
    %232 = vmatpush1.bf16.msra.mxu0 0
    %233 = vmatprep.subr.bf16.mxu0 0
    %234 = vmatpush1.bf16.msra.mxu0 0
    %235 = vmatprep.subr.bf16.mxu0 0
    %236 = vmatpush1.bf16.msra.mxu0 0
    %237 = vmatprep.subr.bf16.mxu0 0
    %238 = vmatpush1.bf16.msra.mxu0 0
    %239 = vmatprep.mubr.bf16.mxu0 0
    %240 = vmatmul.mubr.bf16.gmra.mrb[0].mxu0 %v193
    %v241 = vpop.f32.mrb[0].mxu0
    %v242 = vadd.f32 %v179, %v241
    %v243 = vpop.f32.mrb[0].mxu0
    %v244 = vadd.f32 %v179, %v243
    %v245 = vpop.f32.mrb[0].mxu0
    %v246 = vadd.f32 %v184, %v245
    %v247 = vpop.f32.mrb[0].mxu0
    %v248 = vadd.f32 %v184, %v247
    %249 = vdwg.mxu0
    %250 = vmatprep.subr.bf16.mxu0 %v205
    %251 = vmatpush1.bf16.msra.mxu0 %v202
    %252 = vmatprep.subr.bf16.mxu0 0
    %253 = vmatpush1.bf16.msra.mxu0 0
    %254 = vmatprep.subr.bf16.mxu0 0
    %255 = vmatpush1.bf16.msra.mxu0 0
    %256 = vmatprep.subr.bf16.mxu0 0
    %257 = vmatpush1.bf16.msra.mxu0 0
    %258 = vmatprep.subr.bf16.mxu0 0
    %259 = vmatpush1.bf16.msra.mxu0 0
    %260 = vmatprep.subr.bf16.mxu0 0
    %261 = vmatpush1.bf16.msra.mxu0 0
    %262 = vmatprep.subr.bf16.mxu0 0
    %263 = vmatpush1.bf16.msra.mxu0 0
    %264 = vmatprep.subr.bf16.mxu0 0
    %265 = vmatpush1.bf16.msra.mxu0 0
    %266 = vmatprep.subr.bf16.mxu0 0
    %267 = vmatpush1.bf16.msra.mxu0 0
    %268 = vmatprep.subr.bf16.mxu0 0
    %269 = vmatpush1.bf16.msra.mxu0 0
    %270 = vmatprep.subr.bf16.mxu0 0
    %271 = vmatpush1.bf16.msra.mxu0 0
    %272 = vmatprep.subr.bf16.mxu0 0
    %273 = vmatpush1.bf16.msra.mxu0 0
    %274 = vmatprep.subr.bf16.mxu0 0
    %275 = vmatpush1.bf16.msra.mxu0 0
    %276 = vmatprep.subr.bf16.mxu0 0
    %277 = vmatpush1.bf16.msra.mxu0 0
    %278 = vmatprep.subr.bf16.mxu0 0
    %279 = vmatpush1.bf16.msra.mxu0 0
    %280 = vmatprep.subr.bf16.mxu0 0
    %281 = vmatpush1.bf16.msra.mxu0 0
    %282 = vmatprep.mubr.bf16.mxu0 0
    %283 = vmatmul.mubr.bf16.gmra.mrb[0].mxu0 %v193
    %v284 = vpop.f32.mrb[0].mxu0
    %v285 = vadd.f32 %v179, %v284
    %v286 = vpop.f32.mrb[0].mxu0
    %v287 = vadd.f32 %v179, %v286
    %v288 = vpop.f32.mrb[0].mxu0
    %v289 = vadd.f32 %v184, %v288
    %v290 = vpop.f32.mrb[0].mxu0
    %v291 = vadd.f32 %v184, %v290
    %292 = vdwg.mxu0
    %v293 = vmax.f32 %v242, 0.0
    %v294 = vmax.f32 %v244, 0.0
    %v295 = vmax.f32 %v285, 0.0
    %v296 = vmax.f32 %v287, 0.0
    %v297 = vmax.f32 %v246, 0.0
    %v298 = vmax.f32 %v248, 0.0
    %v299 = vmax.f32 %v289, 0.0
    %v300 = vmax.f32 %v291, 0.0
    %v301 = vlaneseq
    %v302 = vshrl.u32 %v301, 7
    %v303 = vadd.s32 %v302, 8
    %v304 = vadd.s32 %v302, 16
    %v305 = vadd.s32 %v302, 24
    %v306 = vadd.s32 %v302, 32
    %v307 = vadd.s32 %v302, 40
    %v308 = vadd.s32 %v302, 48
    %v309 = vadd.s32 %v302, 56
    %v310 = vadd.s32 %v302, 64
    %v311 = vadd.s32 %v302, 72
    %v312 = vadd.s32 %v302, 80
    %v313 = vadd.s32 %v302, 88
    %v314 = vadd.s32 %v302, 96
    %v315 = vadd.s32 %v302, 104
    %v316 = vadd.s32 %v302, 112
    %v317 = vadd.s32 %v302, 120
    %v318 = vadd.s32 %v302, 128
    %v319 = vadd.s32 %v302, 136
    %v320 = vadd.s32 %v302, 144
    %v321 = vadd.s32 %v302, 152
    %v322 = vadd.s32 %v302, 160
    %v323 = vadd.s32 %v302, 168
    %v324 = vadd.s32 %v302, 176
    %v325 = vadd.s32 %v302, 184
    %v326 = vadd.s32 %v302, 192
    %v327 = vadd.s32 %v302, 200
    %v328 = vadd.s32 %v302, 208
    %v329 = vadd.s32 %v302, 216
    %v330 = vadd.s32 %v302, 224
    %v331 = vadd.s32 %v302, 232
    %v332 = vadd.s32 %v302, 240
    %v333 = vadd.s32 %v302, 248
    %v334 = vmul.u32 %v50, 2
    %vm335 = vcmp.eq.s32.totalorder %v302, %v334
    %vm336 = vcmp.eq.s32.totalorder %v303, %v334
    %vm337 = vcmp.eq.s32.totalorder %v304, %v334
    %vm338 = vcmp.eq.s32.totalorder %v305, %v334
    %vm339 = vcmp.eq.s32.totalorder %v306, %v334
    %vm340 = vcmp.eq.s32.totalorder %v307, %v334
    %vm341 = vcmp.eq.s32.totalorder %v308, %v334
    %vm342 = vcmp.eq.s32.totalorder %v309, %v334
    %vm343 = vcmp.eq.s32.totalorder %v310, %v334
    %vm344 = vcmp.eq.s32.totalorder %v311, %v334
    %vm345 = vcmp.eq.s32.totalorder %v312, %v334
    %vm346 = vcmp.eq.s32.totalorder %v313, %v334
    %vm347 = vcmp.eq.s32.totalorder %v314, %v334
    %vm348 = vcmp.eq.s32.totalorder %v315, %v334
    %vm349 = vcmp.eq.s32.totalorder %v316, %v334
    %vm350 = vcmp.eq.s32.totalorder %v317, %v334
    %vm351 = vcmp.eq.s32.totalorder %v318, %v334
    %vm352 = vcmp.eq.s32.totalorder %v319, %v334
    %vm353 = vcmp.eq.s32.totalorder %v320, %v334
    %vm354 = vcmp.eq.s32.totalorder %v321, %v334
    %vm355 = vcmp.eq.s32.totalorder %v322, %v334
    %vm356 = vcmp.eq.s32.totalorder %v323, %v334
    %vm357 = vcmp.eq.s32.totalorder %v324, %v334
    %vm358 = vcmp.eq.s32.totalorder %v325, %v334
    %vm359 = vcmp.eq.s32.totalorder %v326, %v334
    %vm360 = vcmp.eq.s32.totalorder %v327, %v334
    %vm361 = vcmp.eq.s32.totalorder %v328, %v334
    %vm362 = vcmp.eq.s32.totalorder %v329, %v334
    %vm363 = vcmp.eq.s32.totalorder %v330, %v334
    %vm364 = vcmp.eq.s32.totalorder %v331, %v334
    %vm365 = vcmp.eq.s32.totalorder %v332, %v334
    %vm366 = vcmp.eq.s32.totalorder %v333, %v334
    %v367 = vsel %vm335, 1, 0
    %v368 = vsel %vm336, 1, 0
    %v369 = vsel %vm337, 1, 0
    %v370 = vsel %vm338, 1, 0
    %v371 = vsel %vm339, 1, 0
    %v372 = vsel %vm340, 1, 0
    %v373 = vsel %vm341, 1, 0
    %v374 = vsel %vm342, 1, 0
    %v375 = vsel %vm343, 1, 0
    %v376 = vsel %vm344, 1, 0
    %v377 = vsel %vm345, 1, 0
    %v378 = vsel %vm346, 1, 0
    %v379 = vsel %vm347, 1, 0
    %v380 = vsel %vm348, 1, 0
    %v381 = vsel %vm349, 1, 0
    %v382 = vsel %vm350, 1, 0
    %v383 = vsel %vm351, 1, 0
    %v384 = vsel %vm352, 1, 0
    %v385 = vsel %vm353, 1, 0
    %v386 = vsel %vm354, 1, 0
    %v387 = vsel %vm355, 1, 0
    %v388 = vsel %vm356, 1, 0
    %v389 = vsel %vm357, 1, 0
    %v390 = vsel %vm358, 1, 0
    %v391 = vsel %vm359, 1, 0
    %v392 = vsel %vm360, 1, 0
    %v393 = vsel %vm361, 1, 0
    %v394 = vsel %vm362, 1, 0
    %v395 = vsel %vm363, 1, 0
    %v396 = vsel %vm364, 1, 0
    %v397 = vsel %vm365, 1, 0
    %v398 = vsel %vm366, 1, 0
    %v399 = vcvt.s32.f32 %v367
    %v400 = vcvt.s32.f32 %v368
    %v401 = vcvt.s32.f32 %v369
    %v402 = vcvt.s32.f32 %v370
    %v403 = vcvt.s32.f32 %v371
    %v404 = vcvt.s32.f32 %v372
    %v405 = vcvt.s32.f32 %v373
    %v406 = vcvt.s32.f32 %v374
    %v407 = vcvt.s32.f32 %v375
    %v408 = vcvt.s32.f32 %v376
    %v409 = vcvt.s32.f32 %v377
    %v410 = vcvt.s32.f32 %v378
    %v411 = vcvt.s32.f32 %v379
    %v412 = vcvt.s32.f32 %v380
    %v413 = vcvt.s32.f32 %v381
    %v414 = vcvt.s32.f32 %v382
    %v415 = vcvt.s32.f32 %v383
    %v416 = vcvt.s32.f32 %v384
    %v417 = vcvt.s32.f32 %v385
    %v418 = vcvt.s32.f32 %v386
    %v419 = vcvt.s32.f32 %v387
    %v420 = vcvt.s32.f32 %v388
    %v421 = vcvt.s32.f32 %v389
    %v422 = vcvt.s32.f32 %v390
    %v423 = vcvt.s32.f32 %v391
    %v424 = vcvt.s32.f32 %v392
    %v425 = vcvt.s32.f32 %v393
    %v426 = vcvt.s32.f32 %v394
    %v427 = vcvt.s32.f32 %v395
    %v428 = vcvt.s32.f32 %v396
    %v429 = vcvt.s32.f32 %v397
    %v430 = vcvt.s32.f32 %v398
    %v431 = vpack.c.bf16 %v400, %v399
    %v432 = vpack.c.bf16 %v402, %v401
    %v433 = vpack.c.bf16 %v404, %v403
    %v434 = vpack.c.bf16 %v406, %v405
    %v435 = vpack.c.bf16 %v408, %v407
    %v436 = vpack.c.bf16 %v410, %v409
    %v437 = vpack.c.bf16 %v412, %v411
    %v438 = vpack.c.bf16 %v414, %v413
    %v439 = vpack.c.bf16 %v416, %v415
    %v440 = vpack.c.bf16 %v418, %v417
    %v441 = vpack.c.bf16 %v420, %v419
    %v442 = vpack.c.bf16 %v422, %v421
    %v443 = vpack.c.bf16 %v424, %v423
    %v444 = vpack.c.bf16 %v426, %v425
    %v445 = vpack.c.bf16 %v428, %v427
    %v446 = vpack.c.bf16 %v430, %v429
    %455 = vrot.lane.b32.xlu0 %v293, 127
    %v456 = vpop.permute.xlu0 %455
    %457 = vrot.lane.b32.xlu0 %v294, 127
    %v458 = vpop.permute.xlu0 %457
    %459 = vrot.lane.b32.xlu0 %v295, 127
    %v460 = vpop.permute.xlu0 %459
    %461 = vrot.lane.b32.xlu0 %v296, 127
    %v462 = vpop.permute.xlu0 %461
    %463 = vrot.lane.b32.xlu0 %v297, 127
    %v464 = vpop.permute.xlu0 %463
    %465 = vrot.lane.b32.xlu0 %v298, 127
    %v466 = vpop.permute.xlu0 %465
    %467 = vrot.lane.b32.xlu0 %v299, 127
    %v468 = vpop.permute.xlu0 %467
    %469 = vrot.lane.b32.xlu0 %v300, 127
    %v470 = vpop.permute.xlu0 %469
    %v471 = vsel %vm114, %v456, %v458
    %v472 = vsel %vm114, %v458, %v460
    %v473 = vsel %vm114, %v460, %v462
    %v474 = vsel %vm114, %v464, %v466
    %v475 = vsel %vm114, %v466, %v468
    %v476 = vsel %vm114, %v468, %v470
    %v487 = vsel %vm114, %v462, %v456
    %v488 = vsel %vm114, %v470, %v464
    %v489 = vmax.f32 %v293, %v471
    %v490 = vmax.f32 %v294, %v472
    %v491 = vmax.f32 %v295, %v473
    %v492 = vmax.f32 %v296, %v487
    %v493 = vmax.f32 %v297, %v474
    %v494 = vmax.f32 %v298, %v475
    %v495 = vmax.f32 %v299, %v476
    %v496 = vmax.f32 %v300, %v488
    %v497 = vpack.c.bf16 %v493, %v489
    %v498 = vpack.c.bf16 %v494, %v490
    %499 = vmatprep.subr.bf16.mxu0 0
    %500 = vmatpush1.bf16.msra.mxu0 %v431
    %501 = vmatprep.subr.bf16.mxu0 0
    %502 = vmatpush1.bf16.msra.mxu0 %v432
    %503 = vmatprep.subr.bf16.mxu0 0
    %504 = vmatpush1.bf16.msra.mxu0 %v433
    %505 = vmatprep.subr.bf16.mxu0 0
    %506 = vmatpush1.bf16.msra.mxu0 %v434
    %507 = vmatprep.subr.bf16.mxu0 0
    %508 = vmatpush1.bf16.msra.mxu0 %v435
    %509 = vmatprep.subr.bf16.mxu0 0
    %510 = vmatpush1.bf16.msra.mxu0 %v436
    %511 = vmatprep.subr.bf16.mxu0 0
    %512 = vmatpush1.bf16.msra.mxu0 %v437
    %513 = vmatprep.subr.bf16.mxu0 0
    %514 = vmatpush1.bf16.msra.mxu0 %v438
    %515 = vmatprep.subr.bf16.mxu0 0
    %516 = vmatpush1.bf16.msra.mxu0 %v439
    %517 = vmatprep.subr.bf16.mxu0 0
    %518 = vmatpush1.bf16.msra.mxu0 %v440
    %519 = vmatprep.subr.bf16.mxu0 0
    %520 = vmatpush1.bf16.msra.mxu0 %v441
    %521 = vmatprep.subr.bf16.mxu0 0
    %522 = vmatpush1.bf16.msra.mxu0 %v442
    %523 = vmatprep.subr.bf16.mxu0 0
    %524 = vmatpush1.bf16.msra.mxu0 %v443
    %525 = vmatprep.subr.bf16.mxu0 0
    %526 = vmatpush1.bf16.msra.mxu0 %v444
    %527 = vmatprep.subr.bf16.mxu0 0
    %528 = vmatpush1.bf16.msra.mxu0 %v445
    %529 = vmatprep.subr.bf16.mxu0 0
    %530 = vmatpush1.bf16.msra.mxu0 %v446
    %531 = vmatprep.mubr.bf16.mxu0 %v498
    %532 = vmatmul.mubr.bf16.gmra.mrb[0].mxu0 %v497
    %v533 = vpop.f32.mrb[0].mxu0
    %v534 = vadd.f32 0.0, %v533
    %v535 = vpop.f32.mrb[0].mxu0
    %v536 = vpop.f32.mrb[0].mxu0
    %v537 = vadd.f32 0.0, %v536
    %v538 = vpop.f32.mrb[0].mxu0
    %539 = vdwg.mxu0
    %v540 = vpack.c.bf16 %v495, %v491
    %v541 = vpack.c.bf16 %v496, %v492
    %542 = vmatprep.subr.bf16.mxu0 0
    %543 = vmatpush1.bf16.msra.mxu0 %v431
    %544 = vmatprep.subr.bf16.mxu0 0
    %545 = vmatpush1.bf16.msra.mxu0 %v432
    %546 = vmatprep.subr.bf16.mxu0 0
    %547 = vmatpush1.bf16.msra.mxu0 %v433
    %548 = vmatprep.subr.bf16.mxu0 0
    %549 = vmatpush1.bf16.msra.mxu0 %v434
    %550 = vmatprep.subr.bf16.mxu0 0
    %551 = vmatpush1.bf16.msra.mxu0 %v435
    %552 = vmatprep.subr.bf16.mxu0 0
    %553 = vmatpush1.bf16.msra.mxu0 %v436
    %554 = vmatprep.subr.bf16.mxu0 0
    %555 = vmatpush1.bf16.msra.mxu0 %v437
    %556 = vmatprep.subr.bf16.mxu0 0
    %557 = vmatpush1.bf16.msra.mxu0 %v438
    %558 = vmatprep.subr.bf16.mxu0 0
    %559 = vmatpush1.bf16.msra.mxu0 %v439
    %560 = vmatprep.subr.bf16.mxu0 0
    %561 = vmatpush1.bf16.msra.mxu0 %v440
    %562 = vmatprep.subr.bf16.mxu0 0
    %563 = vmatpush1.bf16.msra.mxu0 %v441
    %564 = vmatprep.subr.bf16.mxu0 0
    %565 = vmatpush1.bf16.msra.mxu0 %v442
    %566 = vmatprep.subr.bf16.mxu0 0
    %567 = vmatpush1.bf16.msra.mxu0 %v443
    %568 = vmatprep.subr.bf16.mxu0 0
    %569 = vmatpush1.bf16.msra.mxu0 %v444
    %570 = vmatprep.subr.bf16.mxu0 0
    %571 = vmatpush1.bf16.msra.mxu0 %v445
    %572 = vmatprep.subr.bf16.mxu0 0
    %573 = vmatpush1.bf16.msra.mxu0 %v446
    %574 = vmatprep.mubr.bf16.mxu0 %v541
    %575 = vmatmul.mubr.bf16.gmra.mrb[0].mxu0 %v540
    %v576 = vpop.f32.mrb[0].mxu0
    %v577 = vadd.f32 0.0, %v576
    %v578 = vpop.f32.mrb[0].mxu0
    %v579 = vpop.f32.mrb[0].mxu0
    %v580 = vadd.f32 0.0, %v579
    %v581 = vpop.f32.mrb[0].mxu0
    %582 = vdwg.mxu0
    %v583 = vand.u32 %v50, 127
    %v584 = vand.u32 %v51, 127
    %vm585 = vcmp.eq.s32.totalorder %v583, 0
    %vm586 = vcmp.eq.s32.totalorder %v584, 0
    %589 = vrot.lane.b32.xlu0 %v577, 1
    %v590 = vpop.permute.xlu0 %589
    %591 = vrot.lane.b32.xlu0 %v580, 1
    %v592 = vpop.permute.xlu0 %591
    %597 = vrot.lane.b32.xlu0 %v534, 1
    %v598 = vpop.permute.xlu0 %597
    %599 = vrot.lane.b32.xlu0 %v537, 1
    %v600 = vpop.permute.xlu0 %599
    %v601 = vsel %vm89, %v598, %v590
    %v602 = vsel %vm89, %v600, %v592
    %v607 = vsel %vm89, %v590, %v598
    %v608 = vsel %vm89, %v592, %v600
    %v609 = vsel %vm585, 0.0, %v607
    %v610 = vsel %vm586, 0.0, %v601
    %v611 = vsel %vm585, 0.0, %v608
    %v612 = vsel %vm586, 0.0, %v602
    %vm613 = vcmp.eq.s32.totalorder %v583, 127
    %vm614 = vcmp.eq.s32.totalorder %v584, 127
    %615 = vrot.lane.b32.xlu0 %v534, 127
    %v616 = vpop.permute.xlu0 %615
    %617 = vrot.lane.b32.xlu0 %v577, 127
    %v618 = vpop.permute.xlu0 %617
    %619 = vrot.lane.b32.xlu0 %v537, 127
    %v620 = vpop.permute.xlu0 %619
    %621 = vrot.lane.b32.xlu0 %v580, 127
    %v622 = vpop.permute.xlu0 %621
    %v623 = vsel %vm114, %v616, %v618
    %v624 = vsel %vm114, %v620, %v622
    %v631 = vsel %vm114, %v618, %v616
    %v632 = vsel %vm114, %v622, %v620
    %v633 = vsel %vm613, 0.0, %v623
    %v634 = vsel %vm614, 0.0, %v631
    %v635 = vsel %vm613, 0.0, %v624
    %v636 = vsel %vm614, 0.0, %v632
    %v637 = vpack.c.bf16 %v611, %v609
    %v638 = vpack.c.bf16 %v612, %v610
    %v639 = vpack.c.bf16 %v537, %v534
    %v640 = vpack.c.bf16 %v580, %v577
    %v641 = vpack.c.bf16 %v635, %v633
    %v642 = vpack.c.bf16 %v636, %v634
    %v643 = vld [vmem:[%s3] sm:$0xf]
    %v644 = vld [vmem:[%s3 + $0x4] sm:$0xf]
    %v645 = vld [vmem:[%s3 + $0x8] sm:$0xf]
    %v646 = vld [vmem:[%s3 + $0xc] sm:$0xf]
    %v647 = vld [vmem:[%s4] sm:$0xff]
    %v648 = vld [vmem:[%s4 + $0x8] sm:$0xff]
    %v649 = vld [vmem:[%s4 + $0x10] sm:$0xff]
    %v650 = vld [vmem:[%s4 + $0x18] sm:$0xff]
    %652 = vset.pattern.permute.xlu0 0
    %653 = vperm.xlu0 %652, %v647
    %v654 = vpop.permute.xlu0 %653
    %657 = vset.pattern.permute.xlu0 0
    %658 = vperm.xlu0 %657, %v648
    %v659 = vpop.permute.xlu0 %658
    %662 = vset.pattern.permute.xlu0 0
    %663 = vperm.xlu0 %662, %v649
    %v664 = vpop.permute.xlu0 %663
    %667 = vset.pattern.permute.xlu0 0
    %668 = vperm.xlu0 %667, %v650
    %v669 = vpop.permute.xlu0 %668
    %v675 = vunpack.c.l.b16 %v643
    %v676 = vunpack.c.l.b16 %v644
    %v677 = vunpack.c.l.b16 %v645
    %v678 = vunpack.c.l.b16 %v646
    %v679 = vpack.c.b16 %v676, %v675
    %v680 = vpack.c.b16 %v678, %v677
    %vm681 = vcmask 392192
    %v683 = vsel %vm681, %v679, 0
    %v686 = vsel %vm681, %v680, 0
    %688 = vmatprep.subr.bf16.mxu0 %v638
    %689 = vmatpush1.bf16.msra.mxu0 %v637
    %690 = vmatprep.subr.bf16.mxu0 %v640
    %691 = vmatpush1.bf16.msra.mxu0 %v639
    %692 = vmatprep.subr.bf16.mxu0 %v642
    %693 = vmatpush1.bf16.msra.mxu0 %v641
    %694 = vmatprep.subr.bf16.mxu0 0
    %695 = vmatpush1.bf16.msra.mxu0 0
    %696 = vmatprep.subr.bf16.mxu0 0
    %697 = vmatpush1.bf16.msra.mxu0 0
    %698 = vmatprep.subr.bf16.mxu0 0
    %699 = vmatpush1.bf16.msra.mxu0 0
    %700 = vmatprep.subr.bf16.mxu0 0
    %701 = vmatpush1.bf16.msra.mxu0 0
    %702 = vmatprep.subr.bf16.mxu0 0
    %703 = vmatpush1.bf16.msra.mxu0 0
    %704 = vmatprep.subr.bf16.mxu0 0
    %705 = vmatpush1.bf16.msra.mxu0 0
    %706 = vmatprep.subr.bf16.mxu0 0
    %707 = vmatpush1.bf16.msra.mxu0 0
    %708 = vmatprep.subr.bf16.mxu0 0
    %709 = vmatpush1.bf16.msra.mxu0 0
    %710 = vmatprep.subr.bf16.mxu0 0
    %711 = vmatpush1.bf16.msra.mxu0 0
    %712 = vmatprep.subr.bf16.mxu0 0
    %713 = vmatpush1.bf16.msra.mxu0 0
    %714 = vmatprep.subr.bf16.mxu0 0
    %715 = vmatpush1.bf16.msra.mxu0 0
    %716 = vmatprep.subr.bf16.mxu0 0
    %717 = vmatpush1.bf16.msra.mxu0 0
    %718 = vmatprep.subr.bf16.mxu0 0
    %719 = vmatpush1.bf16.msra.mxu0 0
    %720 = vmatprep.mubr.bf16.mxu0 0
    %721 = vmatmul.mubr.bf16.gmra.mrb[0].mxu0 %v683
    %v722 = vpop.f32.mrb[0].mxu0
    %v723 = vadd.f32 %v654, %v722
    %v724 = vpop.f32.mrb[0].mxu0
    %v725 = vadd.f32 %v654, %v724
    %v726 = vpop.f32.mrb[0].mxu0
    %v727 = vadd.f32 %v659, %v726
    %v728 = vpop.f32.mrb[0].mxu0
    %v729 = vadd.f32 %v659, %v728
    %730 = vmatprep.mubr.bf16.mxu0 0
    %731 = vmatmul.mubr.bf16.gmra.mrb[0].mxu0 %v686
    %v732 = vpop.f32.mrb[0].mxu0
    %v733 = vadd.f32 %v664, %v732
    %v734 = vpop.f32.mrb[0].mxu0
    %v735 = vadd.f32 %v664, %v734
    %v736 = vpop.f32.mrb[0].mxu0
    %v737 = vadd.f32 %v669, %v736
    %v738 = vpop.f32.mrb[0].mxu0
    %v739 = vadd.f32 %v669, %v738
    %740 = vdwg.mxu0
    %v741 = vmax.f32 %v723, 0.0
    %v742 = vmax.f32 %v725, 0.0
    %v743 = vmax.f32 %v727, 0.0
    %v744 = vmax.f32 %v729, 0.0
    %v745 = vmax.f32 %v733, 0.0
    %v746 = vmax.f32 %v735, 0.0
    %v747 = vmax.f32 %v737, 0.0
    %v748 = vmax.f32 %v739, 0.0
    %757 = vrot.lane.b32.xlu0 %v741, 127
    %v758 = vpop.permute.xlu0 %757
    %759 = vrot.lane.b32.xlu0 %v742, 127
    %v760 = vpop.permute.xlu0 %759
    %761 = vrot.lane.b32.xlu0 %v743, 127
    %v762 = vpop.permute.xlu0 %761
    %763 = vrot.lane.b32.xlu0 %v744, 127
    %v764 = vpop.permute.xlu0 %763
    %765 = vrot.lane.b32.xlu0 %v745, 127
    %v766 = vpop.permute.xlu0 %765
    %767 = vrot.lane.b32.xlu0 %v746, 127
    %v768 = vpop.permute.xlu0 %767
    %769 = vrot.lane.b32.xlu0 %v747, 127
    %v770 = vpop.permute.xlu0 %769
    %771 = vrot.lane.b32.xlu0 %v748, 127
    %v772 = vpop.permute.xlu0 %771
    %v773 = vsel %vm114, %v758, %v760
    %v774 = vsel %vm114, %v762, %v764
    %v775 = vsel %vm114, %v766, %v768
    %v776 = vsel %vm114, %v770, %v772
    %v789 = vsel %vm114, %v760, %v758
    %v790 = vsel %vm114, %v764, %v762
    %v791 = vsel %vm114, %v768, %v766
    %v792 = vsel %vm114, %v772, %v770
    %v793 = vmax.f32 %v741, %v773
    %v794 = vmax.f32 %v742, %v789
    %v795 = vmax.f32 %v743, %v774
    %v796 = vmax.f32 %v744, %v790
    %v797 = vmax.f32 %v745, %v775
    %v798 = vmax.f32 %v746, %v791
    %v799 = vmax.f32 %v747, %v776
    %v800 = vmax.f32 %v748, %v792
    %v801 = vpack.c.bf16 %v795, %v793
    %v802 = vpack.c.bf16 %v796, %v794
    %v803 = vpack.c.bf16 %v799, %v797
    %v804 = vpack.c.bf16 %v800, %v798
    %v806 = vshrl.u32 %v801, 16
    %v810 = vrot.slane %v801, 1
    %v812 = vrot.slane %v806, 1
    %v814 = vrot.slane %v801, 2
    %v816 = vrot.slane %v806, 2
    %v818 = vrot.slane %v801, 3
    %v820 = vrot.slane %v806, 3
    %v822 = vrot.slane %v801, 4
    %v824 = vrot.slane %v806, 4
    %v826 = vrot.slane %v801, 5
    %v828 = vrot.slane %v806, 5
    %v830 = vrot.slane %v801, 6
    %v832 = vrot.slane %v806, 6
    %v834 = vrot.slane %v801, 7
    %v836 = vrot.slane %v806, 7
    %v839 = vshrl.u32 %v803, 16
    %v843 = vrot.slane %v803, 1
    %v845 = vrot.slane %v839, 1
    %v847 = vrot.slane %v803, 2
    %v849 = vrot.slane %v839, 2
    %v851 = vrot.slane %v803, 3
    %v853 = vrot.slane %v839, 3
    %v855 = vrot.slane %v803, 4
    %v857 = vrot.slane %v839, 4
    %v859 = vrot.slane %v803, 5
    %v861 = vrot.slane %v839, 5
    %v863 = vrot.slane %v803, 6
    %v865 = vrot.slane %v839, 6
    %v867 = vrot.slane %v803, 7
    %v869 = vrot.slane %v839, 7
    %v872 = vshrl.u32 %v802, 16
    %v875 = vrot.slane %v802, 1
    %v876 = vrot.slane %v872, 1
    %v877 = vrot.slane %v802, 2
    %v878 = vrot.slane %v872, 2
    %v879 = vrot.slane %v802, 3
    %v880 = vrot.slane %v872, 3
    %v881 = vrot.slane %v802, 4
    %v882 = vrot.slane %v872, 4
    %v883 = vrot.slane %v802, 5
    %v884 = vrot.slane %v872, 5
    %v885 = vrot.slane %v802, 6
    %v886 = vrot.slane %v872, 6
    %v887 = vrot.slane %v802, 7
    %v888 = vrot.slane %v872, 7
    %v890 = vshrl.u32 %v804, 16
    %v893 = vrot.slane %v804, 1
    %v894 = vrot.slane %v890, 1
    %v895 = vrot.slane %v804, 2
    %v896 = vrot.slane %v890, 2
    %v897 = vrot.slane %v804, 3
    %v898 = vrot.slane %v890, 3
    %v899 = vrot.slane %v804, 4
    %v900 = vrot.slane %v890, 4
    %v901 = vrot.slane %v804, 5
    %v902 = vrot.slane %v890, 5
    %v903 = vrot.slane %v804, 6
    %v904 = vrot.slane %v890, 6
    %v905 = vrot.slane %v804, 7
    %v906 = vrot.slane %v890, 7
    %v907 = vshll.u32 %v802, 16
    %v910 = vshll.u32 %v872, 16
    %v913 = vshll.u32 %v875, 16
    %v916 = vshll.u32 %v876, 16
    %v919 = vshll.u32 %v877, 16
    %v922 = vshll.u32 %v878, 16
    %v925 = vshll.u32 %v879, 16
    %v928 = vshll.u32 %v880, 16
    %v931 = vshll.u32 %v881, 16
    %v934 = vshll.u32 %v882, 16
    %v937 = vshll.u32 %v883, 16
    %v940 = vshll.u32 %v884, 16
    %v943 = vshll.u32 %v885, 16
    %v946 = vshll.u32 %v886, 16
    %v949 = vshll.u32 %v887, 16
    %v952 = vshll.u32 %v888, 16
    %v954 = vshll.u32 %v804, 16
    %v957 = vshll.u32 %v890, 16
    %v960 = vshll.u32 %v893, 16
    %v963 = vshll.u32 %v894, 16
    %v966 = vshll.u32 %v895, 16
    %v969 = vshll.u32 %v896, 16
    %v972 = vshll.u32 %v897, 16
    %v975 = vshll.u32 %v898, 16
    %v978 = vshll.u32 %v899, 16
    %v981 = vshll.u32 %v900, 16
    %v984 = vshll.u32 %v901, 16
    %v987 = vshll.u32 %v902, 16
    %v990 = vshll.u32 %v903, 16
    %v993 = vshll.u32 %v904, 16
    %v996 = vshll.u32 %v905, 16
    %v999 = vshll.u32 %v906, 16
    %vm1033 = vcmask 1040384
    %vm1034 = vsmask.f32 256
    %vm1035 = vmand %vm1033, %vm1034
    %v1036 = vsel %vm1035, %v801, %v907
    %v1037 = vsel %vm1035, %v806, %v910
    %v1038 = vsel %vm1035, %v810, %v913
    %v1039 = vsel %vm1035, %v812, %v916
    %v1040 = vsel %vm1035, %v814, %v919
    %v1041 = vsel %vm1035, %v816, %v922
    %v1042 = vsel %vm1035, %v818, %v925
    %v1043 = vsel %vm1035, %v820, %v928
    %v1044 = vsel %vm1035, %v822, %v931
    %v1045 = vsel %vm1035, %v824, %v934
    %v1046 = vsel %vm1035, %v826, %v937
    %v1047 = vsel %vm1035, %v828, %v940
    %v1048 = vsel %vm1035, %v830, %v943
    %v1049 = vsel %vm1035, %v832, %v946
    %v1050 = vsel %vm1035, %v834, %v949
    %v1051 = vsel %vm1035, %v836, %v952
    %v1052 = vsel %vm1035, %v803, %v954
    %v1053 = vsel %vm1035, %v839, %v957
    %v1054 = vsel %vm1035, %v843, %v960
    %v1055 = vsel %vm1035, %v845, %v963
    %v1056 = vsel %vm1035, %v847, %v966
    %v1057 = vsel %vm1035, %v849, %v969
    %v1058 = vsel %vm1035, %v851, %v972
    %v1059 = vsel %vm1035, %v853, %v975
    %v1060 = vsel %vm1035, %v855, %v978
    %v1061 = vsel %vm1035, %v857, %v981
    %v1062 = vsel %vm1035, %v859, %v984
    %v1063 = vsel %vm1035, %v861, %v987
    %v1064 = vsel %vm1035, %v863, %v990
    %v1065 = vsel %vm1035, %v865, %v993
    %v1066 = vsel %vm1035, %v867, %v996
    %v1067 = vsel %vm1035, %v869, %v999
    %v1068 = vld [vmem:[#allocation2] sm:$0xf]
    %v1069 = vld [vmem:[#allocation2 + $0x4] sm:$0xf]
    %v1070 = vld [vmem:[#allocation2 + $0x8] sm:$0xf]
    %v1071 = vld [vmem:[#allocation2 + $0xc] sm:$0xf]
    %v1072 = vld [vmem:[#allocation2 + $0x10] sm:$0xf]
    %v1073 = vld [vmem:[#allocation2 + $0x14] sm:$0xf]
    %v1074 = vld [vmem:[#allocation2 + $0x18] sm:$0xf]
    %v1075 = vld [vmem:[#allocation2 + $0x1c] sm:$0xf]
    %v1076 = vld [vmem:[#allocation2 + $0x20] sm:$0xf]
    %v1077 = vld [vmem:[#allocation2 + $0x24] sm:$0xf]
    %v1078 = vld [vmem:[#allocation2 + $0x28] sm:$0xf]
    %v1079 = vld [vmem:[#allocation2 + $0x2c] sm:$0xf]
    %v1080 = vld [vmem:[#allocation2 + $0x30] sm:$0xf]
    %v1081 = vld [vmem:[#allocation2 + $0x34] sm:$0xf]
    %v1082 = vld [vmem:[#allocation2 + $0x38] sm:$0xf]
    %v1083 = vld [vmem:[#allocation2 + $0x3c] sm:$0xf]
    %v1084 = vld [vmem:[#allocation2 + $0x40] sm:$0xf]
    %v1085 = vld [vmem:[#allocation2 + $0x44] sm:$0xf]
    %v1086 = vld [vmem:[#allocation2 + $0x48] sm:$0xf]
    %v1087 = vld [vmem:[#allocation2 + $0x4c] sm:$0xf]
    %v1088 = vld [vmem:[#allocation2 + $0x50] sm:$0xf]
    %v1089 = vld [vmem:[#allocation2 + $0x54] sm:$0xf]
    %v1090 = vld [vmem:[#allocation2 + $0x58] sm:$0xf]
    %v1091 = vld [vmem:[#allocation2 + $0x5c] sm:$0xf]
    %v1092 = vld [vmem:[#allocation2 + $0x60] sm:$0xf]
    %v1093 = vld [vmem:[#allocation2 + $0x64] sm:$0xf]
    %v1094 = vld [vmem:[#allocation2 + $0x68] sm:$0xf]
    %v1095 = vld [vmem:[#allocation2 + $0x6c] sm:$0xf]
    %v1096 = vld [vmem:[#allocation2 + $0x70] sm:$0xf]
    %v1097 = vld [vmem:[#allocation2 + $0x74] sm:$0xf]
    %v1098 = vld [vmem:[#allocation2 + $0x78] sm:$0xf]
    %v1099 = vld [vmem:[#allocation2 + $0x7c] sm:$0xf]
    %v1100 = vld [vmem:[#allocation2 + $0x80] sm:$0xf]
    %v1101 = vld [vmem:[#allocation2 + $0x84] sm:$0xf]
    %v1102 = vld [vmem:[#allocation2 + $0x88] sm:$0xf]
    %v1103 = vld [vmem:[#allocation2 + $0x8c] sm:$0xf]
    %v1104 = vld [vmem:[#allocation2 + $0x90] sm:$0xf]
    %v1105 = vld [vmem:[#allocation2 + $0x94] sm:$0xf]
    %v1106 = vld [vmem:[#allocation2 + $0x98] sm:$0xf]
    %v1107 = vld [vmem:[#allocation2 + $0x9c] sm:$0xf]
    %v1108 = vld [vmem:[#allocation2 + $0xa0] sm:$0xf]
    %v1109 = vld [vmem:[#allocation2 + $0xa4] sm:$0xf]
    %v1110 = vld [vmem:[#allocation2 + $0xa8] sm:$0xf]
    %v1111 = vld [vmem:[#allocation2 + $0xac] sm:$0xf]
    %v1112 = vld [vmem:[#allocation2 + $0xb0] sm:$0xf]
    %v1113 = vld [vmem:[#allocation2 + $0xb4] sm:$0xf]
    %v1114 = vld [vmem:[#allocation2 + $0xb8] sm:$0xf]
    %v1115 = vld [vmem:[#allocation2 + $0xbc] sm:$0xf]
    %v1116 = vld [vmem:[#allocation2 + $0xc0] sm:$0xf]
    %v1117 = vld [vmem:[#allocation2 + $0xc4] sm:$0xf]
    %v1118 = vld [vmem:[#allocation2 + $0xc8] sm:$0xf]
    %v1119 = vld [vmem:[#allocation2 + $0xcc] sm:$0xf]
    %v1120 = vld [vmem:[#allocation2 + $0xd0] sm:$0xf]
    %v1121 = vld [vmem:[#allocation2 + $0xd4] sm:$0xf]
    %v1122 = vld [vmem:[#allocation2 + $0xd8] sm:$0xf]
    %v1123 = vld [vmem:[#allocation2 + $0xdc] sm:$0xf]
    %v1124 = vld [vmem:[#allocation2 + $0xe0] sm:$0xf]
    %v1125 = vld [vmem:[#allocation2 + $0xe4] sm:$0xf]
    %v1126 = vld [vmem:[#allocation2 + $0xe8] sm:$0xf]
    %v1127 = vld [vmem:[#allocation2 + $0xec] sm:$0xf]
    %v1128 = vld [vmem:[#allocation2 + $0xf0] sm:$0xf]
    %v1129 = vld [vmem:[#allocation2 + $0xf4] sm:$0xf]
    %v1130 = vld [vmem:[#allocation2 + $0xf8] sm:$0xf]
    %v1131 = vld [vmem:[#allocation2 + $0xfc] sm:$0xf]
    %v1132 = vld [vmem:[#allocation2 + $0x100] sm:$0xf]
    %v1133 = vld [vmem:[#allocation2 + $0x104] sm:$0xf]
    %v1134 = vld [vmem:[#allocation2 + $0x108] sm:$0xf]
    %v1135 = vld [vmem:[#allocation2 + $0x10c] sm:$0xf]
    %v1136 = vld [vmem:[#allocation2 + $0x110] sm:$0xf]
    %v1137 = vld [vmem:[#allocation2 + $0x114] sm:$0xf]
    %v1138 = vld [vmem:[#allocation2 + $0x118] sm:$0xf]
    %v1139 = vld [vmem:[#allocation2 + $0x11c] sm:$0xf]
    %v1140 = vld [vmem:[#allocation2 + $0x120] sm:$0xf]
    %v1141 = vld [vmem:[#allocation2 + $0x124] sm:$0xf]
    %v1142 = vld [vmem:[#allocation2 + $0x128] sm:$0xf]
    %v1143 = vld [vmem:[#allocation2 + $0x12c] sm:$0xf]
    %v1144 = vld [vmem:[#allocation2 + $0x130] sm:$0xf]
    %v1145 = vld [vmem:[#allocation2 + $0x134] sm:$0xf]
    %v1146 = vld [vmem:[#allocation2 + $0x138] sm:$0xf]
    %v1147 = vld [vmem:[#allocation2 + $0x13c] sm:$0xf]
    %v1148 = vld [vmem:[#allocation2 + $0x140] sm:$0xf]
    %v1149 = vld [vmem:[#allocation2 + $0x144] sm:$0xf]
    %v1150 = vld [vmem:[#allocation2 + $0x148] sm:$0xf]
    %v1151 = vld [vmem:[#allocation2 + $0x14c] sm:$0xf]
    %v1152 = vld [vmem:[#allocation2 + $0x150] sm:$0xf]
    %v1153 = vld [vmem:[#allocation2 + $0x154] sm:$0xf]
    %v1154 = vld [vmem:[#allocation2 + $0x158] sm:$0xf]
    %v1155 = vld [vmem:[#allocation2 + $0x15c] sm:$0xf]
    %v1156 = vld [vmem:[#allocation2 + $0x160] sm:$0xf]
    %v1157 = vld [vmem:[#allocation2 + $0x164] sm:$0xf]
    %v1158 = vld [vmem:[#allocation2 + $0x168] sm:$0xf]
    %v1159 = vld [vmem:[#allocation2 + $0x16c] sm:$0xf]
    %v1160 = vld [vmem:[#allocation2 + $0x170] sm:$0xf]
    %v1161 = vld [vmem:[#allocation2 + $0x174] sm:$0xf]
    %v1162 = vld [vmem:[#allocation2 + $0x178] sm:$0xf]
    %v1163 = vld [vmem:[#allocation2 + $0x17c] sm:$0xf]
    %v1164 = vld [vmem:[#allocation2 + $0x180] sm:$0xf]
    %v1165 = vld [vmem:[#allocation2 + $0x184] sm:$0xf]
    %v1166 = vld [vmem:[#allocation2 + $0x188] sm:$0xf]
    %v1167 = vld [vmem:[#allocation2 + $0x18c] sm:$0xf]
    %v1168 = vld [vmem:[#allocation2 + $0x190] sm:$0xf]
    %v1169 = vld [vmem:[#allocation2 + $0x194] sm:$0xf]
    %v1170 = vld [vmem:[#allocation2 + $0x198] sm:$0xf]
    %v1171 = vld [vmem:[#allocation2 + $0x19c] sm:$0xf]
    %v1172 = vld [vmem:[#allocation2 + $0x1a0] sm:$0xf]
    %v1173 = vld [vmem:[#allocation2 + $0x1a4] sm:$0xf]
    %v1174 = vld [vmem:[#allocation2 + $0x1a8] sm:$0xf]
    %v1175 = vld [vmem:[#allocation2 + $0x1ac] sm:$0xf]
    %v1176 = vld [vmem:[#allocation2 + $0x1b0] sm:$0xf]
    %v1177 = vld [vmem:[#allocation2 + $0x1b4] sm:$0xf]
    %v1178 = vld [vmem:[#allocation2 + $0x1b8] sm:$0xf]
    %v1179 = vld [vmem:[#allocation2 + $0x1bc] sm:$0xf]
    %v1180 = vld [vmem:[#allocation2 + $0x1c0] sm:$0xf]
    %v1181 = vld [vmem:[#allocation2 + $0x1c4] sm:$0xf]
    %v1182 = vld [vmem:[#allocation2 + $0x1c8] sm:$0xf]
    %v1183 = vld [vmem:[#allocation2 + $0x1cc] sm:$0xf]
    %v1184 = vld [vmem:[#allocation2 + $0x1d0] sm:$0xf]
    %v1185 = vld [vmem:[#allocation2 + $0x1d4] sm:$0xf]
    %v1186 = vld [vmem:[#allocation2 + $0x1d8] sm:$0xf]
    %v1187 = vld [vmem:[#allocation2 + $0x1dc] sm:$0xf]
    %v1188 = vld [vmem:[#allocation2 + $0x1e0] sm:$0xf]
    %v1189 = vld [vmem:[#allocation2 + $0x1e4] sm:$0xf]
    %v1190 = vld [vmem:[#allocation2 + $0x1e8] sm:$0xf]
    %v1191 = vld [vmem:[#allocation2 + $0x1ec] sm:$0xf]
    %v1192 = vld [vmem:[#allocation2 + $0x1f0] sm:$0xf]
    %v1193 = vld [vmem:[#allocation2 + $0x1f4] sm:$0xf]
    %v1194 = vld [vmem:[#allocation2 + $0x1f8] sm:$0xf]
    %v1195 = vld [vmem:[#allocation2 + $0x1fc] sm:$0xf]
    %v1196 = vld [vmem:[#allocation2 + $0x200] sm:$0xf]
    %v1197 = vld [vmem:[#allocation2 + $0x204] sm:$0xf]
    %v1198 = vld [vmem:[#allocation2 + $0x208] sm:$0xf]
    %v1199 = vld [vmem:[#allocation2 + $0x20c] sm:$0xf]
    %v1200 = vld [vmem:[#allocation2 + $0x210] sm:$0xf]
    %v1201 = vld [vmem:[#allocation2 + $0x214] sm:$0xf]
    %v1202 = vld [vmem:[#allocation2 + $0x218] sm:$0xf]
    %v1203 = vld [vmem:[#allocation2 + $0x21c] sm:$0xf]
    %v1204 = vld [vmem:[#allocation2 + $0x220] sm:$0xf]
    %v1205 = vld [vmem:[#allocation2 + $0x224] sm:$0xf]
    %v1206 = vld [vmem:[#allocation2 + $0x228] sm:$0xf]
    %v1207 = vld [vmem:[#allocation2 + $0x22c] sm:$0xf]
    %v1208 = vld [vmem:[#allocation2 + $0x230] sm:$0xf]
    %v1209 = vld [vmem:[#allocation2 + $0x234] sm:$0xf]
    %v1210 = vld [vmem:[#allocation2 + $0x238] sm:$0xf]
    %v1211 = vld [vmem:[#allocation2 + $0x23c] sm:$0xf]
    %v1212 = vld [vmem:[#allocation2 + $0x240] sm:$0xf]
    %v1213 = vld [vmem:[#allocation2 + $0x244] sm:$0xf]
    %v1214 = vld [vmem:[#allocation2 + $0x248] sm:$0xf]
    %v1215 = vld [vmem:[#allocation2 + $0x24c] sm:$0xf]
    %v1216 = vld [vmem:[#allocation2 + $0x250] sm:$0xf]
    %v1217 = vld [vmem:[#allocation2 + $0x254] sm:$0xf]
    %v1218 = vld [vmem:[#allocation2 + $0x258] sm:$0xf]
    %v1219 = vld [vmem:[#allocation2 + $0x25c] sm:$0xf]
    %v1220 = vld [vmem:[#allocation2 + $0x260] sm:$0xf]
    %v1221 = vld [vmem:[#allocation2 + $0x264] sm:$0xf]
    %v1222 = vld [vmem:[#allocation2 + $0x268] sm:$0xf]
    %v1223 = vld [vmem:[#allocation2 + $0x26c] sm:$0xf]
    %v1224 = vld [vmem:[#allocation2 + $0x270] sm:$0xf]
    %v1225 = vld [vmem:[#allocation2 + $0x274] sm:$0xf]
    %v1226 = vld [vmem:[#allocation2 + $0x278] sm:$0xf]
    %v1227 = vld [vmem:[#allocation2 + $0x27c] sm:$0xf]
    %v1228 = vld [vmem:[#allocation2 + $0x280] sm:$0xf]
    %v1229 = vld [vmem:[#allocation2 + $0x284] sm:$0xf]
    %v1230 = vld [vmem:[#allocation2 + $0x288] sm:$0xf]
    %v1231 = vld [vmem:[#allocation2 + $0x28c] sm:$0xf]
    %v1232 = vld [vmem:[#allocation2 + $0x290] sm:$0xf]
    %v1233 = vld [vmem:[#allocation2 + $0x294] sm:$0xf]
    %v1234 = vld [vmem:[#allocation2 + $0x298] sm:$0xf]
    %v1235 = vld [vmem:[#allocation2 + $0x29c] sm:$0xf]
    %v1236 = vld [vmem:[#allocation2 + $0x2a0] sm:$0xf]
    %v1237 = vld [vmem:[#allocation2 + $0x2a4] sm:$0xf]
    %v1238 = vld [vmem:[#allocation2 + $0x2a8] sm:$0xf]
    %v1239 = vld [vmem:[#allocation2 + $0x2ac] sm:$0xf]
    %v1240 = vld [vmem:[#allocation2 + $0x2b0] sm:$0xf]
    %v1241 = vld [vmem:[#allocation2 + $0x2b4] sm:$0xf]
    %v1242 = vld [vmem:[#allocation2 + $0x2b8] sm:$0xf]
    %v1243 = vld [vmem:[#allocation2 + $0x2bc] sm:$0xf]
    %v1244 = vld [vmem:[#allocation2 + $0x2c0] sm:$0xf]
    %v1245 = vld [vmem:[#allocation2 + $0x2c4] sm:$0xf]
    %v1246 = vld [vmem:[#allocation2 + $0x2c8] sm:$0xf]
    %v1247 = vld [vmem:[#allocation2 + $0x2cc] sm:$0xf]
    %v1248 = vld [vmem:[#allocation2 + $0x2d0] sm:$0xf]
    %v1249 = vld [vmem:[#allocation2 + $0x2d4] sm:$0xf]
    %v1250 = vld [vmem:[#allocation2 + $0x2d8] sm:$0xf]
    %v1251 = vld [vmem:[#allocation2 + $0x2dc] sm:$0xf]
    %v1252 = vld [vmem:[#allocation2 + $0x2e0] sm:$0xf]
    %v1253 = vld [vmem:[#allocation2 + $0x2e4] sm:$0xf]
    %v1254 = vld [vmem:[#allocation2 + $0x2e8] sm:$0xf]
    %v1255 = vld [vmem:[#allocation2 + $0x2ec] sm:$0xf]
    %v1256 = vld [vmem:[#allocation2 + $0x2f0] sm:$0xf]
    %v1257 = vld [vmem:[#allocation2 + $0x2f4] sm:$0xf]
    %v1258 = vld [vmem:[#allocation2 + $0x2f8] sm:$0xf]
    %v1259 = vld [vmem:[#allocation2 + $0x2fc] sm:$0xf]
    %v1260 = vld [vmem:[#allocation2 + $0x300] sm:$0xf]
    %v1261 = vld [vmem:[#allocation2 + $0x304] sm:$0xf]
    %v1262 = vld [vmem:[#allocation2 + $0x308] sm:$0xf]
    %v1263 = vld [vmem:[#allocation2 + $0x30c] sm:$0xf]
    %v1264 = vld [vmem:[#allocation2 + $0x310] sm:$0xf]
    %v1265 = vld [vmem:[#allocation2 + $0x314] sm:$0xf]
    %v1266 = vld [vmem:[#allocation2 + $0x318] sm:$0xf]
    %v1267 = vld [vmem:[#allocation2 + $0x31c] sm:$0xf]
    %v1268 = vld [vmem:[#allocation2 + $0x320] sm:$0xf]
    %v1269 = vld [vmem:[#allocation2 + $0x324] sm:$0xf]
    %v1270 = vld [vmem:[#allocation2 + $0x328] sm:$0xf]
    %v1271 = vld [vmem:[#allocation2 + $0x32c] sm:$0xf]
    %v1272 = vld [vmem:[#allocation2 + $0x330] sm:$0xf]
    %v1273 = vld [vmem:[#allocation2 + $0x334] sm:$0xf]
    %v1274 = vld [vmem:[#allocation2 + $0x338] sm:$0xf]
    %v1275 = vld [vmem:[#allocation2 + $0x33c] sm:$0xf]
    %v1276 = vld [vmem:[#allocation2 + $0x340] sm:$0xf]
    %v1277 = vld [vmem:[#allocation2 + $0x344] sm:$0xf]
    %v1278 = vld [vmem:[#allocation2 + $0x348] sm:$0xf]
    %v1279 = vld [vmem:[#allocation2 + $0x34c] sm:$0xf]
    %v1280 = vld [vmem:[#allocation2 + $0x350] sm:$0xf]
    %v1281 = vld [vmem:[#allocation2 + $0x354] sm:$0xf]
    %v1282 = vld [vmem:[#allocation2 + $0x358] sm:$0xf]
    %v1283 = vld [vmem:[#allocation2 + $0x35c] sm:$0xf]
    %v1284 = vld [vmem:[#allocation2 + $0x360] sm:$0xf]
    %v1285 = vld [vmem:[#allocation2 + $0x364] sm:$0xf]
    %v1286 = vld [vmem:[#allocation2 + $0x368] sm:$0xf]
    %v1287 = vld [vmem:[#allocation2 + $0x36c] sm:$0xf]
    %v1288 = vld [vmem:[#allocation2 + $0x370] sm:$0xf]
    %v1289 = vld [vmem:[#allocation2 + $0x374] sm:$0xf]
    %v1290 = vld [vmem:[#allocation2 + $0x378] sm:$0xf]
    %v1291 = vld [vmem:[#allocation2 + $0x37c] sm:$0xf]
    %v1292 = vld [vmem:[#allocation2 + $0x380] sm:$0xf]
    %v1293 = vld [vmem:[#allocation2 + $0x384] sm:$0xf]
    %v1294 = vld [vmem:[#allocation2 + $0x388] sm:$0xf]
    %v1295 = vld [vmem:[#allocation2 + $0x38c] sm:$0xf]
    %v1296 = vld [vmem:[#allocation2 + $0x390] sm:$0xf]
    %v1297 = vld [vmem:[#allocation2 + $0x394] sm:$0xf]
    %v1298 = vld [vmem:[#allocation2 + $0x398] sm:$0xf]
    %v1299 = vld [vmem:[#allocation2 + $0x39c] sm:$0xf]
    %v1300 = vld [vmem:[#allocation2 + $0x3a0] sm:$0xf]
    %v1301 = vld [vmem:[#allocation2 + $0x3a4] sm:$0xf]
    %v1302 = vld [vmem:[#allocation2 + $0x3a8] sm:$0xf]
    %v1303 = vld [vmem:[#allocation2 + $0x3ac] sm:$0xf]
    %v1304 = vld [vmem:[#allocation2 + $0x3b0] sm:$0xf]
    %v1305 = vld [vmem:[#allocation2 + $0x3b4] sm:$0xf]
    %v1306 = vld [vmem:[#allocation2 + $0x3b8] sm:$0xf]
    %v1307 = vld [vmem:[#allocation2 + $0x3bc] sm:$0xf]
    %v1308 = vld [vmem:[#allocation2 + $0x3c0] sm:$0xf]
    %v1309 = vld [vmem:[#allocation2 + $0x3c4] sm:$0xf]
    %v1310 = vld [vmem:[#allocation2 + $0x3c8] sm:$0xf]
    %v1311 = vld [vmem:[#allocation2 + $0x3cc] sm:$0xf]
    %v1312 = vld [vmem:[#allocation2 + $0x3d0] sm:$0xf]
    %v1313 = vld [vmem:[#allocation2 + $0x3d4] sm:$0xf]
    %v1314 = vld [vmem:[#allocation2 + $0x3d8] sm:$0xf]
    %v1315 = vld [vmem:[#allocation2 + $0x3dc] sm:$0xf]
    %v1316 = vld [vmem:[#allocation2 + $0x3e0] sm:$0xf]
    %v1317 = vld [vmem:[#allocation2 + $0x3e4] sm:$0xf]
    %v1318 = vld [vmem:[#allocation2 + $0x3e8] sm:$0xf]
    %v1319 = vld [vmem:[#allocation2 + $0x3ec] sm:$0xf]
    %v1320 = vld [vmem:[#allocation2 + $0x3f0] sm:$0xf]
    %v1321 = vld [vmem:[#allocation2 + $0x3f4] sm:$0xf]
    %v1322 = vld [vmem:[#allocation2 + $0x3f8] sm:$0xf]
    %v1323 = vld [vmem:[#allocation2 + $0x3fc] sm:$0xf]
    %v1324 = vld [vmem:[#allocation2 + $0x400] sm:$0xf]
    %v1325 = vld [vmem:[#allocation2 + $0x404] sm:$0xf]
    %v1326 = vld [vmem:[#allocation2 + $0x408] sm:$0xf]
    %v1327 = vld [vmem:[#allocation2 + $0x40c] sm:$0xf]
    %v1328 = vld [vmem:[#allocation2 + $0x410] sm:$0xf]
    %v1329 = vld [vmem:[#allocation2 + $0x414] sm:$0xf]
    %v1330 = vld [vmem:[#allocation2 + $0x418] sm:$0xf]
    %v1331 = vld [vmem:[#allocation2 + $0x41c] sm:$0xf]
    %v1332 = vld [vmem:[#allocation2 + $0x420] sm:$0xf]
    %v1333 = vld [vmem:[#allocation2 + $0x424] sm:$0xf]
    %v1334 = vld [vmem:[#allocation2 + $0x428] sm:$0xf]
    %v1335 = vld [vmem:[#allocation2 + $0x42c] sm:$0xf]
    %v1336 = vld [vmem:[#allocation2 + $0x430] sm:$0xf]
    %v1337 = vld [vmem:[#allocation2 + $0x434] sm:$0xf]
    %v1338 = vld [vmem:[#allocation2 + $0x438] sm:$0xf]
    %v1339 = vld [vmem:[#allocation2 + $0x43c] sm:$0xf]
    %v1340 = vld [vmem:[#allocation2 + $0x440] sm:$0xf]
    %v1341 = vld [vmem:[#allocation2 + $0x444] sm:$0xf]
    %v1342 = vld [vmem:[#allocation2 + $0x448] sm:$0xf]
    %v1343 = vld [vmem:[#allocation2 + $0x44c] sm:$0xf]
    %v1344 = vld [vmem:[#allocation2 + $0x450] sm:$0xf]
    %v1345 = vld [vmem:[#allocation2 + $0x454] sm:$0xf]
    %v1346 = vld [vmem:[#allocation2 + $0x458] sm:$0xf]
    %v1347 = vld [vmem:[#allocation2 + $0x45c] sm:$0xf]
    %v1348 = vld [vmem:[#allocation2 + $0x460] sm:$0xf]
    %v1349 = vld [vmem:[#allocation2 + $0x464] sm:$0xf]
    %v1350 = vld [vmem:[#allocation2 + $0x468] sm:$0xf]
    %v1351 = vld [vmem:[#allocation2 + $0x46c] sm:$0xf]
    %v1352 = vld [vmem:[#allocation2 + $0x470] sm:$0xf]
    %v1353 = vld [vmem:[#allocation2 + $0x474] sm:$0xf]
    %v1354 = vld [vmem:[#allocation2 + $0x478] sm:$0xf]
    %v1355 = vld [vmem:[#allocation2 + $0x47c] sm:$0xf]
    %v1356 = vld [vmem:[#allocation2 + $0x480] sm:$0xf]
    %v1357 = vld [vmem:[#allocation2 + $0x484] sm:$0xf]
    %v1358 = vld [vmem:[#allocation2 + $0x488] sm:$0xf]
    %v1359 = vld [vmem:[#allocation2 + $0x48c] sm:$0xf]
    %v1360 = vld [vmem:[#allocation2 + $0x490] sm:$0xf]
    %v1361 = vld [vmem:[#allocation2 + $0x494] sm:$0xf]
    %v1362 = vld [vmem:[#allocation2 + $0x498] sm:$0xf]
    %v1363 = vld [vmem:[#allocation2 + $0x49c] sm:$0xf]
    %v1364 = vld [vmem:[#allocation2 + $0x4a0] sm:$0xf]
    %v1365 = vld [vmem:[#allocation2 + $0x4a4] sm:$0xf]
    %v1366 = vld [vmem:[#allocation2 + $0x4a8] sm:$0xf]
    %v1367 = vld [vmem:[#allocation2 + $0x4ac] sm:$0xf]
    %v1368 = vld [vmem:[#allocation2 + $0x4b0] sm:$0xf]
    %v1369 = vld [vmem:[#allocation2 + $0x4b4] sm:$0xf]
    %v1370 = vld [vmem:[#allocation2 + $0x4b8] sm:$0xf]
    %v1371 = vld [vmem:[#allocation2 + $0x4bc] sm:$0xf]
    %v1372 = vld [vmem:[#allocation2 + $0x4c0] sm:$0xf]
    %v1373 = vld [vmem:[#allocation2 + $0x4c4] sm:$0xf]
    %v1374 = vld [vmem:[#allocation2 + $0x4c8] sm:$0xf]
    %v1375 = vld [vmem:[#allocation2 + $0x4cc] sm:$0xf]
    %v1376 = vld [vmem:[#allocation2 + $0x4d0] sm:$0xf]
    %v1377 = vld [vmem:[#allocation2 + $0x4d4] sm:$0xf]
    %v1378 = vld [vmem:[#allocation2 + $0x4d8] sm:$0xf]
    %v1379 = vld [vmem:[#allocation2 + $0x4dc] sm:$0xf]
    %v1380 = vld [vmem:[#allocation2 + $0x4e0] sm:$0xf]
    %v1381 = vld [vmem:[#allocation2 + $0x4e4] sm:$0xf]
    %v1382 = vld [vmem:[#allocation2 + $0x4e8] sm:$0xf]
    %v1383 = vld [vmem:[#allocation2 + $0x4ec] sm:$0xf]
    %v1384 = vld [vmem:[#allocation2 + $0x4f0] sm:$0xf]
    %v1385 = vld [vmem:[#allocation2 + $0x4f4] sm:$0xf]
    %v1386 = vld [vmem:[#allocation2 + $0x4f8] sm:$0xf]
    %v1387 = vld [vmem:[#allocation2 + $0x4fc] sm:$0xf]
    %v1388 = vld [vmem:[#allocation2 + $0x500] sm:$0xf]
    %v1389 = vld [vmem:[#allocation2 + $0x504] sm:$0xf]
    %v1390 = vld [vmem:[#allocation2 + $0x508] sm:$0xf]
    %v1391 = vld [vmem:[#allocation2 + $0x50c] sm:$0xf]
    %v1392 = vld [vmem:[#allocation2 + $0x510] sm:$0xf]
    %v1393 = vld [vmem:[#allocation2 + $0x514] sm:$0xf]
    %v1394 = vld [vmem:[#allocation2 + $0x518] sm:$0xf]
    %v1395 = vld [vmem:[#allocation2 + $0x51c] sm:$0xf]
    %v1396 = vld [vmem:[#allocation2 + $0x520] sm:$0xf]
    %v1397 = vld [vmem:[#allocation2 + $0x524] sm:$0xf]
    %v1398 = vld [vmem:[#allocation2 + $0x528] sm:$0xf]
    %v1399 = vld [vmem:[#allocation2 + $0x52c] sm:$0xf]
    %v1400 = vld [vmem:[#allocation2 + $0x530] sm:$0xf]
    %v1401 = vld [vmem:[#allocation2 + $0x534] sm:$0xf]
    %v1402 = vld [vmem:[#allocation2 + $0x538] sm:$0xf]
    %v1403 = vld [vmem:[#allocation2 + $0x53c] sm:$0xf]
    %v1404 = vld [vmem:[#allocation2 + $0x540] sm:$0xf]
    %v1405 = vld [vmem:[#allocation2 + $0x544] sm:$0xf]
    %v1406 = vld [vmem:[#allocation2 + $0x548] sm:$0xf]
    %v1407 = vld [vmem:[#allocation2 + $0x54c] sm:$0xf]
    %v1408 = vld [vmem:[#allocation2 + $0x550] sm:$0xf]
    %v1409 = vld [vmem:[#allocation2 + $0x554] sm:$0xf]
    %v1410 = vld [vmem:[#allocation2 + $0x558] sm:$0xf]
    %v1411 = vld [vmem:[#allocation2 + $0x55c] sm:$0xf]
    %v1412 = vld [vmem:[#allocation2 + $0x560] sm:$0xf]
    %v1413 = vld [vmem:[#allocation2 + $0x564] sm:$0xf]
    %v1414 = vld [vmem:[#allocation2 + $0x568] sm:$0xf]
    %v1415 = vld [vmem:[#allocation2 + $0x56c] sm:$0xf]
    %v1416 = vld [vmem:[#allocation2 + $0x570] sm:$0xf]
    %v1417 = vld [vmem:[#allocation2 + $0x574] sm:$0xf]
    %v1418 = vld [vmem:[#allocation2 + $0x578] sm:$0xf]
    %v1419 = vld [vmem:[#allocation2 + $0x57c] sm:$0xf]
    %v1420 = vld [vmem:[#allocation2 + $0x580] sm:$0xf]
    %v1421 = vld [vmem:[#allocation2 + $0x584] sm:$0xf]
    %v1422 = vld [vmem:[#allocation2 + $0x588] sm:$0xf]
    %v1423 = vld [vmem:[#allocation2 + $0x58c] sm:$0xf]
    %v1424 = vld [vmem:[#allocation2 + $0x590] sm:$0xf]
    %v1425 = vld [vmem:[#allocation2 + $0x594] sm:$0xf]
    %v1426 = vld [vmem:[#allocation2 + $0x598] sm:$0xf]
    %v1427 = vld [vmem:[#allocation2 + $0x59c] sm:$0xf]
    %v1428 = vld [vmem:[#allocation2 + $0x5a0] sm:$0xf]
    %v1429 = vld [vmem:[#allocation2 + $0x5a4] sm:$0xf]
    %v1430 = vld [vmem:[#allocation2 + $0x5a8] sm:$0xf]
    %v1431 = vld [vmem:[#allocation2 + $0x5ac] sm:$0xf]
    %v1432 = vld [vmem:[#allocation2 + $0x5b0] sm:$0xf]
    %v1433 = vld [vmem:[#allocation2 + $0x5b4] sm:$0xf]
    %v1434 = vld [vmem:[#allocation2 + $0x5b8] sm:$0xf]
    %v1435 = vld [vmem:[#allocation2 + $0x5bc] sm:$0xf]
    %v1436 = vld [vmem:[#allocation2 + $0x5c0] sm:$0xf]
    %v1437 = vld [vmem:[#allocation2 + $0x5c4] sm:$0xf]
    %v1438 = vld [vmem:[#allocation2 + $0x5c8] sm:$0xf]
    %v1439 = vld [vmem:[#allocation2 + $0x5cc] sm:$0xf]
    %v1440 = vld [vmem:[#allocation2 + $0x5d0] sm:$0xf]
    %v1441 = vld [vmem:[#allocation2 + $0x5d4] sm:$0xf]
    %v1442 = vld [vmem:[#allocation2 + $0x5d8] sm:$0xf]
    %v1443 = vld [vmem:[#allocation2 + $0x5dc] sm:$0xf]
    %v1444 = vld [vmem:[#allocation2 + $0x5e0] sm:$0xf]
    %v1445 = vld [vmem:[#allocation2 + $0x5e4] sm:$0xf]
    %v1446 = vld [vmem:[#allocation2 + $0x5e8] sm:$0xf]
    %v1447 = vld [vmem:[#allocation2 + $0x5ec] sm:$0xf]
    %v1448 = vld [vmem:[#allocation2 + $0x5f0] sm:$0xf]
    %v1449 = vld [vmem:[#allocation2 + $0x5f4] sm:$0xf]
    %v1450 = vld [vmem:[#allocation2 + $0x5f8] sm:$0xf]
    %v1451 = vld [vmem:[#allocation2 + $0x5fc] sm:$0xf]
    %v1452 = vld [vmem:[#allocation2 + $0x600] sm:$0xf]
    %v1453 = vld [vmem:[#allocation2 + $0x604] sm:$0xf]
    %v1454 = vld [vmem:[#allocation2 + $0x608] sm:$0xf]
    %v1455 = vld [vmem:[#allocation2 + $0x60c] sm:$0xf]
    %v1456 = vld [vmem:[#allocation2 + $0x610] sm:$0xf]
    %v1457 = vld [vmem:[#allocation2 + $0x614] sm:$0xf]
    %v1458 = vld [vmem:[#allocation2 + $0x618] sm:$0xf]
    %v1459 = vld [vmem:[#allocation2 + $0x61c] sm:$0xf]
    %v1460 = vld [vmem:[#allocation2 + $0x620] sm:$0xf]
    %v1461 = vld [vmem:[#allocation2 + $0x624] sm:$0xf]
    %v1462 = vld [vmem:[#allocation2 + $0x628] sm:$0xf]
    %v1463 = vld [vmem:[#allocation2 + $0x62c] sm:$0xf]
    %v1464 = vld [vmem:[#allocation2 + $0x630] sm:$0xf]
    %v1465 = vld [vmem:[#allocation2 + $0x634] sm:$0xf]
    %v1466 = vld [vmem:[#allocation2 + $0x638] sm:$0xf]
    %v1467 = vld [vmem:[#allocation2 + $0x63c] sm:$0xf]
    %v1468 = vld [vmem:[#allocation2 + $0x640] sm:$0xf]
    %v1469 = vld [vmem:[#allocation2 + $0x644] sm:$0xf]
    %v1470 = vld [vmem:[#allocation2 + $0x648] sm:$0xf]
    %v1471 = vld [vmem:[#allocation2 + $0x64c] sm:$0xf]
    %v1472 = vld [vmem:[#allocation2 + $0x650] sm:$0xf]
    %v1473 = vld [vmem:[#allocation2 + $0x654] sm:$0xf]
    %v1474 = vld [vmem:[#allocation2 + $0x658] sm:$0xf]
    %v1475 = vld [vmem:[#allocation2 + $0x65c] sm:$0xf]
    %v1476 = vld [vmem:[#allocation2 + $0x660] sm:$0xf]
    %v1477 = vld [vmem:[#allocation2 + $0x664] sm:$0xf]
    %v1478 = vld [vmem:[#allocation2 + $0x668] sm:$0xf]
    %v1479 = vld [vmem:[#allocation2 + $0x66c] sm:$0xf]
    %v1480 = vld [vmem:[#allocation2 + $0x670] sm:$0xf]
    %v1481 = vld [vmem:[#allocation2 + $0x674] sm:$0xf]
    %v1482 = vld [vmem:[#allocation2 + $0x678] sm:$0xf]
    %v1483 = vld [vmem:[#allocation2 + $0x67c] sm:$0xf]
    %v1484 = vld [vmem:[#allocation2 + $0x680] sm:$0xf]
    %v1485 = vld [vmem:[#allocation2 + $0x684] sm:$0xf]
    %v1486 = vld [vmem:[#allocation2 + $0x688] sm:$0xf]
    %v1487 = vld [vmem:[#allocation2 + $0x68c] sm:$0xf]
    %v1488 = vld [vmem:[#allocation2 + $0x690] sm:$0xf]
    %v1489 = vld [vmem:[#allocation2 + $0x694] sm:$0xf]
    %v1490 = vld [vmem:[#allocation2 + $0x698] sm:$0xf]
    %v1491 = vld [vmem:[#allocation2 + $0x69c] sm:$0xf]
    %v1492 = vld [vmem:[#allocation2 + $0x6a0] sm:$0xf]
    %v1493 = vld [vmem:[#allocation2 + $0x6a4] sm:$0xf]
    %v1494 = vld [vmem:[#allocation2 + $0x6a8] sm:$0xf]
    %v1495 = vld [vmem:[#allocation2 + $0x6ac] sm:$0xf]
    %v1496 = vld [vmem:[#allocation2 + $0x6b0] sm:$0xf]
    %v1497 = vld [vmem:[#allocation2 + $0x6b4] sm:$0xf]
    %v1498 = vld [vmem:[#allocation2 + $0x6b8] sm:$0xf]
    %v1499 = vld [vmem:[#allocation2 + $0x6bc] sm:$0xf]
    %v1500 = vld [vmem:[#allocation2 + $0x6c0] sm:$0xf]
    %v1501 = vld [vmem:[#allocation2 + $0x6c4] sm:$0xf]
    %v1502 = vld [vmem:[#allocation2 + $0x6c8] sm:$0xf]
    %v1503 = vld [vmem:[#allocation2 + $0x6cc] sm:$0xf]
    %v1504 = vld [vmem:[#allocation2 + $0x6d0] sm:$0xf]
    %v1505 = vld [vmem:[#allocation2 + $0x6d4] sm:$0xf]
    %v1506 = vld [vmem:[#allocation2 + $0x6d8] sm:$0xf]
    %v1507 = vld [vmem:[#allocation2 + $0x6dc] sm:$0xf]
    %v1508 = vld [vmem:[#allocation2 + $0x6e0] sm:$0xf]
    %v1509 = vld [vmem:[#allocation2 + $0x6e4] sm:$0xf]
    %v1510 = vld [vmem:[#allocation2 + $0x6e8] sm:$0xf]
    %v1511 = vld [vmem:[#allocation2 + $0x6ec] sm:$0xf]
    %v1512 = vld [vmem:[#allocation2 + $0x6f0] sm:$0xf]
    %v1513 = vld [vmem:[#allocation2 + $0x6f4] sm:$0xf]
    %v1514 = vld [vmem:[#allocation2 + $0x6f8] sm:$0xf]
    %v1515 = vld [vmem:[#allocation2 + $0x6fc] sm:$0xf]
    %v1516 = vld [vmem:[#allocation2 + $0x700] sm:$0xf]
    %v1517 = vld [vmem:[#allocation2 + $0x704] sm:$0xf]
    %v1518 = vld [vmem:[#allocation2 + $0x708] sm:$0xf]
    %v1519 = vld [vmem:[#allocation2 + $0x70c] sm:$0xf]
    %v1520 = vld [vmem:[#allocation2 + $0x710] sm:$0xf]
    %v1521 = vld [vmem:[#allocation2 + $0x714] sm:$0xf]
    %v1522 = vld [vmem:[#allocation2 + $0x718] sm:$0xf]
    %v1523 = vld [vmem:[#allocation2 + $0x71c] sm:$0xf]
    %v1524 = vld [vmem:[#allocation2 + $0x720] sm:$0xf]
    %v1525 = vld [vmem:[#allocation2 + $0x724] sm:$0xf]
    %v1526 = vld [vmem:[#allocation2 + $0x728] sm:$0xf]
    %v1527 = vld [vmem:[#allocation2 + $0x72c] sm:$0xf]
    %v1528 = vld [vmem:[#allocation2 + $0x730] sm:$0xf]
    %v1529 = vld [vmem:[#allocation2 + $0x734] sm:$0xf]
    %v1530 = vld [vmem:[#allocation2 + $0x738] sm:$0xf]
    %v1531 = vld [vmem:[#allocation2 + $0x73c] sm:$0xf]
    %v1532 = vld [vmem:[#allocation2 + $0x740] sm:$0xf]
    %v1533 = vld [vmem:[#allocation2 + $0x744] sm:$0xf]
    %v1534 = vld [vmem:[#allocation2 + $0x748] sm:$0xf]
    %v1535 = vld [vmem:[#allocation2 + $0x74c] sm:$0xf]
    %v1536 = vld [vmem:[#allocation2 + $0x750] sm:$0xf]
    %v1537 = vld [vmem:[#allocation2 + $0x754] sm:$0xf]
    %v1538 = vld [vmem:[#allocation2 + $0x758] sm:$0xf]
    %v1539 = vld [vmem:[#allocation2 + $0x75c] sm:$0xf]
    %v1540 = vld [vmem:[#allocation2 + $0x760] sm:$0xf]
    %v1541 = vld [vmem:[#allocation2 + $0x764] sm:$0xf]
    %v1542 = vld [vmem:[#allocation2 + $0x768] sm:$0xf]
    %v1543 = vld [vmem:[#allocation2 + $0x76c] sm:$0xf]
    %v1544 = vld [vmem:[#allocation2 + $0x770] sm:$0xf]
    %v1545 = vld [vmem:[#allocation2 + $0x774] sm:$0xf]
    %v1546 = vld [vmem:[#allocation2 + $0x778] sm:$0xf]
    %v1547 = vld [vmem:[#allocation2 + $0x77c] sm:$0xf]
    %v1548 = vld [vmem:[#allocation2 + $0x780] sm:$0xf]
    %v1549 = vld [vmem:[#allocation2 + $0x784] sm:$0xf]
    %v1550 = vld [vmem:[#allocation2 + $0x788] sm:$0xf]
    %v1551 = vld [vmem:[#allocation2 + $0x78c] sm:$0xf]
    %v1552 = vld [vmem:[#allocation2 + $0x790] sm:$0xf]
    %v1553 = vld [vmem:[#allocation2 + $0x794] sm:$0xf]
    %v1554 = vld [vmem:[#allocation2 + $0x798] sm:$0xf]
    %v1555 = vld [vmem:[#allocation2 + $0x79c] sm:$0xf]
    %v1556 = vld [vmem:[#allocation2 + $0x7a0] sm:$0xf]
    %v1557 = vld [vmem:[#allocation2 + $0x7a4] sm:$0xf]
    %v1558 = vld [vmem:[#allocation2 + $0x7a8] sm:$0xf]
    %v1559 = vld [vmem:[#allocation2 + $0x7ac] sm:$0xf]
    %v1560 = vld [vmem:[#allocation2 + $0x7b0] sm:$0xf]
    %v1561 = vld [vmem:[#allocation2 + $0x7b4] sm:$0xf]
    %v1562 = vld [vmem:[#allocation2 + $0x7b8] sm:$0xf]
    %v1563 = vld [vmem:[#allocation2 + $0x7bc] sm:$0xf]
    %v1564 = vld [vmem:[#allocation2 + $0x7c0] sm:$0xf]
    %v1565 = vld [vmem:[#allocation2 + $0x7c4] sm:$0xf]
    %v1566 = vld [vmem:[#allocation2 + $0x7c8] sm:$0xf]
    %v1567 = vld [vmem:[#allocation2 + $0x7cc] sm:$0xf]
    %v1568 = vld [vmem:[#allocation2 + $0x7d0] sm:$0xf]
    %v1569 = vld [vmem:[#allocation2 + $0x7d4] sm:$0xf]
    %v1570 = vld [vmem:[#allocation2 + $0x7d8] sm:$0xf]
    %v1571 = vld [vmem:[#allocation2 + $0x7dc] sm:$0xf]
    %v1572 = vld [vmem:[#allocation2 + $0x7e0] sm:$0xf]
    %v1573 = vld [vmem:[#allocation2 + $0x7e4] sm:$0xf]
    %v1574 = vld [vmem:[#allocation2 + $0x7e8] sm:$0xf]
    %v1575 = vld [vmem:[#allocation2 + $0x7ec] sm:$0xf]
    %v1576 = vld [vmem:[#allocation2 + $0x7f0] sm:$0xf]
    %v1577 = vld [vmem:[#allocation2 + $0x7f4] sm:$0xf]
    %v1578 = vld [vmem:[#allocation2 + $0x7f8] sm:$0xf]
    %v1579 = vld [vmem:[#allocation2 + $0x7fc] sm:$0xf]
    %v1580 = vld [vmem:[%s6] sm:$0x1]
    %v1582 = vlaneseq
    %v1583 = vshrl.u32 %v1582, 7
    %v1584 = vsub.s32 0, %v1583
    %v1585 = vrot.slane %v1580, %v1584
    %v2099 = vunpack.c.l.b16 %v1068
    %v2100 = vunpack.c.l.b16 %v1069
    %v2101 = vunpack.c.l.b16 %v1070
    %v2102 = vunpack.c.l.b16 %v1071
    %v2103 = vunpack.c.l.b16 %v1072
    %v2104 = vunpack.c.l.b16 %v1073
    %v2105 = vunpack.c.l.b16 %v1074
    %v2106 = vunpack.c.l.b16 %v1075
    %v2107 = vunpack.c.l.b16 %v1076
    %v2108 = vunpack.c.l.b16 %v1077
    %v2109 = vunpack.c.l.b16 %v1078
    %v2110 = vunpack.c.l.b16 %v1079
    %v2111 = vunpack.c.l.b16 %v1080
    %v2112 = vunpack.c.l.b16 %v1081
    %v2113 = vunpack.c.l.b16 %v1082
    %v2114 = vunpack.c.l.b16 %v1083
    %v2115 = vunpack.c.l.b16 %v1084
    %v2116 = vunpack.c.l.b16 %v1085
    %v2117 = vunpack.c.l.b16 %v1086
    %v2118 = vunpack.c.l.b16 %v1087
    %v2119 = vunpack.c.l.b16 %v1088
    %v2120 = vunpack.c.l.b16 %v1089
    %v2121 = vunpack.c.l.b16 %v1090
    %v2122 = vunpack.c.l.b16 %v1091
    %v2123 = vunpack.c.l.b16 %v1092
    %v2124 = vunpack.c.l.b16 %v1093
    %v2125 = vunpack.c.l.b16 %v1094
    %v2126 = vunpack.c.l.b16 %v1095
    %v2127 = vunpack.c.l.b16 %v1096
    %v2128 = vunpack.c.l.b16 %v1097
    %v2129 = vunpack.c.l.b16 %v1098
    %v2130 = vunpack.c.l.b16 %v1099
    %v2131 = vunpack.c.l.b16 %v1100
    %v2132 = vunpack.c.l.b16 %v1101
    %v2133 = vunpack.c.l.b16 %v1102
    %v2134 = vunpack.c.l.b16 %v1103
    %v2135 = vunpack.c.l.b16 %v1104
    %v2136 = vunpack.c.l.b16 %v1105
    %v2137 = vunpack.c.l.b16 %v1106
    %v2138 = vunpack.c.l.b16 %v1107
    %v2139 = vunpack.c.l.b16 %v1108
    %v2140 = vunpack.c.l.b16 %v1109
    %v2141 = vunpack.c.l.b16 %v1110
    %v2142 = vunpack.c.l.b16 %v1111
    %v2143 = vunpack.c.l.b16 %v1112
    %v2144 = vunpack.c.l.b16 %v1113
    %v2145 = vunpack.c.l.b16 %v1114
    %v2146 = vunpack.c.l.b16 %v1115
    %v2147 = vunpack.c.l.b16 %v1116
    %v2148 = vunpack.c.l.b16 %v1117
    %v2149 = vunpack.c.l.b16 %v1118
    %v2150 = vunpack.c.l.b16 %v1119
    %v2151 = vunpack.c.l.b16 %v1120
    %v2152 = vunpack.c.l.b16 %v1121
    %v2153 = vunpack.c.l.b16 %v1122
    %v2154 = vunpack.c.l.b16 %v1123
    %v2155 = vunpack.c.l.b16 %v1124
    %v2156 = vunpack.c.l.b16 %v1125
    %v2157 = vunpack.c.l.b16 %v1126
    %v2158 = vunpack.c.l.b16 %v1127
    %v2159 = vunpack.c.l.b16 %v1128
    %v2160 = vunpack.c.l.b16 %v1129
    %v2161 = vunpack.c.l.b16 %v1130
    %v2162 = vunpack.c.l.b16 %v1131
    %v2163 = vunpack.c.l.b16 %v1132
    %v2164 = vunpack.c.l.b16 %v1133
    %v2165 = vunpack.c.l.b16 %v1134
    %v2166 = vunpack.c.l.b16 %v1135
    %v2167 = vunpack.c.l.b16 %v1136
    %v2168 = vunpack.c.l.b16 %v1137
    %v2169 = vunpack.c.l.b16 %v1138
    %v2170 = vunpack.c.l.b16 %v1139
    %v2171 = vunpack.c.l.b16 %v1140
    %v2172 = vunpack.c.l.b16 %v1141
    %v2173 = vunpack.c.l.b16 %v1142
    %v2174 = vunpack.c.l.b16 %v1143
    %v2175 = vunpack.c.l.b16 %v1144
    %v2176 = vunpack.c.l.b16 %v1145
    %v2177 = vunpack.c.l.b16 %v1146
    %v2178 = vunpack.c.l.b16 %v1147
    %v2179 = vunpack.c.l.b16 %v1148
    %v2180 = vunpack.c.l.b16 %v1149
    %v2181 = vunpack.c.l.b16 %v1150
    %v2182 = vunpack.c.l.b16 %v1151
    %v2183 = vunpack.c.l.b16 %v1152
    %v2184 = vunpack.c.l.b16 %v1153
    %v2185 = vunpack.c.l.b16 %v1154
    %v2186 = vunpack.c.l.b16 %v1155
    %v2187 = vunpack.c.l.b16 %v1156
    %v2188 = vunpack.c.l.b16 %v1157
    %v2189 = vunpack.c.l.b16 %v1158
    %v2190 = vunpack.c.l.b16 %v1159
    %v2191 = vunpack.c.l.b16 %v1160
    %v2192 = vunpack.c.l.b16 %v1161
    %v2193 = vunpack.c.l.b16 %v1162
    %v2194 = vunpack.c.l.b16 %v1163
    %v2195 = vunpack.c.l.b16 %v1164
    %v2196 = vunpack.c.l.b16 %v1165
    %v2197 = vunpack.c.l.b16 %v1166
    %v2198 = vunpack.c.l.b16 %v1167
    %v2199 = vunpack.c.l.b16 %v1168
    %v2200 = vunpack.c.l.b16 %v1169
    %v2201 = vunpack.c.l.b16 %v1170
    %v2202 = vunpack.c.l.b16 %v1171
    %v2203 = vunpack.c.l.b16 %v1172
    %v2204 = vunpack.c.l.b16 %v1173
    %v2205 = vunpack.c.l.b16 %v1174
    %v2206 = vunpack.c.l.b16 %v1175
    %v2207 = vunpack.c.l.b16 %v1176
    %v2208 = vunpack.c.l.b16 %v1177
    %v2209 = vunpack.c.l.b16 %v1178
    %v2210 = vunpack.c.l.b16 %v1179
    %v2211 = vunpack.c.l.b16 %v1180
    %v2212 = vunpack.c.l.b16 %v1181
    %v2213 = vunpack.c.l.b16 %v1182
    %v2214 = vunpack.c.l.b16 %v1183
    %v2215 = vunpack.c.l.b16 %v1184
    %v2216 = vunpack.c.l.b16 %v1185
    %v2217 = vunpack.c.l.b16 %v1186
    %v2218 = vunpack.c.l.b16 %v1187
    %v2219 = vunpack.c.l.b16 %v1188
    %v2220 = vunpack.c.l.b16 %v1189
    %v2221 = vunpack.c.l.b16 %v1190
    %v2222 = vunpack.c.l.b16 %v1191
    %v2223 = vunpack.c.l.b16 %v1192
    %v2224 = vunpack.c.l.b16 %v1193
    %v2225 = vunpack.c.l.b16 %v1194
    %v2226 = vunpack.c.l.b16 %v1195
    %v2227 = vunpack.c.l.b16 %v1196
    %v2228 = vunpack.c.l.b16 %v1197
    %v2229 = vunpack.c.l.b16 %v1198
    %v2230 = vunpack.c.l.b16 %v1199
    %v2231 = vunpack.c.l.b16 %v1200
    %v2232 = vunpack.c.l.b16 %v1201
    %v2233 = vunpack.c.l.b16 %v1202
    %v2234 = vunpack.c.l.b16 %v1203
    %v2235 = vunpack.c.l.b16 %v1204
    %v2236 = vunpack.c.l.b16 %v1205
    %v2237 = vunpack.c.l.b16 %v1206
    %v2238 = vunpack.c.l.b16 %v1207
    %v2239 = vunpack.c.l.b16 %v1208
    %v2240 = vunpack.c.l.b16 %v1209
    %v2241 = vunpack.c.l.b16 %v1210
    %v2242 = vunpack.c.l.b16 %v1211
    %v2243 = vunpack.c.l.b16 %v1212
    %v2244 = vunpack.c.l.b16 %v1213
    %v2245 = vunpack.c.l.b16 %v1214
    %v2246 = vunpack.c.l.b16 %v1215
    %v2247 = vunpack.c.l.b16 %v1216
    %v2248 = vunpack.c.l.b16 %v1217
    %v2249 = vunpack.c.l.b16 %v1218
    %v2250 = vunpack.c.l.b16 %v1219
    %v2251 = vunpack.c.l.b16 %v1220
    %v2252 = vunpack.c.l.b16 %v1221
    %v2253 = vunpack.c.l.b16 %v1222
    %v2254 = vunpack.c.l.b16 %v1223
    %v2255 = vunpack.c.l.b16 %v1224
    %v2256 = vunpack.c.l.b16 %v1225
    %v2257 = vunpack.c.l.b16 %v1226
    %v2258 = vunpack.c.l.b16 %v1227
    %v2259 = vunpack.c.l.b16 %v1228
    %v2260 = vunpack.c.l.b16 %v1229
    %v2261 = vunpack.c.l.b16 %v1230
    %v2262 = vunpack.c.l.b16 %v1231
    %v2263 = vunpack.c.l.b16 %v1232
    %v2264 = vunpack.c.l.b16 %v1233
    %v2265 = vunpack.c.l.b16 %v1234
    %v2266 = vunpack.c.l.b16 %v1235
    %v2267 = vunpack.c.l.b16 %v1236
    %v2268 = vunpack.c.l.b16 %v1237
    %v2269 = vunpack.c.l.b16 %v1238
    %v2270 = vunpack.c.l.b16 %v1239
    %v2271 = vunpack.c.l.b16 %v1240
    %v2272 = vunpack.c.l.b16 %v1241
    %v2273 = vunpack.c.l.b16 %v1242
    %v2274 = vunpack.c.l.b16 %v1243
    %v2275 = vunpack.c.l.b16 %v1244
    %v2276 = vunpack.c.l.b16 %v1245
    %v2277 = vunpack.c.l.b16 %v1246
    %v2278 = vunpack.c.l.b16 %v1247
    %v2279 = vunpack.c.l.b16 %v1248
    %v2280 = vunpack.c.l.b16 %v1249
    %v2281 = vunpack.c.l.b16 %v1250
    %v2282 = vunpack.c.l.b16 %v1251
    %v2283 = vunpack.c.l.b16 %v1252
    %v2284 = vunpack.c.l.b16 %v1253
    %v2285 = vunpack.c.l.b16 %v1254
    %v2286 = vunpack.c.l.b16 %v1255
    %v2287 = vunpack.c.l.b16 %v1256
    %v2288 = vunpack.c.l.b16 %v1257
    %v2289 = vunpack.c.l.b16 %v1258
    %v2290 = vunpack.c.l.b16 %v1259
    %v2291 = vunpack.c.l.b16 %v1260
    %v2292 = vunpack.c.l.b16 %v1261
    %v2293 = vunpack.c.l.b16 %v1262
    %v2294 = vunpack.c.l.b16 %v1263
    %v2295 = vunpack.c.l.b16 %v1264
    %v2296 = vunpack.c.l.b16 %v1265
    %v2297 = vunpack.c.l.b16 %v1266
    %v2298 = vunpack.c.l.b16 %v1267
    %v2299 = vunpack.c.l.b16 %v1268
    %v2300 = vunpack.c.l.b16 %v1269
    %v2301 = vunpack.c.l.b16 %v1270
    %v2302 = vunpack.c.l.b16 %v1271
    %v2303 = vunpack.c.l.b16 %v1272
    %v2304 = vunpack.c.l.b16 %v1273
    %v2305 = vunpack.c.l.b16 %v1274
    %v2306 = vunpack.c.l.b16 %v1275
    %v2307 = vunpack.c.l.b16 %v1276
    %v2308 = vunpack.c.l.b16 %v1277
    %v2309 = vunpack.c.l.b16 %v1278
    %v2310 = vunpack.c.l.b16 %v1279
    %v2311 = vunpack.c.l.b16 %v1280
    %v2312 = vunpack.c.l.b16 %v1281
    %v2313 = vunpack.c.l.b16 %v1282
    %v2314 = vunpack.c.l.b16 %v1283
    %v2315 = vunpack.c.l.b16 %v1284
    %v2316 = vunpack.c.l.b16 %v1285
    %v2317 = vunpack.c.l.b16 %v1286
    %v2318 = vunpack.c.l.b16 %v1287
    %v2319 = vunpack.c.l.b16 %v1288
    %v2320 = vunpack.c.l.b16 %v1289
    %v2321 = vunpack.c.l.b16 %v1290
    %v2322 = vunpack.c.l.b16 %v1291
    %v2323 = vunpack.c.l.b16 %v1292
    %v2324 = vunpack.c.l.b16 %v1293
    %v2325 = vunpack.c.l.b16 %v1294
    %v2326 = vunpack.c.l.b16 %v1295
    %v2327 = vunpack.c.l.b16 %v1296
    %v2328 = vunpack.c.l.b16 %v1297
    %v2329 = vunpack.c.l.b16 %v1298
    %v2330 = vunpack.c.l.b16 %v1299
    %v2331 = vunpack.c.l.b16 %v1300
    %v2332 = vunpack.c.l.b16 %v1301
    %v2333 = vunpack.c.l.b16 %v1302
    %v2334 = vunpack.c.l.b16 %v1303
    %v2335 = vunpack.c.l.b16 %v1304
    %v2336 = vunpack.c.l.b16 %v1305
    %v2337 = vunpack.c.l.b16 %v1306
    %v2338 = vunpack.c.l.b16 %v1307
    %v2339 = vunpack.c.l.b16 %v1308
    %v2340 = vunpack.c.l.b16 %v1309
    %v2341 = vunpack.c.l.b16 %v1310
    %v2342 = vunpack.c.l.b16 %v1311
    %v2343 = vunpack.c.l.b16 %v1312
    %v2344 = vunpack.c.l.b16 %v1313
    %v2345 = vunpack.c.l.b16 %v1314
    %v2346 = vunpack.c.l.b16 %v1315
    %v2347 = vunpack.c.l.b16 %v1316
    %v2348 = vunpack.c.l.b16 %v1317
    %v2349 = vunpack.c.l.b16 %v1318
    %v2350 = vunpack.c.l.b16 %v1319
    %v2351 = vunpack.c.l.b16 %v1320
    %v2352 = vunpack.c.l.b16 %v1321
    %v2353 = vunpack.c.l.b16 %v1322
    %v2354 = vunpack.c.l.b16 %v1323
    %v2355 = vunpack.c.l.b16 %v1324
    %v2356 = vunpack.c.l.b16 %v1325
    %v2357 = vunpack.c.l.b16 %v1326
    %v2358 = vunpack.c.l.b16 %v1327
    %v2359 = vunpack.c.l.b16 %v1328
    %v2360 = vunpack.c.l.b16 %v1329
    %v2361 = vunpack.c.l.b16 %v1330
    %v2362 = vunpack.c.l.b16 %v1331
    %v2363 = vunpack.c.l.b16 %v1332
    %v2364 = vunpack.c.l.b16 %v1333
    %v2365 = vunpack.c.l.b16 %v1334
    %v2366 = vunpack.c.l.b16 %v1335
    %v2367 = vunpack.c.l.b16 %v1336
    %v2368 = vunpack.c.l.b16 %v1337
    %v2369 = vunpack.c.l.b16 %v1338
    %v2370 = vunpack.c.l.b16 %v1339
    %v2371 = vunpack.c.l.b16 %v1340
    %v2372 = vunpack.c.l.b16 %v1341
    %v2373 = vunpack.c.l.b16 %v1342
    %v2374 = vunpack.c.l.b16 %v1343
    %v2375 = vunpack.c.l.b16 %v1344
    %v2376 = vunpack.c.l.b16 %v1345
    %v2377 = vunpack.c.l.b16 %v1346
    %v2378 = vunpack.c.l.b16 %v1347
    %v2379 = vunpack.c.l.b16 %v1348
    %v2380 = vunpack.c.l.b16 %v1349
    %v2381 = vunpack.c.l.b16 %v1350
    %v2382 = vunpack.c.l.b16 %v1351
    %v2383 = vunpack.c.l.b16 %v1352
    %v2384 = vunpack.c.l.b16 %v1353
    %v2385 = vunpack.c.l.b16 %v1354
    %v2386 = vunpack.c.l.b16 %v1355
    %v2387 = vunpack.c.l.b16 %v1356
    %v2388 = vunpack.c.l.b16 %v1357
    %v2389 = vunpack.c.l.b16 %v1358
    %v2390 = vunpack.c.l.b16 %v1359
    %v2391 = vunpack.c.l.b16 %v1360
    %v2392 = vunpack.c.l.b16 %v1361
    %v2393 = vunpack.c.l.b16 %v1362
    %v2394 = vunpack.c.l.b16 %v1363
    %v2395 = vunpack.c.l.b16 %v1364
    %v2396 = vunpack.c.l.b16 %v1365
    %v2397 = vunpack.c.l.b16 %v1366
    %v2398 = vunpack.c.l.b16 %v1367
    %v2399 = vunpack.c.l.b16 %v1368
    %v2400 = vunpack.c.l.b16 %v1369
    %v2401 = vunpack.c.l.b16 %v1370
    %v2402 = vunpack.c.l.b16 %v1371
    %v2403 = vunpack.c.l.b16 %v1372
    %v2404 = vunpack.c.l.b16 %v1373
    %v2405 = vunpack.c.l.b16 %v1374
    %v2406 = vunpack.c.l.b16 %v1375
    %v2407 = vunpack.c.l.b16 %v1376
    %v2408 = vunpack.c.l.b16 %v1377
    %v2409 = vunpack.c.l.b16 %v1378
    %v2410 = vunpack.c.l.b16 %v1379
    %v2411 = vunpack.c.l.b16 %v1380
    %v2412 = vunpack.c.l.b16 %v1381
    %v2413 = vunpack.c.l.b16 %v1382
    %v2414 = vunpack.c.l.b16 %v1383
    %v2415 = vunpack.c.l.b16 %v1384
    %v2416 = vunpack.c.l.b16 %v1385
    %v2417 = vunpack.c.l.b16 %v1386
    %v2418 = vunpack.c.l.b16 %v1387
    %v2419 = vunpack.c.l.b16 %v1388
    %v2420 = vunpack.c.l.b16 %v1389
    %v2421 = vunpack.c.l.b16 %v1390
    %v2422 = vunpack.c.l.b16 %v1391
    %v2423 = vunpack.c.l.b16 %v1392
    %v2424 = vunpack.c.l.b16 %v1393
    %v2425 = vunpack.c.l.b16 %v1394
    %v2426 = vunpack.c.l.b16 %v1395
    %v2427 = vunpack.c.l.b16 %v1396
    %v2428 = vunpack.c.l.b16 %v1397
    %v2429 = vunpack.c.l.b16 %v1398
    %v2430 = vunpack.c.l.b16 %v1399
    %v2431 = vunpack.c.l.b16 %v1400
    %v2432 = vunpack.c.l.b16 %v1401
    %v2433 = vunpack.c.l.b16 %v1402
    %v2434 = vunpack.c.l.b16 %v1403
    %v2435 = vunpack.c.l.b16 %v1404
    %v2436 = vunpack.c.l.b16 %v1405
    %v2437 = vunpack.c.l.b16 %v1406
    %v2438 = vunpack.c.l.b16 %v1407
    %v2439 = vunpack.c.l.b16 %v1408
    %v2440 = vunpack.c.l.b16 %v1409
    %v2441 = vunpack.c.l.b16 %v1410
    %v2442 = vunpack.c.l.b16 %v1411
    %v2443 = vunpack.c.l.b16 %v1412
    %v2444 = vunpack.c.l.b16 %v1413
    %v2445 = vunpack.c.l.b16 %v1414
    %v2446 = vunpack.c.l.b16 %v1415
    %v2447 = vunpack.c.l.b16 %v1416
    %v2448 = vunpack.c.l.b16 %v1417
    %v2449 = vunpack.c.l.b16 %v1418
    %v2450 = vunpack.c.l.b16 %v1419
    %v2451 = vunpack.c.l.b16 %v1420
    %v2452 = vunpack.c.l.b16 %v1421
    %v2453 = vunpack.c.l.b16 %v1422
    %v2454 = vunpack.c.l.b16 %v1423
    %v2455 = vunpack.c.l.b16 %v1424
    %v2456 = vunpack.c.l.b16 %v1425
    %v2457 = vunpack.c.l.b16 %v1426
    %v2458 = vunpack.c.l.b16 %v1427
    %v2459 = vunpack.c.l.b16 %v1428
    %v2460 = vunpack.c.l.b16 %v1429
    %v2461 = vunpack.c.l.b16 %v1430
    %v2462 = vunpack.c.l.b16 %v1431
    %v2463 = vunpack.c.l.b16 %v1432
    %v2464 = vunpack.c.l.b16 %v1433
    %v2465 = vunpack.c.l.b16 %v1434
    %v2466 = vunpack.c.l.b16 %v1435
    %v2467 = vunpack.c.l.b16 %v1436
    %v2468 = vunpack.c.l.b16 %v1437
    %v2469 = vunpack.c.l.b16 %v1438
    %v2470 = vunpack.c.l.b16 %v1439
    %v2471 = vunpack.c.l.b16 %v1440
    %v2472 = vunpack.c.l.b16 %v1441
    %v2473 = vunpack.c.l.b16 %v1442
    %v2474 = vunpack.c.l.b16 %v1443
    %v2475 = vunpack.c.l.b16 %v1444
    %v2476 = vunpack.c.l.b16 %v1445
    %v2477 = vunpack.c.l.b16 %v1446
    %v2478 = vunpack.c.l.b16 %v1447
    %v2479 = vunpack.c.l.b16 %v1448
    %v2480 = vunpack.c.l.b16 %v1449
    %v2481 = vunpack.c.l.b16 %v1450
    %v2482 = vunpack.c.l.b16 %v1451
    %v2483 = vunpack.c.l.b16 %v1452
    %v2484 = vunpack.c.l.b16 %v1453
    %v2485 = vunpack.c.l.b16 %v1454
    %v2486 = vunpack.c.l.b16 %v1455
    %v2487 = vunpack.c.l.b16 %v1456
    %v2488 = vunpack.c.l.b16 %v1457
    %v2489 = vunpack.c.l.b16 %v1458
    %v2490 = vunpack.c.l.b16 %v1459
    %v2491 = vunpack.c.l.b16 %v1460
    %v2492 = vunpack.c.l.b16 %v1461
    %v2493 = vunpack.c.l.b16 %v1462
    %v2494 = vunpack.c.l.b16 %v1463
    %v2495 = vunpack.c.l.b16 %v1464
    %v2496 = vunpack.c.l.b16 %v1465
    %v2497 = vunpack.c.l.b16 %v1466
    %v2498 = vunpack.c.l.b16 %v1467
    %v2499 = vunpack.c.l.b16 %v1468
    %v2500 = vunpack.c.l.b16 %v1469
    %v2501 = vunpack.c.l.b16 %v1470
    %v2502 = vunpack.c.l.b16 %v1471
    %v2503 = vunpack.c.l.b16 %v1472
    %v2504 = vunpack.c.l.b16 %v1473
    %v2505 = vunpack.c.l.b16 %v1474
    %v2506 = vunpack.c.l.b16 %v1475
    %v2507 = vunpack.c.l.b16 %v1476
    %v2508 = vunpack.c.l.b16 %v1477
    %v2509 = vunpack.c.l.b16 %v1478
    %v2510 = vunpack.c.l.b16 %v1479
    %v2511 = vunpack.c.l.b16 %v1480
    %v2512 = vunpack.c.l.b16 %v1481
    %v2513 = vunpack.c.l.b16 %v1482
    %v2514 = vunpack.c.l.b16 %v1483
    %v2515 = vunpack.c.l.b16 %v1484
    %v2516 = vunpack.c.l.b16 %v1485
    %v2517 = vunpack.c.l.b16 %v1486
    %v2518 = vunpack.c.l.b16 %v1487
    %v2519 = vunpack.c.l.b16 %v1488
    %v2520 = vunpack.c.l.b16 %v1489
    %v2521 = vunpack.c.l.b16 %v1490
    %v2522 = vunpack.c.l.b16 %v1491
    %v2523 = vunpack.c.l.b16 %v1492
    %v2524 = vunpack.c.l.b16 %v1493
    %v2525 = vunpack.c.l.b16 %v1494
    %v2526 = vunpack.c.l.b16 %v1495
    %v2527 = vunpack.c.l.b16 %v1496
    %v2528 = vunpack.c.l.b16 %v1497
    %v2529 = vunpack.c.l.b16 %v1498
    %v2530 = vunpack.c.l.b16 %v1499
    %v2531 = vunpack.c.l.b16 %v1500
    %v2532 = vunpack.c.l.b16 %v1501
    %v2533 = vunpack.c.l.b16 %v1502
    %v2534 = vunpack.c.l.b16 %v1503
    %v2535 = vunpack.c.l.b16 %v1504
    %v2536 = vunpack.c.l.b16 %v1505
    %v2537 = vunpack.c.l.b16 %v1506
    %v2538 = vunpack.c.l.b16 %v1507
    %v2539 = vunpack.c.l.b16 %v1508
    %v2540 = vunpack.c.l.b16 %v1509
    %v2541 = vunpack.c.l.b16 %v1510
    %v2542 = vunpack.c.l.b16 %v1511
    %v2543 = vunpack.c.l.b16 %v1512
    %v2544 = vunpack.c.l.b16 %v1513
    %v2545 = vunpack.c.l.b16 %v1514
    %v2546 = vunpack.c.l.b16 %v1515
    %v2547 = vunpack.c.l.b16 %v1516
    %v2548 = vunpack.c.l.b16 %v1517
    %v2549 = vunpack.c.l.b16 %v1518
    %v2550 = vunpack.c.l.b16 %v1519
    %v2551 = vunpack.c.l.b16 %v1520
    %v2552 = vunpack.c.l.b16 %v1521
    %v2553 = vunpack.c.l.b16 %v1522
    %v2554 = vunpack.c.l.b16 %v1523
    %v2555 = vunpack.c.l.b16 %v1524
    %v2556 = vunpack.c.l.b16 %v1525
    %v2557 = vunpack.c.l.b16 %v1526
    %v2558 = vunpack.c.l.b16 %v1527
    %v2559 = vunpack.c.l.b16 %v1528
    %v2560 = vunpack.c.l.b16 %v1529
    %v2561 = vunpack.c.l.b16 %v1530
    %v2562 = vunpack.c.l.b16 %v1531
    %v2563 = vunpack.c.l.b16 %v1532
    %v2564 = vunpack.c.l.b16 %v1533
    %v2565 = vunpack.c.l.b16 %v1534
    %v2566 = vunpack.c.l.b16 %v1535
    %v2567 = vunpack.c.l.b16 %v1536
    %v2568 = vunpack.c.l.b16 %v1537
    %v2569 = vunpack.c.l.b16 %v1538
    %v2570 = vunpack.c.l.b16 %v1539
    %v2571 = vunpack.c.l.b16 %v1540
    %v2572 = vunpack.c.l.b16 %v1541
    %v2573 = vunpack.c.l.b16 %v1542
    %v2574 = vunpack.c.l.b16 %v1543
    %v2575 = vunpack.c.l.b16 %v1544
    %v2576 = vunpack.c.l.b16 %v1545
    %v2577 = vunpack.c.l.b16 %v1546
    %v2578 = vunpack.c.l.b16 %v1547
    %v2579 = vunpack.c.l.b16 %v1548
    %v2580 = vunpack.c.l.b16 %v1549
    %v2581 = vunpack.c.l.b16 %v1550
    %v2582 = vunpack.c.l.b16 %v1551
    %v2583 = vunpack.c.l.b16 %v1552
    %v2584 = vunpack.c.l.b16 %v1553
    %v2585 = vunpack.c.l.b16 %v1554
    %v2586 = vunpack.c.l.b16 %v1555
    %v2587 = vunpack.c.l.b16 %v1556
    %v2588 = vunpack.c.l.b16 %v1557
    %v2589 = vunpack.c.l.b16 %v1558
    %v2590 = vunpack.c.l.b16 %v1559
    %v2591 = vunpack.c.l.b16 %v1560
    %v2592 = vunpack.c.l.b16 %v1561
    %v2593 = vunpack.c.l.b16 %v1562
    %v2594 = vunpack.c.l.b16 %v1563
    %v2595 = vunpack.c.l.b16 %v1564
    %v2596 = vunpack.c.l.b16 %v1565
    %v2597 = vunpack.c.l.b16 %v1566
    %v2598 = vunpack.c.l.b16 %v1567
    %v2599 = vunpack.c.l.b16 %v1568
    %v2600 = vunpack.c.l.b16 %v1569
    %v2601 = vunpack.c.l.b16 %v1570
    %v2602 = vunpack.c.l.b16 %v1571
    %v2603 = vunpack.c.l.b16 %v1572
    %v2604 = vunpack.c.l.b16 %v1573
    %v2605 = vunpack.c.l.b16 %v1574
    %v2606 = vunpack.c.l.b16 %v1575
    %v2607 = vunpack.c.l.b16 %v1576
    %v2608 = vunpack.c.l.b16 %v1577
    %v2609 = vunpack.c.l.b16 %v1578
    %v2610 = vunpack.c.l.b16 %v1579
    %v2611 = vpack.c.b16 %v2100, %v2099
    %v2612 = vpack.c.b16 %v2102, %v2101
    %v2613 = vpack.c.b16 %v2104, %v2103
    %v2614 = vpack.c.b16 %v2106, %v2105
    %v2615 = vpack.c.b16 %v2108, %v2107
    %v2616 = vpack.c.b16 %v2110, %v2109
    %v2617 = vpack.c.b16 %v2112, %v2111
    %v2618 = vpack.c.b16 %v2114, %v2113
    %v2619 = vpack.c.b16 %v2116, %v2115
    %v2620 = vpack.c.b16 %v2118, %v2117
    %v2621 = vpack.c.b16 %v2120, %v2119
    %v2622 = vpack.c.b16 %v2122, %v2121
    %v2623 = vpack.c.b16 %v2124, %v2123
    %v2624 = vpack.c.b16 %v2126, %v2125
    %v2625 = vpack.c.b16 %v2128, %v2127
    %v2626 = vpack.c.b16 %v2130, %v2129
    %v2627 = vpack.c.b16 %v2132, %v2131
    %v2628 = vpack.c.b16 %v2134, %v2133
    %v2629 = vpack.c.b16 %v2136, %v2135
    %v2630 = vpack.c.b16 %v2138, %v2137
    %v2631 = vpack.c.b16 %v2140, %v2139
    %v2632 = vpack.c.b16 %v2142, %v2141
    %v2633 = vpack.c.b16 %v2144, %v2143
    %v2634 = vpack.c.b16 %v2146, %v2145
    %v2635 = vpack.c.b16 %v2148, %v2147
    %v2636 = vpack.c.b16 %v2150, %v2149
    %v2637 = vpack.c.b16 %v2152, %v2151
    %v2638 = vpack.c.b16 %v2154, %v2153
    %v2639 = vpack.c.b16 %v2156, %v2155
    %v2640 = vpack.c.b16 %v2158, %v2157
    %v2641 = vpack.c.b16 %v2160, %v2159
    %v2642 = vpack.c.b16 %v2162, %v2161
    %v2643 = vpack.c.b16 %v2164, %v2163
    %v2644 = vpack.c.b16 %v2166, %v2165
    %v2645 = vpack.c.b16 %v2168, %v2167
    %v2646 = vpack.c.b16 %v2170, %v2169
    %v2647 = vpack.c.b16 %v2172, %v2171
    %v2648 = vpack.c.b16 %v2174, %v2173
    %v2649 = vpack.c.b16 %v2176, %v2175
    %v2650 = vpack.c.b16 %v2178, %v2177
    %v2651 = vpack.c.b16 %v2180, %v2179
    %v2652 = vpack.c.b16 %v2182, %v2181
    %v2653 = vpack.c.b16 %v2184, %v2183
    %v2654 = vpack.c.b16 %v2186, %v2185
    %v2655 = vpack.c.b16 %v2188, %v2187
    %v2656 = vpack.c.b16 %v2190, %v2189
    %v2657 = vpack.c.b16 %v2192, %v2191
    %v2658 = vpack.c.b16 %v2194, %v2193
    %v2659 = vpack.c.b16 %v2196, %v2195
    %v2660 = vpack.c.b16 %v2198, %v2197
    %v2661 = vpack.c.b16 %v2200, %v2199
    %v2662 = vpack.c.b16 %v2202, %v2201
    %v2663 = vpack.c.b16 %v2204, %v2203
    %v2664 = vpack.c.b16 %v2206, %v2205
    %v2665 = vpack.c.b16 %v2208, %v2207
    %v2666 = vpack.c.b16 %v2210, %v2209
    %v2667 = vpack.c.b16 %v2212, %v2211
    %v2668 = vpack.c.b16 %v2214, %v2213
    %v2669 = vpack.c.b16 %v2216, %v2215
    %v2670 = vpack.c.b16 %v2218, %v2217
    %v2671 = vpack.c.b16 %v2220, %v2219
    %v2672 = vpack.c.b16 %v2222, %v2221
    %v2673 = vpack.c.b16 %v2224, %v2223
    %v2674 = vpack.c.b16 %v2226, %v2225
    %v2675 = vpack.c.b16 %v2228, %v2227
    %v2676 = vpack.c.b16 %v2230, %v2229
    %v2677 = vpack.c.b16 %v2232, %v2231
    %v2678 = vpack.c.b16 %v2234, %v2233
    %v2679 = vpack.c.b16 %v2236, %v2235
    %v2680 = vpack.c.b16 %v2238, %v2237
    %v2681 = vpack.c.b16 %v2240, %v2239
    %v2682 = vpack.c.b16 %v2242, %v2241
    %v2683 = vpack.c.b16 %v2244, %v2243
    %v2684 = vpack.c.b16 %v2246, %v2245
    %v2685 = vpack.c.b16 %v2248, %v2247
    %v2686 = vpack.c.b16 %v2250, %v2249
    %v2687 = vpack.c.b16 %v2252, %v2251
    %v2688 = vpack.c.b16 %v2254, %v2253
    %v2689 = vpack.c.b16 %v2256, %v2255
    %v2690 = vpack.c.b16 %v2258, %v2257
    %v2691 = vpack.c.b16 %v2260, %v2259
    %v2692 = vpack.c.b16 %v2262, %v2261
    %v2693 = vpack.c.b16 %v2264, %v2263
    %v2694 = vpack.c.b16 %v2266, %v2265
    %v2695 = vpack.c.b16 %v2268, %v2267
    %v2696 = vpack.c.b16 %v2270, %v2269
    %v2697 = vpack.c.b16 %v2272, %v2271
    %v2698 = vpack.c.b16 %v2274, %v2273
    %v2699 = vpack.c.b16 %v2276, %v2275
    %v2700 = vpack.c.b16 %v2278, %v2277
    %v2701 = vpack.c.b16 %v2280, %v2279
    %v2702 = vpack.c.b16 %v2282, %v2281
    %v2703 = vpack.c.b16 %v2284, %v2283
    %v2704 = vpack.c.b16 %v2286, %v2285
    %v2705 = vpack.c.b16 %v2288, %v2287
    %v2706 = vpack.c.b16 %v2290, %v2289
    %v2707 = vpack.c.b16 %v2292, %v2291
    %v2708 = vpack.c.b16 %v2294, %v2293
    %v2709 = vpack.c.b16 %v2296, %v2295
    %v2710 = vpack.c.b16 %v2298, %v2297
    %v2711 = vpack.c.b16 %v2300, %v2299
    %v2712 = vpack.c.b16 %v2302, %v2301
    %v2713 = vpack.c.b16 %v2304, %v2303
    %v2714 = vpack.c.b16 %v2306, %v2305
    %v2715 = vpack.c.b16 %v2308, %v2307
    %v2716 = vpack.c.b16 %v2310, %v2309
    %v2717 = vpack.c.b16 %v2312, %v2311
    %v2718 = vpack.c.b16 %v2314, %v2313
    %v2719 = vpack.c.b16 %v2316, %v2315
    %v2720 = vpack.c.b16 %v2318, %v2317
    %v2721 = vpack.c.b16 %v2320, %v2319
    %v2722 = vpack.c.b16 %v2322, %v2321
    %v2723 = vpack.c.b16 %v2324, %v2323
    %v2724 = vpack.c.b16 %v2326, %v2325
    %v2725 = vpack.c.b16 %v2328, %v2327
    %v2726 = vpack.c.b16 %v2330, %v2329
    %v2727 = vpack.c.b16 %v2332, %v2331
    %v2728 = vpack.c.b16 %v2334, %v2333
    %v2729 = vpack.c.b16 %v2336, %v2335
    %v2730 = vpack.c.b16 %v2338, %v2337
    %v2731 = vpack.c.b16 %v2340, %v2339
    %v2732 = vpack.c.b16 %v2342, %v2341
    %v2733 = vpack.c.b16 %v2344, %v2343
    %v2734 = vpack.c.b16 %v2346, %v2345
    %v2735 = vpack.c.b16 %v2348, %v2347
    %v2736 = vpack.c.b16 %v2350, %v2349
    %v2737 = vpack.c.b16 %v2352, %v2351
    %v2738 = vpack.c.b16 %v2354, %v2353
    %v2739 = vpack.c.b16 %v2356, %v2355
    %v2740 = vpack.c.b16 %v2358, %v2357
    %v2741 = vpack.c.b16 %v2360, %v2359
    %v2742 = vpack.c.b16 %v2362, %v2361
    %v2743 = vpack.c.b16 %v2364, %v2363
    %v2744 = vpack.c.b16 %v2366, %v2365
    %v2745 = vpack.c.b16 %v2368, %v2367
    %v2746 = vpack.c.b16 %v2370, %v2369
    %v2747 = vpack.c.b16 %v2372, %v2371
    %v2748 = vpack.c.b16 %v2374, %v2373
    %v2749 = vpack.c.b16 %v2376, %v2375
    %v2750 = vpack.c.b16 %v2378, %v2377
    %v2751 = vpack.c.b16 %v2380, %v2379
    %v2752 = vpack.c.b16 %v2382, %v2381
    %v2753 = vpack.c.b16 %v2384, %v2383
    %v2754 = vpack.c.b16 %v2386, %v2385
    %v2755 = vpack.c.b16 %v2388, %v2387
    %v2756 = vpack.c.b16 %v2390, %v2389
    %v2757 = vpack.c.b16 %v2392, %v2391
    %v2758 = vpack.c.b16 %v2394, %v2393
    %v2759 = vpack.c.b16 %v2396, %v2395
    %v2760 = vpack.c.b16 %v2398, %v2397
    %v2761 = vpack.c.b16 %v2400, %v2399
    %v2762 = vpack.c.b16 %v2402, %v2401
    %v2763 = vpack.c.b16 %v2404, %v2403
    %v2764 = vpack.c.b16 %v2406, %v2405
    %v2765 = vpack.c.b16 %v2408, %v2407
    %v2766 = vpack.c.b16 %v2410, %v2409
    %v2767 = vpack.c.b16 %v2412, %v2411
    %v2768 = vpack.c.b16 %v2414, %v2413
    %v2769 = vpack.c.b16 %v2416, %v2415
    %v2770 = vpack.c.b16 %v2418, %v2417
    %v2771 = vpack.c.b16 %v2420, %v2419
    %v2772 = vpack.c.b16 %v2422, %v2421
    %v2773 = vpack.c.b16 %v2424, %v2423
    %v2774 = vpack.c.b16 %v2426, %v2425
    %v2775 = vpack.c.b16 %v2428, %v2427
    %v2776 = vpack.c.b16 %v2430, %v2429
    %v2777 = vpack.c.b16 %v2432, %v2431
    %v2778 = vpack.c.b16 %v2434, %v2433
    %v2779 = vpack.c.b16 %v2436, %v2435
    %v2780 = vpack.c.b16 %v2438, %v2437
    %v2781 = vpack.c.b16 %v2440, %v2439
    %v2782 = vpack.c.b16 %v2442, %v2441
    %v2783 = vpack.c.b16 %v2444, %v2443
    %v2784 = vpack.c.b16 %v2446, %v2445
    %v2785 = vpack.c.b16 %v2448, %v2447
    %v2786 = vpack.c.b16 %v2450, %v2449
    %v2787 = vpack.c.b16 %v2452, %v2451
    %v2788 = vpack.c.b16 %v2454, %v2453
    %v2789 = vpack.c.b16 %v2456, %v2455
    %v2790 = vpack.c.b16 %v2458, %v2457
    %v2791 = vpack.c.b16 %v2460, %v2459
    %v2792 = vpack.c.b16 %v2462, %v2461
    %v2793 = vpack.c.b16 %v2464, %v2463
    %v2794 = vpack.c.b16 %v2466, %v2465
    %v2795 = vpack.c.b16 %v2468, %v2467
    %v2796 = vpack.c.b16 %v2470, %v2469
    %v2797 = vpack.c.b16 %v2472, %v2471
    %v2798 = vpack.c.b16 %v2474, %v2473
    %v2799 = vpack.c.b16 %v2476, %v2475
    %v2800 = vpack.c.b16 %v2478, %v2477
    %v2801 = vpack.c.b16 %v2480, %v2479
    %v2802 = vpack.c.b16 %v2482, %v2481
    %v2803 = vpack.c.b16 %v2484, %v2483
    %v2804 = vpack.c.b16 %v2486, %v2485
    %v2805 = vpack.c.b16 %v2488, %v2487
    %v2806 = vpack.c.b16 %v2490, %v2489
    %v2807 = vpack.c.b16 %v2492, %v2491
    %v2808 = vpack.c.b16 %v2494, %v2493
    %v2809 = vpack.c.b16 %v2496, %v2495
    %v2810 = vpack.c.b16 %v2498, %v2497
    %v2811 = vpack.c.b16 %v2500, %v2499
    %v2812 = vpack.c.b16 %v2502, %v2501
    %v2813 = vpack.c.b16 %v2504, %v2503
    %v2814 = vpack.c.b16 %v2506, %v2505
    %v2815 = vpack.c.b16 %v2508, %v2507
    %v2816 = vpack.c.b16 %v2510, %v2509
    %v2817 = vpack.c.b16 %v2512, %v2511
    %v2818 = vpack.c.b16 %v2514, %v2513
    %v2819 = vpack.c.b16 %v2516, %v2515
    %v2820 = vpack.c.b16 %v2518, %v2517
    %v2821 = vpack.c.b16 %v2520, %v2519
    %v2822 = vpack.c.b16 %v2522, %v2521
    %v2823 = vpack.c.b16 %v2524, %v2523
    %v2824 = vpack.c.b16 %v2526, %v2525
    %v2825 = vpack.c.b16 %v2528, %v2527
    %v2826 = vpack.c.b16 %v2530, %v2529
    %v2827 = vpack.c.b16 %v2532, %v2531
    %v2828 = vpack.c.b16 %v2534, %v2533
    %v2829 = vpack.c.b16 %v2536, %v2535
    %v2830 = vpack.c.b16 %v2538, %v2537
    %v2831 = vpack.c.b16 %v2540, %v2539
    %v2832 = vpack.c.b16 %v2542, %v2541
    %v2833 = vpack.c.b16 %v2544, %v2543
    %v2834 = vpack.c.b16 %v2546, %v2545
    %v2835 = vpack.c.b16 %v2548, %v2547
    %v2836 = vpack.c.b16 %v2550, %v2549
    %v2837 = vpack.c.b16 %v2552, %v2551
    %v2838 = vpack.c.b16 %v2554, %v2553
    %v2839 = vpack.c.b16 %v2556, %v2555
    %v2840 = vpack.c.b16 %v2558, %v2557
    %v2841 = vpack.c.b16 %v2560, %v2559
    %v2842 = vpack.c.b16 %v2562, %v2561
    %v2843 = vpack.c.b16 %v2564, %v2563
    %v2844 = vpack.c.b16 %v2566, %v2565
    %v2845 = vpack.c.b16 %v2568, %v2567
    %v2846 = vpack.c.b16 %v2570, %v2569
    %v2847 = vpack.c.b16 %v2572, %v2571
    %v2848 = vpack.c.b16 %v2574, %v2573
    %v2849 = vpack.c.b16 %v2576, %v2575
    %v2850 = vpack.c.b16 %v2578, %v2577
    %v2851 = vpack.c.b16 %v2580, %v2579
    %v2852 = vpack.c.b16 %v2582, %v2581
    %v2853 = vpack.c.b16 %v2584, %v2583
    %v2854 = vpack.c.b16 %v2586, %v2585
    %v2855 = vpack.c.b16 %v2588, %v2587
    %v2856 = vpack.c.b16 %v2590, %v2589
    %v2857 = vpack.c.b16 %v2592, %v2591
    %v2858 = vpack.c.b16 %v2594, %v2593
    %v2859 = vpack.c.b16 %v2596, %v2595
    %v2860 = vpack.c.b16 %v2598, %v2597
    %v2861 = vpack.c.b16 %v2600, %v2599
    %v2862 = vpack.c.b16 %v2602, %v2601
    %v2863 = vpack.c.b16 %v2604, %v2603
    %v2864 = vpack.c.b16 %v2606, %v2605
    %v2865 = vpack.c.b16 %v2608, %v2607
    %v2866 = vpack.c.b16 %v2610, %v2609
    %3123 = vmatprep.subr.bf16.mxu0 0
    %3124 = vmatpush1.bf16.msra.mxu0 %v2611
    %3125 = vmatprep.subr.bf16.mxu0 0
    %3126 = vmatpush1.bf16.msra.mxu0 %v2612
    %3127 = vmatprep.subr.bf16.mxu0 0
    %3128 = vmatpush1.bf16.msra.mxu0 %v2613
    %3129 = vmatprep.subr.bf16.mxu0 0
    %3130 = vmatpush1.bf16.msra.mxu0 %v2614
    %3131 = vmatprep.subr.bf16.mxu0 0
    %3132 = vmatpush1.bf16.msra.mxu0 %v2615
    %3133 = vmatprep.subr.bf16.mxu0 0
    %3134 = vmatpush1.bf16.msra.mxu0 %v2616
    %3135 = vmatprep.subr.bf16.mxu0 0
    %3136 = vmatpush1.bf16.msra.mxu0 %v2617
    %3137 = vmatprep.subr.bf16.mxu0 0
    %3138 = vmatpush1.bf16.msra.mxu0 %v2618
    %3139 = vmatprep.subr.bf16.mxu0 0
    %3140 = vmatpush1.bf16.msra.mxu0 %v2619
    %3141 = vmatprep.subr.bf16.mxu0 0
    %3142 = vmatpush1.bf16.msra.mxu0 %v2620
    %3143 = vmatprep.subr.bf16.mxu0 0
    %3144 = vmatpush1.bf16.msra.mxu0 %v2621
    %3145 = vmatprep.subr.bf16.mxu0 0
    %3146 = vmatpush1.bf16.msra.mxu0 %v2622
    %3147 = vmatprep.subr.bf16.mxu0 0
    %3148 = vmatpush1.bf16.msra.mxu0 %v2623
    %3149 = vmatprep.subr.bf16.mxu0 0
    %3150 = vmatpush1.bf16.msra.mxu0 %v2624
    %3151 = vmatprep.subr.bf16.mxu0 0
    %3152 = vmatpush1.bf16.msra.mxu0 %v2625
    %3153 = vmatprep.subr.bf16.mxu0 0
    %3154 = vmatpush1.bf16.msra.mxu0 %v2626
    %3155 = vmatprep.mubr.bf16.mxu0 %v1037
    %3156 = vmatmul.mubr.bf16.gmra.mrb[0].mxu0 %v1036
    %v3157 = vpop.f32.mrb[0].mxu0
    %v3158 = vadd.f32 %v1585, %v3157
    %v3159 = vpop.f32.mrb[0].mxu0
    %v3160 = vpop.f32.mrb[0].mxu0
    %v3161 = vpop.f32.mrb[0].mxu0
    %3162 = vdwg.mxu0
    %3163 = vmatprep.subr.bf16.mxu0 0
    %3164 = vmatpush1.bf16.msra.mxu0 %v2627
    %3165 = vmatprep.subr.bf16.mxu0 0
    %3166 = vmatpush1.bf16.msra.mxu0 %v2628
    %3167 = vmatprep.subr.bf16.mxu0 0
    %3168 = vmatpush1.bf16.msra.mxu0 %v2629
    %3169 = vmatprep.subr.bf16.mxu0 0
    %3170 = vmatpush1.bf16.msra.mxu0 %v2630
    %3171 = vmatprep.subr.bf16.mxu0 0
    %3172 = vmatpush1.bf16.msra.mxu0 %v2631
    %3173 = vmatprep.subr.bf16.mxu0 0
    %3174 = vmatpush1.bf16.msra.mxu0 %v2632
    %3175 = vmatprep.subr.bf16.mxu0 0
    %3176 = vmatpush1.bf16.msra.mxu0 %v2633
    %3177 = vmatprep.subr.bf16.mxu0 0
    %3178 = vmatpush1.bf16.msra.mxu0 %v2634
    %3179 = vmatprep.subr.bf16.mxu0 0
    %3180 = vmatpush1.bf16.msra.mxu0 %v2635
    %3181 = vmatprep.subr.bf16.mxu0 0
    %3182 = vmatpush1.bf16.msra.mxu0 %v2636
    %3183 = vmatprep.subr.bf16.mxu0 0
    %3184 = vmatpush1.bf16.msra.mxu0 %v2637
    %3185 = vmatprep.subr.bf16.mxu0 0
    %3186 = vmatpush1.bf16.msra.mxu0 %v2638
    %3187 = vmatprep.subr.bf16.mxu0 0
    %3188 = vmatpush1.bf16.msra.mxu0 %v2639
    %3189 = vmatprep.subr.bf16.mxu0 0
    %3190 = vmatpush1.bf16.msra.mxu0 %v2640
    %3191 = vmatprep.subr.bf16.mxu0 0
    %3192 = vmatpush1.bf16.msra.mxu0 %v2641
    %3193 = vmatprep.subr.bf16.mxu0 0
    %3194 = vmatpush1.bf16.msra.mxu0 %v2642
    %3195 = vmatprep.mubr.bf16.mxu0 %v1039
    %3196 = vmatmul.mubr.bf16.gmra.mrb[0].mxu0 %v1038
    %v3197 = vpop.f32.mrb[0].mxu0
    %v3198 = vadd.f32 %v3158, %v3197
    %v3199 = vpop.f32.mrb[0].mxu0
    %v3200 = vpop.f32.mrb[0].mxu0
    %v3201 = vpop.f32.mrb[0].mxu0
    %3202 = vdwg.mxu0
    %3203 = vmatprep.subr.bf16.mxu0 0
    %3204 = vmatpush1.bf16.msra.mxu0 %v2643
    %3205 = vmatprep.subr.bf16.mxu0 0
    %3206 = vmatpush1.bf16.msra.mxu0 %v2644
    %3207 = vmatprep.subr.bf16.mxu0 0
    %3208 = vmatpush1.bf16.msra.mxu0 %v2645
    %3209 = vmatprep.subr.bf16.mxu0 0
    %3210 = vmatpush1.bf16.msra.mxu0 %v2646
    %3211 = vmatprep.subr.bf16.mxu0 0
    %3212 = vmatpush1.bf16.msra.mxu0 %v2647
    %3213 = vmatprep.subr.bf16.mxu0 0
    %3214 = vmatpush1.bf16.msra.mxu0 %v2648
    %3215 = vmatprep.subr.bf16.mxu0 0
    %3216 = vmatpush1.bf16.msra.mxu0 %v2649
    %3217 = vmatprep.subr.bf16.mxu0 0
    %3218 = vmatpush1.bf16.msra.mxu0 %v2650
    %3219 = vmatprep.subr.bf16.mxu0 0
    %3220 = vmatpush1.bf16.msra.mxu0 %v2651
    %3221 = vmatprep.subr.bf16.mxu0 0
    %3222 = vmatpush1.bf16.msra.mxu0 %v2652
    %3223 = vmatprep.subr.bf16.mxu0 0
    %3224 = vmatpush1.bf16.msra.mxu0 %v2653
    %3225 = vmatprep.subr.bf16.mxu0 0
    %3226 = vmatpush1.bf16.msra.mxu0 %v2654
    %3227 = vmatprep.subr.bf16.mxu0 0
    %3228 = vmatpush1.bf16.msra.mxu0 %v2655
    %3229 = vmatprep.subr.bf16.mxu0 0
    %3230 = vmatpush1.bf16.msra.mxu0 %v2656
    %3231 = vmatprep.subr.bf16.mxu0 0
    %3232 = vmatpush1.bf16.msra.mxu0 %v2657
    %3233 = vmatprep.subr.bf16.mxu0 0
    %3234 = vmatpush1.bf16.msra.mxu0 %v2658
    %3235 = vmatprep.mubr.bf16.mxu0 %v1041
    %3236 = vmatmul.mubr.bf16.gmra.mrb[0].mxu0 %v1040
    %v3237 = vpop.f32.mrb[0].mxu0
    %v3238 = vadd.f32 %v3198, %v3237
    %v3239 = vpop.f32.mrb[0].mxu0
    %v3240 = vpop.f32.mrb[0].mxu0
    %v3241 = vpop.f32.mrb[0].mxu0
    %3242 = vdwg.mxu0
    %3243 = vmatprep.subr.bf16.mxu0 0
    %3244 = vmatpush1.bf16.msra.mxu0 %v2659
    %3245 = vmatprep.subr.bf16.mxu0 0
    %3246 = vmatpush1.bf16.msra.mxu0 %v2660
    %3247 = vmatprep.subr.bf16.mxu0 0
    %3248 = vmatpush1.bf16.msra.mxu0 %v2661
    %3249 = vmatprep.subr.bf16.mxu0 0
    %3250 = vmatpush1.bf16.msra.mxu0 %v2662
    %3251 = vmatprep.subr.bf16.mxu0 0
    %3252 = vmatpush1.bf16.msra.mxu0 %v2663
    %3253 = vmatprep.subr.bf16.mxu0 0
    %3254 = vmatpush1.bf16.msra.mxu0 %v2664
    %3255 = vmatprep.subr.bf16.mxu0 0
    %3256 = vmatpush1.bf16.msra.mxu0 %v2665
    %3257 = vmatprep.subr.bf16.mxu0 0
    %3258 = vmatpush1.bf16.msra.mxu0 %v2666
    %3259 = vmatprep.subr.bf16.mxu0 0
    %3260 = vmatpush1.bf16.msra.mxu0 %v2667
    %3261 = vmatprep.subr.bf16.mxu0 0
    %3262 = vmatpush1.bf16.msra.mxu0 %v2668
    %3263 = vmatprep.subr.bf16.mxu0 0
    %3264 = vmatpush1.bf16.msra.mxu0 %v2669
    %3265 = vmatprep.subr.bf16.mxu0 0
    %3266 = vmatpush1.bf16.msra.mxu0 %v2670
    %3267 = vmatprep.subr.bf16.mxu0 0
    %3268 = vmatpush1.bf16.msra.mxu0 %v2671
    %3269 = vmatprep.subr.bf16.mxu0 0
    %3270 = vmatpush1.bf16.msra.mxu0 %v2672
    %3271 = vmatprep.subr.bf16.mxu0 0
    %3272 = vmatpush1.bf16.msra.mxu0 %v2673
    %3273 = vmatprep.subr.bf16.mxu0 0
    %3274 = vmatpush1.bf16.msra.mxu0 %v2674
    %3275 = vmatprep.mubr.bf16.mxu0 %v1043
    %3276 = vmatmul.mubr.bf16.gmra.mrb[0].mxu0 %v1042
    %v3277 = vpop.f32.mrb[0].mxu0
    %v3278 = vadd.f32 %v3238, %v3277
    %v3279 = vpop.f32.mrb[0].mxu0
    %v3280 = vpop.f32.mrb[0].mxu0
    %v3281 = vpop.f32.mrb[0].mxu0
    %3282 = vdwg.mxu0
    %3283 = vmatprep.subr.bf16.mxu0 0
    %3284 = vmatpush1.bf16.msra.mxu0 %v2675
    %3285 = vmatprep.subr.bf16.mxu0 0
    %3286 = vmatpush1.bf16.msra.mxu0 %v2676
    %3287 = vmatprep.subr.bf16.mxu0 0
    %3288 = vmatpush1.bf16.msra.mxu0 %v2677
    %3289 = vmatprep.subr.bf16.mxu0 0
    %3290 = vmatpush1.bf16.msra.mxu0 %v2678
    %3291 = vmatprep.subr.bf16.mxu0 0
    %3292 = vmatpush1.bf16.msra.mxu0 %v2679
    %3293 = vmatprep.subr.bf16.mxu0 0
    %3294 = vmatpush1.bf16.msra.mxu0 %v2680
    %3295 = vmatprep.subr.bf16.mxu0 0
    %3296 = vmatpush1.bf16.msra.mxu0 %v2681
    %3297 = vmatprep.subr.bf16.mxu0 0
    %3298 = vmatpush1.bf16.msra.mxu0 %v2682
    %3299 = vmatprep.subr.bf16.mxu0 0
    %3300 = vmatpush1.bf16.msra.mxu0 %v2683
    %3301 = vmatprep.subr.bf16.mxu0 0
    %3302 = vmatpush1.bf16.msra.mxu0 %v2684
    %3303 = vmatprep.subr.bf16.mxu0 0
    %3304 = vmatpush1.bf16.msra.mxu0 %v2685
    %3305 = vmatprep.subr.bf16.mxu0 0
    %3306 = vmatpush1.bf16.msra.mxu0 %v2686
    %3307 = vmatprep.subr.bf16.mxu0 0
    %3308 = vmatpush1.bf16.msra.mxu0 %v2687
    %3309 = vmatprep.subr.bf16.mxu0 0
    %3310 = vmatpush1.bf16.msra.mxu0 %v2688
    %3311 = vmatprep.subr.bf16.mxu0 0
    %3312 = vmatpush1.bf16.msra.mxu0 %v2689
    %3313 = vmatprep.subr.bf16.mxu0 0
    %3314 = vmatpush1.bf16.msra.mxu0 %v2690
    %3315 = vmatprep.mubr.bf16.mxu0 %v1045
    %3316 = vmatmul.mubr.bf16.gmra.mrb[0].mxu0 %v1044
    %v3317 = vpop.f32.mrb[0].mxu0
    %v3318 = vadd.f32 %v3278, %v3317
    %v3319 = vpop.f32.mrb[0].mxu0
    %v3320 = vpop.f32.mrb[0].mxu0
    %v3321 = vpop.f32.mrb[0].mxu0
    %3322 = vdwg.mxu0
    %3323 = vmatprep.subr.bf16.mxu0 0
    %3324 = vmatpush1.bf16.msra.mxu0 %v2691
    %3325 = vmatprep.subr.bf16.mxu0 0
    %3326 = vmatpush1.bf16.msra.mxu0 %v2692
    %3327 = vmatprep.subr.bf16.mxu0 0
    %3328 = vmatpush1.bf16.msra.mxu0 %v2693
    %3329 = vmatprep.subr.bf16.mxu0 0
    %3330 = vmatpush1.bf16.msra.mxu0 %v2694
    %3331 = vmatprep.subr.bf16.mxu0 0
    %3332 = vmatpush1.bf16.msra.mxu0 %v2695
    %3333 = vmatprep.subr.bf16.mxu0 0
    %3334 = vmatpush1.bf16.msra.mxu0 %v2696
    %3335 = vmatprep.subr.bf16.mxu0 0
    %3336 = vmatpush1.bf16.msra.mxu0 %v2697
    %3337 = vmatprep.subr.bf16.mxu0 0
    %3338 = vmatpush1.bf16.msra.mxu0 %v2698
    %3339 = vmatprep.subr.bf16.mxu0 0
    %3340 = vmatpush1.bf16.msra.mxu0 %v2699
    %3341 = vmatprep.subr.bf16.mxu0 0
    %3342 = vmatpush1.bf16.msra.mxu0 %v2700
    %3343 = vmatprep.subr.bf16.mxu0 0
    %3344 = vmatpush1.bf16.msra.mxu0 %v2701
    %3345 = vmatprep.subr.bf16.mxu0 0
    %3346 = vmatpush1.bf16.msra.mxu0 %v2702
    %3347 = vmatprep.subr.bf16.mxu0 0
    %3348 = vmatpush1.bf16.msra.mxu0 %v2703
    %3349 = vmatprep.subr.bf16.mxu0 0
    %3350 = vmatpush1.bf16.msra.mxu0 %v2704
    %3351 = vmatprep.subr.bf16.mxu0 0
    %3352 = vmatpush1.bf16.msra.mxu0 %v2705
    %3353 = vmatprep.subr.bf16.mxu0 0
    %3354 = vmatpush1.bf16.msra.mxu0 %v2706
    %3355 = vmatprep.mubr.bf16.mxu0 %v1047
    %3356 = vmatmul.mubr.bf16.gmra.mrb[0].mxu0 %v1046
    %v3357 = vpop.f32.mrb[0].mxu0
    %v3358 = vadd.f32 %v3318, %v3357
    %v3359 = vpop.f32.mrb[0].mxu0
    %v3360 = vpop.f32.mrb[0].mxu0
    %v3361 = vpop.f32.mrb[0].mxu0
    %3362 = vdwg.mxu0
    %3363 = vmatprep.subr.bf16.mxu0 0
    %3364 = vmatpush1.bf16.msra.mxu0 %v2707
    %3365 = vmatprep.subr.bf16.mxu0 0
    %3366 = vmatpush1.bf16.msra.mxu0 %v2708
    %3367 = vmatprep.subr.bf16.mxu0 0
    %3368 = vmatpush1.bf16.msra.mxu0 %v2709
    %3369 = vmatprep.subr.bf16.mxu0 0
    %3370 = vmatpush1.bf16.msra.mxu0 %v2710
    %3371 = vmatprep.subr.bf16.mxu0 0
    %3372 = vmatpush1.bf16.msra.mxu0 %v2711
    %3373 = vmatprep.subr.bf16.mxu0 0
    %3374 = vmatpush1.bf16.msra.mxu0 %v2712
    %3375 = vmatprep.subr.bf16.mxu0 0
    %3376 = vmatpush1.bf16.msra.mxu0 %v2713
    %3377 = vmatprep.subr.bf16.mxu0 0
    %3378 = vmatpush1.bf16.msra.mxu0 %v2714
    %3379 = vmatprep.subr.bf16.mxu0 0
    %3380 = vmatpush1.bf16.msra.mxu0 %v2715
    %3381 = vmatprep.subr.bf16.mxu0 0
    %3382 = vmatpush1.bf16.msra.mxu0 %v2716
    %3383 = vmatprep.subr.bf16.mxu0 0
    %3384 = vmatpush1.bf16.msra.mxu0 %v2717
    %3385 = vmatprep.subr.bf16.mxu0 0
    %3386 = vmatpush1.bf16.msra.mxu0 %v2718
    %3387 = vmatprep.subr.bf16.mxu0 0
    %3388 = vmatpush1.bf16.msra.mxu0 %v2719
    %3389 = vmatprep.subr.bf16.mxu0 0
    %3390 = vmatpush1.bf16.msra.mxu0 %v2720
    %3391 = vmatprep.subr.bf16.mxu0 0
    %3392 = vmatpush1.bf16.msra.mxu0 %v2721
    %3393 = vmatprep.subr.bf16.mxu0 0
    %3394 = vmatpush1.bf16.msra.mxu0 %v2722
    %3395 = vmatprep.mubr.bf16.mxu0 %v1049
    %3396 = vmatmul.mubr.bf16.gmra.mrb[0].mxu0 %v1048
    %v3397 = vpop.f32.mrb[0].mxu0
    %v3398 = vadd.f32 %v3358, %v3397
    %v3399 = vpop.f32.mrb[0].mxu0
    %v3400 = vpop.f32.mrb[0].mxu0
    %v3401 = vpop.f32.mrb[0].mxu0
    %3402 = vdwg.mxu0
    %3403 = vmatprep.subr.bf16.mxu0 0
    %3404 = vmatpush1.bf16.msra.mxu0 %v2723
    %3405 = vmatprep.subr.bf16.mxu0 0
    %3406 = vmatpush1.bf16.msra.mxu0 %v2724
    %3407 = vmatprep.subr.bf16.mxu0 0
    %3408 = vmatpush1.bf16.msra.mxu0 %v2725
    %3409 = vmatprep.subr.bf16.mxu0 0
    %3410 = vmatpush1.bf16.msra.mxu0 %v2726
    %3411 = vmatprep.subr.bf16.mxu0 0
    %3412 = vmatpush1.bf16.msra.mxu0 %v2727
    %3413 = vmatprep.subr.bf16.mxu0 0
    %3414 = vmatpush1.bf16.msra.mxu0 %v2728
    %3415 = vmatprep.subr.bf16.mxu0 0
    %3416 = vmatpush1.bf16.msra.mxu0 %v2729
    %3417 = vmatprep.subr.bf16.mxu0 0
    %3418 = vmatpush1.bf16.msra.mxu0 %v2730
    %3419 = vmatprep.subr.bf16.mxu0 0
    %3420 = vmatpush1.bf16.msra.mxu0 %v2731
    %3421 = vmatprep.subr.bf16.mxu0 0
    %3422 = vmatpush1.bf16.msra.mxu0 %v2732
    %3423 = vmatprep.subr.bf16.mxu0 0
    %3424 = vmatpush1.bf16.msra.mxu0 %v2733
    %3425 = vmatprep.subr.bf16.mxu0 0
    %3426 = vmatpush1.bf16.msra.mxu0 %v2734
    %3427 = vmatprep.subr.bf16.mxu0 0
    %3428 = vmatpush1.bf16.msra.mxu0 %v2735
    %3429 = vmatprep.subr.bf16.mxu0 0
    %3430 = vmatpush1.bf16.msra.mxu0 %v2736
    %3431 = vmatprep.subr.bf16.mxu0 0
    %3432 = vmatpush1.bf16.msra.mxu0 %v2737
    %3433 = vmatprep.subr.bf16.mxu0 0
    %3434 = vmatpush1.bf16.msra.mxu0 %v2738
    %3435 = vmatprep.mubr.bf16.mxu0 %v1051
    %3436 = vmatmul.mubr.bf16.gmra.mrb[0].mxu0 %v1050
    %v3437 = vpop.f32.mrb[0].mxu0
    %v3438 = vadd.f32 %v3398, %v3437
    %v3439 = vpop.f32.mrb[0].mxu0
    %v3440 = vpop.f32.mrb[0].mxu0
    %v3441 = vpop.f32.mrb[0].mxu0
    %3442 = vdwg.mxu0
    %3443 = vmatprep.subr.bf16.mxu0 0
    %3444 = vmatpush1.bf16.msra.mxu0 %v2739
    %3445 = vmatprep.subr.bf16.mxu0 0
    %3446 = vmatpush1.bf16.msra.mxu0 %v2740
    %3447 = vmatprep.subr.bf16.mxu0 0
    %3448 = vmatpush1.bf16.msra.mxu0 %v2741
    %3449 = vmatprep.subr.bf16.mxu0 0
    %3450 = vmatpush1.bf16.msra.mxu0 %v2742
    %3451 = vmatprep.subr.bf16.mxu0 0
    %3452 = vmatpush1.bf16.msra.mxu0 %v2743
    %3453 = vmatprep.subr.bf16.mxu0 0
    %3454 = vmatpush1.bf16.msra.mxu0 %v2744
    %3455 = vmatprep.subr.bf16.mxu0 0
    %3456 = vmatpush1.bf16.msra.mxu0 %v2745
    %3457 = vmatprep.subr.bf16.mxu0 0
    %3458 = vmatpush1.bf16.msra.mxu0 %v2746
    %3459 = vmatprep.subr.bf16.mxu0 0
    %3460 = vmatpush1.bf16.msra.mxu0 %v2747
    %3461 = vmatprep.subr.bf16.mxu0 0
    %3462 = vmatpush1.bf16.msra.mxu0 %v2748
    %3463 = vmatprep.subr.bf16.mxu0 0
    %3464 = vmatpush1.bf16.msra.mxu0 %v2749
    %3465 = vmatprep.subr.bf16.mxu0 0
    %3466 = vmatpush1.bf16.msra.mxu0 %v2750
    %3467 = vmatprep.subr.bf16.mxu0 0
    %3468 = vmatpush1.bf16.msra.mxu0 %v2751
    %3469 = vmatprep.subr.bf16.mxu0 0
    %3470 = vmatpush1.bf16.msra.mxu0 %v2752
    %3471 = vmatprep.subr.bf16.mxu0 0
    %3472 = vmatpush1.bf16.msra.mxu0 %v2753
    %3473 = vmatprep.subr.bf16.mxu0 0
    %3474 = vmatpush1.bf16.msra.mxu0 %v2754
    %3475 = vmatprep.mubr.bf16.mxu0 %v1053
    %3476 = vmatmul.mubr.bf16.gmra.mrb[0].mxu0 %v1052
    %v3477 = vpop.f32.mrb[0].mxu0
    %v3478 = vadd.f32 %v3438, %v3477
    %v3479 = vpop.f32.mrb[0].mxu0
    %v3480 = vpop.f32.mrb[0].mxu0
    %v3481 = vpop.f32.mrb[0].mxu0
    %3482 = vdwg.mxu0
    %3483 = vmatprep.subr.bf16.mxu0 0
    %3484 = vmatpush1.bf16.msra.mxu0 %v2755
    %3485 = vmatprep.subr.bf16.mxu0 0
    %3486 = vmatpush1.bf16.msra.mxu0 %v2756
    %3487 = vmatprep.subr.bf16.mxu0 0
    %3488 = vmatpush1.bf16.msra.mxu0 %v2757
    %3489 = vmatprep.subr.bf16.mxu0 0
    %3490 = vmatpush1.bf16.msra.mxu0 %v2758
    %3491 = vmatprep.subr.bf16.mxu0 0
    %3492 = vmatpush1.bf16.msra.mxu0 %v2759
    %3493 = vmatprep.subr.bf16.mxu0 0
    %3494 = vmatpush1.bf16.msra.mxu0 %v2760
    %3495 = vmatprep.subr.bf16.mxu0 0
    %3496 = vmatpush1.bf16.msra.mxu0 %v2761
    %3497 = vmatprep.subr.bf16.mxu0 0
    %3498 = vmatpush1.bf16.msra.mxu0 %v2762
    %3499 = vmatprep.subr.bf16.mxu0 0
    %3500 = vmatpush1.bf16.msra.mxu0 %v2763
    %3501 = vmatprep.subr.bf16.mxu0 0
    %3502 = vmatpush1.bf16.msra.mxu0 %v2764
    %3503 = vmatprep.subr.bf16.mxu0 0
    %3504 = vmatpush1.bf16.msra.mxu0 %v2765
    %3505 = vmatprep.subr.bf16.mxu0 0
    %3506 = vmatpush1.bf16.msra.mxu0 %v2766
    %3507 = vmatprep.subr.bf16.mxu0 0
    %3508 = vmatpush1.bf16.msra.mxu0 %v2767
    %3509 = vmatprep.subr.bf16.mxu0 0
    %3510 = vmatpush1.bf16.msra.mxu0 %v2768
    %3511 = vmatprep.subr.bf16.mxu0 0
    %3512 = vmatpush1.bf16.msra.mxu0 %v2769
    %3513 = vmatprep.subr.bf16.mxu0 0
    %3514 = vmatpush1.bf16.msra.mxu0 %v2770
    %3515 = vmatprep.mubr.bf16.mxu0 %v1055
    %3516 = vmatmul.mubr.bf16.gmra.mrb[0].mxu0 %v1054
    %v3517 = vpop.f32.mrb[0].mxu0
    %v3518 = vadd.f32 %v3478, %v3517
    %v3519 = vpop.f32.mrb[0].mxu0
    %v3520 = vpop.f32.mrb[0].mxu0
    %v3521 = vpop.f32.mrb[0].mxu0
    %3522 = vdwg.mxu0
    %3523 = vmatprep.subr.bf16.mxu0 0
    %3524 = vmatpush1.bf16.msra.mxu0 %v2771
    %3525 = vmatprep.subr.bf16.mxu0 0
    %3526 = vmatpush1.bf16.msra.mxu0 %v2772
    %3527 = vmatprep.subr.bf16.mxu0 0
    %3528 = vmatpush1.bf16.msra.mxu0 %v2773
    %3529 = vmatprep.subr.bf16.mxu0 0
    %3530 = vmatpush1.bf16.msra.mxu0 %v2774
    %3531 = vmatprep.subr.bf16.mxu0 0
    %3532 = vmatpush1.bf16.msra.mxu0 %v2775
    %3533 = vmatprep.subr.bf16.mxu0 0
    %3534 = vmatpush1.bf16.msra.mxu0 %v2776
    %3535 = vmatprep.subr.bf16.mxu0 0
    %3536 = vmatpush1.bf16.msra.mxu0 %v2777
    %3537 = vmatprep.subr.bf16.mxu0 0
    %3538 = vmatpush1.bf16.msra.mxu0 %v2778
    %3539 = vmatprep.subr.bf16.mxu0 0
    %3540 = vmatpush1.bf16.msra.mxu0 %v2779
    %3541 = vmatprep.subr.bf16.mxu0 0
    %3542 = vmatpush1.bf16.msra.mxu0 %v2780
    %3543 = vmatprep.subr.bf16.mxu0 0
    %3544 = vmatpush1.bf16.msra.mxu0 %v2781
    %3545 = vmatprep.subr.bf16.mxu0 0
    %3546 = vmatpush1.bf16.msra.mxu0 %v2782
    %3547 = vmatprep.subr.bf16.mxu0 0
    %3548 = vmatpush1.bf16.msra.mxu0 %v2783
    %3549 = vmatprep.subr.bf16.mxu0 0
    %3550 = vmatpush1.bf16.msra.mxu0 %v2784
    %3551 = vmatprep.subr.bf16.mxu0 0
    %3552 = vmatpush1.bf16.msra.mxu0 %v2785
    %3553 = vmatprep.subr.bf16.mxu0 0
    %3554 = vmatpush1.bf16.msra.mxu0 %v2786
    %3555 = vmatprep.mubr.bf16.mxu0 %v1057
    %3556 = vmatmul.mubr.bf16.gmra.mrb[0].mxu0 %v1056
    %v3557 = vpop.f32.mrb[0].mxu0
    %v3558 = vadd.f32 %v3518, %v3557
    %v3559 = vpop.f32.mrb[0].mxu0
    %v3560 = vpop.f32.mrb[0].mxu0
    %v3561 = vpop.f32.mrb[0].mxu0
    %3562 = vdwg.mxu0
    %3563 = vmatprep.subr.bf16.mxu0 0
    %3564 = vmatpush1.bf16.msra.mxu0 %v2787
    %3565 = vmatprep.subr.bf16.mxu0 0
    %3566 = vmatpush1.bf16.msra.mxu0 %v2788
    %3567 = vmatprep.subr.bf16.mxu0 0
    %3568 = vmatpush1.bf16.msra.mxu0 %v2789
    %3569 = vmatprep.subr.bf16.mxu0 0
    %3570 = vmatpush1.bf16.msra.mxu0 %v2790
    %3571 = vmatprep.subr.bf16.mxu0 0
    %3572 = vmatpush1.bf16.msra.mxu0 %v2791
    %3573 = vmatprep.subr.bf16.mxu0 0
    %3574 = vmatpush1.bf16.msra.mxu0 %v2792
    %3575 = vmatprep.subr.bf16.mxu0 0
    %3576 = vmatpush1.bf16.msra.mxu0 %v2793
    %3577 = vmatprep.subr.bf16.mxu0 0
    %3578 = vmatpush1.bf16.msra.mxu0 %v2794
    %3579 = vmatprep.subr.bf16.mxu0 0
    %3580 = vmatpush1.bf16.msra.mxu0 %v2795
    %3581 = vmatprep.subr.bf16.mxu0 0
    %3582 = vmatpush1.bf16.msra.mxu0 %v2796
    %3583 = vmatprep.subr.bf16.mxu0 0
    %3584 = vmatpush1.bf16.msra.mxu0 %v2797
    %3585 = vmatprep.subr.bf16.mxu0 0
    %3586 = vmatpush1.bf16.msra.mxu0 %v2798
    %3587 = vmatprep.subr.bf16.mxu0 0
    %3588 = vmatpush1.bf16.msra.mxu0 %v2799
    %3589 = vmatprep.subr.bf16.mxu0 0
    %3590 = vmatpush1.bf16.msra.mxu0 %v2800
    %3591 = vmatprep.subr.bf16.mxu0 0
    %3592 = vmatpush1.bf16.msra.mxu0 %v2801
    %3593 = vmatprep.subr.bf16.mxu0 0
    %3594 = vmatpush1.bf16.msra.mxu0 %v2802
    %3595 = vmatprep.mubr.bf16.mxu0 %v1059
    %3596 = vmatmul.mubr.bf16.gmra.mrb[0].mxu0 %v1058
    %v3597 = vpop.f32.mrb[0].mxu0
    %v3598 = vadd.f32 %v3558, %v3597
    %v3599 = vpop.f32.mrb[0].mxu0
    %v3600 = vpop.f32.mrb[0].mxu0
    %v3601 = vpop.f32.mrb[0].mxu0
    %3602 = vdwg.mxu0
    %3603 = vmatprep.subr.bf16.mxu0 0
    %3604 = vmatpush1.bf16.msra.mxu0 %v2803
    %3605 = vmatprep.subr.bf16.mxu0 0
    %3606 = vmatpush1.bf16.msra.mxu0 %v2804
    %3607 = vmatprep.subr.bf16.mxu0 0
    %3608 = vmatpush1.bf16.msra.mxu0 %v2805
    %3609 = vmatprep.subr.bf16.mxu0 0
    %3610 = vmatpush1.bf16.msra.mxu0 %v2806
    %3611 = vmatprep.subr.bf16.mxu0 0
    %3612 = vmatpush1.bf16.msra.mxu0 %v2807
    %3613 = vmatprep.subr.bf16.mxu0 0
    %3614 = vmatpush1.bf16.msra.mxu0 %v2808
    %3615 = vmatprep.subr.bf16.mxu0 0
    %3616 = vmatpush1.bf16.msra.mxu0 %v2809
    %3617 = vmatprep.subr.bf16.mxu0 0
    %3618 = vmatpush1.bf16.msra.mxu0 %v2810
    %3619 = vmatprep.subr.bf16.mxu0 0
    %3620 = vmatpush1.bf16.msra.mxu0 %v2811
    %3621 = vmatprep.subr.bf16.mxu0 0
    %3622 = vmatpush1.bf16.msra.mxu0 %v2812
    %3623 = vmatprep.subr.bf16.mxu0 0
    %3624 = vmatpush1.bf16.msra.mxu0 %v2813
    %3625 = vmatprep.subr.bf16.mxu0 0
    %3626 = vmatpush1.bf16.msra.mxu0 %v2814
    %3627 = vmatprep.subr.bf16.mxu0 0
    %3628 = vmatpush1.bf16.msra.mxu0 %v2815
    %3629 = vmatprep.subr.bf16.mxu0 0
    %3630 = vmatpush1.bf16.msra.mxu0 %v2816
    %3631 = vmatprep.subr.bf16.mxu0 0
    %3632 = vmatpush1.bf16.msra.mxu0 %v2817
    %3633 = vmatprep.subr.bf16.mxu0 0
    %3634 = vmatpush1.bf16.msra.mxu0 %v2818
    %3635 = vmatprep.mubr.bf16.mxu0 %v1061
    %3636 = vmatmul.mubr.bf16.gmra.mrb[0].mxu0 %v1060
    %v3637 = vpop.f32.mrb[0].mxu0
    %v3638 = vadd.f32 %v3598, %v3637
    %v3639 = vpop.f32.mrb[0].mxu0
    %v3640 = vpop.f32.mrb[0].mxu0
    %v3641 = vpop.f32.mrb[0].mxu0
    %3642 = vdwg.mxu0
    %3643 = vmatprep.subr.bf16.mxu0 0
    %3644 = vmatpush1.bf16.msra.mxu0 %v2819
    %3645 = vmatprep.subr.bf16.mxu0 0
    %3646 = vmatpush1.bf16.msra.mxu0 %v2820
    %3647 = vmatprep.subr.bf16.mxu0 0
    %3648 = vmatpush1.bf16.msra.mxu0 %v2821
    %3649 = vmatprep.subr.bf16.mxu0 0
    %3650 = vmatpush1.bf16.msra.mxu0 %v2822
    %3651 = vmatprep.subr.bf16.mxu0 0
    %3652 = vmatpush1.bf16.msra.mxu0 %v2823
    %3653 = vmatprep.subr.bf16.mxu0 0
    %3654 = vmatpush1.bf16.msra.mxu0 %v2824
    %3655 = vmatprep.subr.bf16.mxu0 0
    %3656 = vmatpush1.bf16.msra.mxu0 %v2825
    %3657 = vmatprep.subr.bf16.mxu0 0
    %3658 = vmatpush1.bf16.msra.mxu0 %v2826
    %3659 = vmatprep.subr.bf16.mxu0 0
    %3660 = vmatpush1.bf16.msra.mxu0 %v2827
    %3661 = vmatprep.subr.bf16.mxu0 0
    %3662 = vmatpush1.bf16.msra.mxu0 %v2828
    %3663 = vmatprep.subr.bf16.mxu0 0
    %3664 = vmatpush1.bf16.msra.mxu0 %v2829
    %3665 = vmatprep.subr.bf16.mxu0 0
    %3666 = vmatpush1.bf16.msra.mxu0 %v2830
    %3667 = vmatprep.subr.bf16.mxu0 0
    %3668 = vmatpush1.bf16.msra.mxu0 %v2831
    %3669 = vmatprep.subr.bf16.mxu0 0
    %3670 = vmatpush1.bf16.msra.mxu0 %v2832
    %3671 = vmatprep.subr.bf16.mxu0 0
    %3672 = vmatpush1.bf16.msra.mxu0 %v2833
    %3673 = vmatprep.subr.bf16.mxu0 0
    %3674 = vmatpush1.bf16.msra.mxu0 %v2834
    %3675 = vmatprep.mubr.bf16.mxu0 %v1063
    %3676 = vmatmul.mubr.bf16.gmra.mrb[0].mxu0 %v1062
    %v3677 = vpop.f32.mrb[0].mxu0
    %v3678 = vadd.f32 %v3638, %v3677
    %v3679 = vpop.f32.mrb[0].mxu0
    %v3680 = vpop.f32.mrb[0].mxu0
    %v3681 = vpop.f32.mrb[0].mxu0
    %3682 = vdwg.mxu0
    %3683 = vmatprep.subr.bf16.mxu0 0
    %3684 = vmatpush1.bf16.msra.mxu0 %v2835
    %3685 = vmatprep.subr.bf16.mxu0 0
    %3686 = vmatpush1.bf16.msra.mxu0 %v2836
    %3687 = vmatprep.subr.bf16.mxu0 0
    %3688 = vmatpush1.bf16.msra.mxu0 %v2837
    %3689 = vmatprep.subr.bf16.mxu0 0
    %3690 = vmatpush1.bf16.msra.mxu0 %v2838
    %3691 = vmatprep.subr.bf16.mxu0 0
    %3692 = vmatpush1.bf16.msra.mxu0 %v2839
    %3693 = vmatprep.subr.bf16.mxu0 0
    %3694 = vmatpush1.bf16.msra.mxu0 %v2840
    %3695 = vmatprep.subr.bf16.mxu0 0
    %3696 = vmatpush1.bf16.msra.mxu0 %v2841
    %3697 = vmatprep.subr.bf16.mxu0 0
    %3698 = vmatpush1.bf16.msra.mxu0 %v2842
    %3699 = vmatprep.subr.bf16.mxu0 0
    %3700 = vmatpush1.bf16.msra.mxu0 %v2843
    %3701 = vmatprep.subr.bf16.mxu0 0
    %3702 = vmatpush1.bf16.msra.mxu0 %v2844
    %3703 = vmatprep.subr.bf16.mxu0 0
    %3704 = vmatpush1.bf16.msra.mxu0 %v2845
    %3705 = vmatprep.subr.bf16.mxu0 0
    %3706 = vmatpush1.bf16.msra.mxu0 %v2846
    %3707 = vmatprep.subr.bf16.mxu0 0
    %3708 = vmatpush1.bf16.msra.mxu0 %v2847
    %3709 = vmatprep.subr.bf16.mxu0 0
    %3710 = vmatpush1.bf16.msra.mxu0 %v2848
    %3711 = vmatprep.subr.bf16.mxu0 0
    %3712 = vmatpush1.bf16.msra.mxu0 %v2849
    %3713 = vmatprep.subr.bf16.mxu0 0
    %3714 = vmatpush1.bf16.msra.mxu0 %v2850
    %3715 = vmatprep.mubr.bf16.mxu0 %v1065
    %3716 = vmatmul.mubr.bf16.gmra.mrb[0].mxu0 %v1064
    %v3717 = vpop.f32.mrb[0].mxu0
    %v3718 = vadd.f32 %v3678, %v3717
    %v3719 = vpop.f32.mrb[0].mxu0
    %v3720 = vpop.f32.mrb[0].mxu0
    %v3721 = vpop.f32.mrb[0].mxu0
    %3722 = vdwg.mxu0
    %3723 = vmatprep.subr.bf16.mxu0 0
    %3724 = vmatpush1.bf16.msra.mxu0 %v2851
    %3725 = vmatprep.subr.bf16.mxu0 0
    %3726 = vmatpush1.bf16.msra.mxu0 %v2852
    %3727 = vmatprep.subr.bf16.mxu0 0
    %3728 = vmatpush1.bf16.msra.mxu0 %v2853
    %3729 = vmatprep.subr.bf16.mxu0 0
    %3730 = vmatpush1.bf16.msra.mxu0 %v2854
    %3731 = vmatprep.subr.bf16.mxu0 0
    %3732 = vmatpush1.bf16.msra.mxu0 %v2855
    %3733 = vmatprep.subr.bf16.mxu0 0
    %3734 = vmatpush1.bf16.msra.mxu0 %v2856
    %3735 = vmatprep.subr.bf16.mxu0 0
    %3736 = vmatpush1.bf16.msra.mxu0 %v2857
    %3737 = vmatprep.subr.bf16.mxu0 0
    %3738 = vmatpush1.bf16.msra.mxu0 %v2858
    %3739 = vmatprep.subr.bf16.mxu0 0
    %3740 = vmatpush1.bf16.msra.mxu0 %v2859
    %3741 = vmatprep.subr.bf16.mxu0 0
    %3742 = vmatpush1.bf16.msra.mxu0 %v2860
    %3743 = vmatprep.subr.bf16.mxu0 0
    %3744 = vmatpush1.bf16.msra.mxu0 %v2861
    %3745 = vmatprep.subr.bf16.mxu0 0
    %3746 = vmatpush1.bf16.msra.mxu0 %v2862
    %3747 = vmatprep.subr.bf16.mxu0 0
    %3748 = vmatpush1.bf16.msra.mxu0 %v2863
    %3749 = vmatprep.subr.bf16.mxu0 0
    %3750 = vmatpush1.bf16.msra.mxu0 %v2864
    %3751 = vmatprep.subr.bf16.mxu0 0
    %3752 = vmatpush1.bf16.msra.mxu0 %v2865
    %3753 = vmatprep.subr.bf16.mxu0 0
    %3754 = vmatpush1.bf16.msra.mxu0 %v2866
    %3755 = vmatprep.mubr.bf16.mxu0 %v1067
    %3756 = vmatmul.mubr.bf16.gmra.mrb[0].mxu0 %v1066
    %v3757 = vpop.f32.mrb[0].mxu0
    %v3758 = vadd.f32 %v3718, %v3757
    %v3759 = vpop.f32.mrb[0].mxu0
    %v3760 = vpop.f32.mrb[0].mxu0
    %v3761 = vpop.f32.mrb[0].mxu0
    %3762 = vdwg.mxu0
    %v3763 = vmax.f32 %v3758, 0.0
    %v3764 = vpack.c.bf16 %v3763, %v3763
    %v3765 = vld [vmem:[%s7] sm:$0xf]
    %v3766 = vld [vmem:[%s7 + $0x4] sm:$0xf]
    %v3767 = vld [vmem:[%s7 + $0x8] sm:$0xf]
    %v3768 = vld [vmem:[%s7 + $0xc] sm:$0xf]
    %v3769 = vld [vmem:[%s7 + $0x10] sm:$0xf]
    %v3770 = vld [vmem:[%s7 + $0x14] sm:$0xf]
    %v3771 = vld [vmem:[%s7 + $0x18] sm:$0xf]
    %v3772 = vld [vmem:[%s7 + $0x1c] sm:$0xf]
    %v3773 = vld [vmem:[%s7 + $0x20] sm:$0xf]
    %v3774 = vld [vmem:[%s7 + $0x24] sm:$0xf]
    %v3775 = vld [vmem:[%s7 + $0x28] sm:$0xf]
    %v3776 = vld [vmem:[%s7 + $0x2c] sm:$0xf]
    %v3777 = vld [vmem:[%s7 + $0x30] sm:$0xf]
    %v3778 = vld [vmem:[%s7 + $0x34] sm:$0xf]
    %v3779 = vld [vmem:[%s7 + $0x38] sm:$0xf]
    %v3780 = vld [vmem:[%s7 + $0x3c] sm:$0xf]
    %v3781 = vld [vmem:[%s8] sm:$0x1]
    %v3783 = vlaneseq
    %v3784 = vshrl.u32 %v3783, 7
    %v3785 = vsub.s32 0, %v3784
    %v3786 = vrot.slane %v3781, %v3785
    %v3804 = vunpack.c.l.b16 %v3765
    %v3805 = vunpack.c.l.b16 %v3766
    %v3806 = vunpack.c.l.b16 %v3767
    %v3807 = vunpack.c.l.b16 %v3768
    %v3808 = vunpack.c.l.b16 %v3769
    %v3809 = vunpack.c.l.b16 %v3770
    %v3810 = vunpack.c.l.b16 %v3771
    %v3811 = vunpack.c.l.b16 %v3772
    %v3812 = vunpack.c.l.b16 %v3773
    %v3813 = vunpack.c.l.b16 %v3774
    %v3814 = vunpack.c.l.b16 %v3775
    %v3815 = vunpack.c.l.b16 %v3776
    %v3816 = vunpack.c.l.b16 %v3777
    %v3817 = vunpack.c.l.b16 %v3778
    %v3818 = vunpack.c.l.b16 %v3779
    %v3819 = vunpack.c.l.b16 %v3780
    %v3820 = vpack.c.b16 %v3805, %v3804
    %v3821 = vpack.c.b16 %v3807, %v3806
    %v3822 = vpack.c.b16 %v3809, %v3808
    %v3823 = vpack.c.b16 %v3811, %v3810
    %v3824 = vpack.c.b16 %v3813, %v3812
    %v3825 = vpack.c.b16 %v3815, %v3814
    %v3826 = vpack.c.b16 %v3817, %v3816
    %v3827 = vpack.c.b16 %v3819, %v3818
    %3836 = vmatprep.subr.bf16.mxu0 0
    %3837 = vmatpush1.bf16.msra.mxu0 %v3820
    %3838 = vmatprep.subr.bf16.mxu0 0
    %3839 = vmatpush1.bf16.msra.mxu0 %v3821
    %3840 = vmatprep.subr.bf16.mxu0 0
    %3841 = vmatpush1.bf16.msra.mxu0 %v3822
    %3842 = vmatprep.subr.bf16.mxu0 0
    %3843 = vmatpush1.bf16.msra.mxu0 %v3823
    %3844 = vmatprep.subr.bf16.mxu0 0
    %3845 = vmatpush1.bf16.msra.mxu0 %v3824
    %3846 = vmatprep.subr.bf16.mxu0 0
    %3847 = vmatpush1.bf16.msra.mxu0 %v3825
    %3848 = vmatprep.subr.bf16.mxu0 0
    %3849 = vmatpush1.bf16.msra.mxu0 %v3826
    %3850 = vmatprep.subr.bf16.mxu0 0
    %3851 = vmatpush1.bf16.msra.mxu0 %v3827
    %3852 = vmatprep.subr.bf16.mxu0 0
    %3853 = vmatpush1.bf16.msra.mxu0 0
    %3854 = vmatprep.subr.bf16.mxu0 0
    %3855 = vmatpush1.bf16.msra.mxu0 0
    %3856 = vmatprep.subr.bf16.mxu0 0
    %3857 = vmatpush1.bf16.msra.mxu0 0
    %3858 = vmatprep.subr.bf16.mxu0 0
    %3859 = vmatpush1.bf16.msra.mxu0 0
    %3860 = vmatprep.subr.bf16.mxu0 0
    %3861 = vmatpush1.bf16.msra.mxu0 0
    %3862 = vmatprep.subr.bf16.mxu0 0
    %3863 = vmatpush1.bf16.msra.mxu0 0
    %3864 = vmatprep.subr.bf16.mxu0 0
    %3865 = vmatpush1.bf16.msra.mxu0 0
    %3866 = vmatprep.subr.bf16.mxu0 0
    %3867 = vmatpush1.bf16.msra.mxu0 0
    %3868 = vmatprep.mubr.bf16.mxu0 0
    %3869 = vmatmul.mubr.bf16.gmra.mrb[0].mxu0 %v3764
    %v3870 = vpop.f32.mrb[0].mxu0
    %v3871 = vadd.f32 %v3786, %v3870
    %v3872 = vpop.f32.mrb[0].mxu0
    %v3873 = vpop.f32.mrb[0].mxu0
    %v3874 = vpop.f32.mrb[0].mxu0
    %3875 = vdwg.mxu0
    %3876 = vst [vmem:[#allocation5] sm:$0x3] %v3871
    // Predicated region
    $region42: #{simple_cnn_forward.1} parent=1 // pred_check
      _
    $region43: #{simple_cnn_forward.1} parent=1 // pred_check_branch
      %3878 = sbr.rel (0) target = $region45
    $region44: #{simple_cnn_forward.1} parent=1 // pred_region
      %s3880 = ssub.s32 32, 32
      %3881 = vsyncadd [#allocation4], %s3880
      %s3883 = sshll.u32 [#allocation5], 4
      %s3884 = int_to_ptr.vmem [resolvable:$true] %s3883
      %3886 = dma.vmem_to_hbm [thread:$0]  %s3884, 32, %s9, [#allocation4]
    $region45: #{simple_cnn_forward.1} parent=1 // pred_fallthru
      _
    // Predicated region
    $region46: #{simple_cnn_forward.1} parent=1 // pred_check
      _
    $region47: #{simple_cnn_forward.1} parent=1 // pred_check_branch
      %3888 = sbr.rel (0) target = $region49
    $region48: #{simple_cnn_forward.1} parent=1 // pred_region
      %3889 = dma.done [#allocation4], 32
    $region49: #{simple_cnn_forward.1} parent=1 // pred_fallthru
      _
    %3890 = vsyncpa [#allocation3], 1
    %3891 = vsyncpa [#allocation4], 1

</llo_original>
